<compile_context>
chip_gen: v7x
topology: tpu7x:2x2x1
jax: 0.10.0
libtpu: 0.0.40
codegen_flags: <defaults>
</compile_context>

<pallas_src>
import jax
import jax.numpy as jnp
from jax.experimental import pallas as pl
from jax.experimental.pallas import tpu as pltpu

RELU_SLOPE = 0.1   # LeakyReLU negative slope (relu=0.1 in the module)
BN_EPS = 1e-5      # nn.BatchNorm1d default eps

INPUT_SIZE = 20 * 80          # 1600 (module default)
H_DIM = [256, 128, 64, 32]    # small stand-ins for [4096, 2048, 1024, 512]
Z_DIM = 16                    # small stand-in for 128
BATCH = 19                    # smallest batch for which view(-1, 19, 80) works


# ---------------------------------------------------------------------------
# Fused Pallas kernel: encoder stack -> packed mu/log_var head ->
#                      folded (z=mu)@dec_in -> decoder stack
# ---------------------------------------------------------------------------
def _make_vae_kernel(n_enc, n_dec):
    def kernel(*refs):
        # refs = (x, [enc_w, enc_b]*n_enc, head_w, dec0_w, [dec_w, dec_b]*n_dec,
        #         recon_out, mulv_out)
        recon_ref, mulv_ref = refs[-2], refs[-1]
        idx = 0
        x_ref = refs[idx]
        idx += 1

        def lin_act(h, w_ref, b_ref):
            # bf16 operands -> MXU, fp32 accumulate, fp32 bias + LeakyReLU(0.1)
            y = jnp.dot(h.astype(jnp.bfloat16), w_ref[...],
                        preferred_element_type=jnp.float32)
            y = y + b_ref[...]
            return jnp.where(y > 0, y, RELU_SLOPE * y)

        h = x_ref[...]
        for _ in range(n_enc):
            w_ref, b_ref = refs[idx], refs[idx + 1]
            idx += 2
            h = lin_act(h, w_ref, b_ref)

        head_w_ref = refs[idx]   # (h[-1], 2*Z_DIM): [mu_w | logvar_w]
        idx += 1
        dec0_w_ref = refs[idx]   # (h[-1], h[-1]) = mu_w @ dec_in_w  (z = mu)
        idx += 1

        # packed mu / log_var slab, single lane-denser store
        mulv_ref[...] = jnp.dot(h.astype(jnp.bfloat16), head_w_ref[...],
                                preferred_element_type=jnp.float32)

        hd = jnp.dot(h.astype(jnp.bfloat16), dec0_w_ref[...],
                     preferred_element_type=jnp.float32)
        for _ in range(n_dec):
            w_ref, b_ref = refs[idx], refs[idx + 1]
            idx += 2
            hd = lin_act(hd, w_ref, b_ref)
        recon_ref[...] = hd      # (M_pad, 1600): lane-dense final store

    return kernel


def _full_spec(shape):
    # whole-array block (toy shapes; everything fits comfortably in VMEM)
    return pl.BlockSpec(shape, lambda i: (0,) * len(shape))


def vae_fused_forward(folded, xp):
    """xp: (M_pad, INPUT_SIZE) fp32 with M_pad % 8 == 0."""
    m = xp.shape[0]
    n_enc = len(folded["enc"])
    n_dec = len(folded["dec"])

    ins = [xp]
    for w, b in folded["enc"]:
        ins += [w, b]
    ins += [folded["head_w"], folded["dec0_w"]]
    for w, b in folded["dec"]:
        ins += [w, b]

    out_shape = (jax.ShapeDtypeStruct((m, INPUT_SIZE), jnp.float32),
                 jax.ShapeDtypeStruct((m, 2 * Z_DIM), jnp.float32))

    return pl.pallas_call(
        _make_vae_kernel(n_enc, n_dec),
        out_shape=out_shape,
        grid=(1,),
        in_specs=[_full_spec(a.shape) for a in ins],
        out_specs=(_full_spec((m, INPUT_SIZE)), _full_spec((m, 2 * Z_DIM))),
        compiler_params=pltpu.CompilerParams(
            dimension_semantics=("arbitrary",)),
    )(*ins)


# ---------------------------------------------------------------------------
# Parameter initialization (deterministic, PyTorch-default-style)
# ---------------------------------------------------------------------------
def _init_linear(key, fan_in, fan_out, bias=True):
    k1, k2 = jax.random.split(key)
    bound = 1.0 / jnp.sqrt(jnp.float32(fan_in))
    w = jax.random.uniform(k1, (fan_in, fan_out), jnp.float32, -bound, bound)
    if not bias:
        return w
    b = jax.random.uniform(k2, (1, fan_out), jnp.float32, -bound, bound)
    return w, b


def _init_bn(key, n):
    k1, k2 = jax.random.split(key)
    gamma = jnp.ones((1, n), jnp.float32)
    beta = jnp.zeros((1, n), jnp.float32)
    # non-trivial (but deterministic) running stats so the BN fold is exercised
    mean = 0.1 * jax.random.normal(k1, (1, n), jnp.float32)
    var = jax.random.uniform(k2, (1, n), jnp.float32, 0.5, 1.5)
    return gamma, beta, mean, var


def init_params(key):
    dims = [INPUT_SIZE] + H_DIM
    params = {"enc": [], "dec": []}
    # encoder: Linear(h[i] -> h[i+1]) + Dropout + BN(h[i+1]) + LeakyReLU
    for i in range(len(dims) - 1):
        key, k_lin, k_bn = jax.random.split(key, 3)
        w, b = _init_linear(k_lin, dims[i], dims[i + 1], bias=True)
        params["enc"].append((w, b) + _init_bn(k_bn, dims[i + 1]))
    # mu / log_var heads (bias=False)
    key, k_mu, k_lv = jax.random.split(key, 3)
    params["mu_w"] = _init_linear(k_mu, dims[-1], Z_DIM, bias=False)
    params["logvar_w"] = _init_linear(k_lv, dims[-1], Z_DIM, bias=False)
    # decoder: Linear(z -> h[-1], bias=False), then mirrored fused layers
    key, k_d0 = jax.random.split(key)
    params["dec_in_w"] = _init_linear(k_d0, Z_DIM, dims[-1], bias=False)
    for i in range(len(dims) - 1, 0, -1):
        key, k_lin, k_bn = jax.random.split(key, 3)
        w, b = _init_linear(k_lin, dims[i], dims[i - 1], bias=True)
        params["dec"].append((w, b) + _init_bn(k_bn, dims[i - 1]))
    return params


# ---------------------------------------------------------------------------
# Host-side folding: BN -> Linear, packed heads, mu_w @ dec_in_w
# ---------------------------------------------------------------------------
def _fold_bn(w, b, gamma, beta, mean, var):
    """Linear followed by eval-mode BN  ==  x @ W' + b'  (exact)."""
    scale = gamma * jax.lax.rsqrt(var + BN_EPS)              # (1, N)
    w_f = (w * scale).astype(jnp.bfloat16)                   # bf16 MXU operand
    b_f = (b - mean) * scale + beta                          # fp32 epilogue
    return w_f, b_f


def fold_params(params):
    return {
        "enc": [_fold_bn(*layer) for layer in params["enc"]],
        "dec": [_fold_bn(*layer) for layer in params["dec"]],
        # packed mu / log_var head: (h[-1], 2*Z_DIM)
        "head_w": jnp.concatenate(
            [params["mu_w"], params["logvar_w"]], axis=1).astype(jnp.bfloat16),
        # eval mode: z = mu  =>  fold mu_w @ dec_in_w into one (h[-1], h[-1])
        "dec0_w": (params["mu_w"] @ params["dec_in_w"]).astype(jnp.bfloat16),
    }


# ---------------------------------------------------------------------------
# Forward pass (eval mode)
# ---------------------------------------------------------------------------
@jax.jit
def vae_forward(folded, x):
    h = x.reshape(-1, INPUT_SIZE).astype(jnp.float32)
    m = h.shape[0]
    m_pad = ((m + 7) // 8) * 8            # pad batch to a sublane multiple
    hp = jnp.pad(h, ((0, m_pad - m), (0, 0)))

    recon, mulv = vae_fused_forward(folded, hp)

    recon = recon[:m]
    mu = mulv[:m, :Z_DIM]
    log_var = mulv[:m, Z_DIM:]
    z = mu                                 # reparameterize() in eval mode
    out = recon.reshape(-1, 19, 80)
    return out, mu, log_var, z


if __name__ == "__main__":
    key = jax.random.PRNGKey(0)
    key, k_x, k_p = jax.random.split(key, 3)
    params = init_params(k_p)
    folded = fold_params(params)
    # input like the PyTorch model: (batch, 20, 80) -> view(-1, 1600)
    x = jax.random.normal(k_x, (BATCH, 20, 80), jnp.float32)

    out, mu, log_var, z = vae_forward(folded, x)
    jax.block_until_ready((out, mu, log_var, z))

    assert out.shape == (BATCH * INPUT_SIZE // (19 * 80), 19, 80)
    assert mu.shape == (BATCH, Z_DIM)
    assert log_var.shape == (BATCH, Z_DIM)
    assert z.shape == (BATCH, Z_DIM)
    print("KERNEL_OK")
</pallas_src>

<mosaic_0001>
module attributes {stable_mosaic.version = 11 : i64} {
  func.func @kernel(%arg0: i32, %arg1: memref<24x1600xf32, #tpu.memory_space<vmem>>, %arg2: memref<1600x256xbf16, #tpu.memory_space<vmem>>, %arg3: memref<1x256xf32, #tpu.memory_space<vmem>>, %arg4: memref<256x128xbf16, #tpu.memory_space<vmem>>, %arg5: memref<1x128xf32, #tpu.memory_space<vmem>>, %arg6: memref<128x64xbf16, #tpu.memory_space<vmem>>, %arg7: memref<1x64xf32, #tpu.memory_space<vmem>>, %arg8: memref<64x32xbf16, #tpu.memory_space<vmem>>, %arg9: memref<1x32xf32, #tpu.memory_space<vmem>>, %arg10: memref<32x32xbf16, #tpu.memory_space<vmem>>, %arg11: memref<32x32xbf16, #tpu.memory_space<vmem>>, %arg12: memref<32x64xbf16, #tpu.memory_space<vmem>>, %arg13: memref<1x64xf32, #tpu.memory_space<vmem>>, %arg14: memref<64x128xbf16, #tpu.memory_space<vmem>>, %arg15: memref<1x128xf32, #tpu.memory_space<vmem>>, %arg16: memref<128x256xbf16, #tpu.memory_space<vmem>>, %arg17: memref<1x256xf32, #tpu.memory_space<vmem>>, %arg18: memref<256x1600xbf16, #tpu.memory_space<vmem>>, %arg19: memref<1x1600xf32, #tpu.memory_space<vmem>>, %arg20: memref<24x1600xf32, #tpu.memory_space<vmem>>, %arg21: memref<24x32xf32, #tpu.memory_space<vmem>>) attributes {dimension_semantics = [#tpu.dimension_semantics<arbitrary>], iteration_bounds = array<i64: 1>, scalar_prefetch = 0 : i64, scratch_operands = 0 : i64, tpu.core_type = #tpu.core_type<tc>, window_params = [{pipeline_mode = #tpu.pipeline_mode<synchronous>, transform_indices = @transform_0, window_bounds = array<i64: 24, 1600>}, {pipeline_mode = #tpu.pipeline_mode<synchronous>, transform_indices = @transform_1, window_bounds = array<i64: 1600, 256>}, {pipeline_mode = #tpu.pipeline_mode<synchronous>, transform_indices = @transform_2, window_bounds = array<i64: 1, 256>}, {pipeline_mode = #tpu.pipeline_mode<synchronous>, transform_indices = @transform_3, window_bounds = array<i64: 256, 128>}, {pipeline_mode = #tpu.pipeline_mode<synchronous>, transform_indices = @transform_4, window_bounds = array<i64: 1, 128>}, {pipeline_mode = #tpu.pipeline_mode<synchronous>, transform_indices = @transform_5, window_bounds = array<i64: 128, 64>}, {pipeline_mode = #tpu.pipeline_mode<synchronous>, transform_indices = @transform_6, window_bounds = array<i64: 1, 64>}, {pipeline_mode = #tpu.pipeline_mode<synchronous>, transform_indices = @transform_7, window_bounds = array<i64: 64, 32>}, {pipeline_mode = #tpu.pipeline_mode<synchronous>, transform_indices = @transform_8, window_bounds = array<i64: 1, 32>}, {pipeline_mode = #tpu.pipeline_mode<synchronous>, transform_indices = @transform_9, window_bounds = array<i64: 32, 32>}, {pipeline_mode = #tpu.pipeline_mode<synchronous>, transform_indices = @transform_10, window_bounds = array<i64: 32, 32>}, {pipeline_mode = #tpu.pipeline_mode<synchronous>, transform_indices = @transform_11, window_bounds = array<i64: 32, 64>}, {pipeline_mode = #tpu.pipeline_mode<synchronous>, transform_indices = @transform_12, window_bounds = array<i64: 1, 64>}, {pipeline_mode = #tpu.pipeline_mode<synchronous>, transform_indices = @transform_13, window_bounds = array<i64: 64, 128>}, {pipeline_mode = #tpu.pipeline_mode<synchronous>, transform_indices = @transform_14, window_bounds = array<i64: 1, 128>}, {pipeline_mode = #tpu.pipeline_mode<synchronous>, transform_indices = @transform_15, window_bounds = array<i64: 128, 256>}, {pipeline_mode = #tpu.pipeline_mode<synchronous>, transform_indices = @transform_16, window_bounds = array<i64: 1, 256>}, {pipeline_mode = #tpu.pipeline_mode<synchronous>, transform_indices = @transform_17, window_bounds = array<i64: 256, 1600>}, {pipeline_mode = #tpu.pipeline_mode<synchronous>, transform_indices = @transform_18, window_bounds = array<i64: 1, 1600>}, {pipeline_mode = #tpu.pipeline_mode<synchronous>, transform_indices = @transform_19, window_bounds = array<i64: 24, 1600>}, {pipeline_mode = #tpu.pipeline_mode<synchronous>, transform_indices = @transform_20, window_bounds = array<i64: 24, 32>}]} {
    %c0 = arith.constant 0 : index
    %c0_0 = arith.constant 0 : index
    %0 = vector.load %arg1[%c0, %c0_0] : memref<24x1600xf32, #tpu.memory_space<vmem>>, vector<24x1600xf32>
    %1 = arith.truncf %0 : vector<24x1600xf32> to vector<24x1600xbf16>
    %c0_1 = arith.constant 0 : index
    %c0_2 = arith.constant 0 : index
    %2 = vector.load %arg2[%c0_1, %c0_2] : memref<1600x256xbf16, #tpu.memory_space<vmem>>, vector<1600x256xbf16>
    %cst = arith.constant dense<0.000000e+00> : vector<24x256xf32>
    %3 = tpu.matmul %1, %2, %cst {dimension_numbers = #tpu.dot_dimension_numbers<[1], [0], [0], [1], [0, 0, 1, 1], [], []>} : vector<24x1600xbf16>, vector<1600x256xbf16>, vector<24x256xf32> -> vector<24x256xf32>
    %c0_3 = arith.constant 0 : index
    %c0_4 = arith.constant 0 : index
    %4 = vector.load %arg3[%c0_3, %c0_4] : memref<1x256xf32, #tpu.memory_space<vmem>>, vector<1x256xf32>
    %5 = vector.broadcast %4 : vector<1x256xf32> to vector<24x256xf32>
    %6 = arith.addf %3, %5 : vector<24x256xf32>
    %cst_5 = arith.constant 0.000000e+00 : f32
    %7 = vector.broadcast %cst_5 : f32 to vector<24x256xf32>
    %8 = arith.cmpf ogt, %6, %7 : vector<24x256xf32>
    %cst_6 = arith.constant 1.000000e-01 : f32
    %9 = vector.broadcast %cst_6 : f32 to vector<24x256xf32>
    %10 = arith.mulf %9, %6 : vector<24x256xf32>
    %11 = arith.select %8, %6, %10 : vector<24x256xi1>, vector<24x256xf32>
    %12 = arith.truncf %11 : vector<24x256xf32> to vector<24x256xbf16>
    %c0_7 = arith.constant 0 : index
    %c0_8 = arith.constant 0 : index
    %13 = vector.load %arg4[%c0_7, %c0_8] : memref<256x128xbf16, #tpu.memory_space<vmem>>, vector<256x128xbf16>
    %cst_9 = arith.constant dense<0.000000e+00> : vector<24x128xf32>
    %14 = tpu.matmul %12, %13, %cst_9 {dimension_numbers = #tpu.dot_dimension_numbers<[1], [0], [0], [1], [0, 0, 1, 1], [], []>} : vector<24x256xbf16>, vector<256x128xbf16>, vector<24x128xf32> -> vector<24x128xf32>
    %c0_10 = arith.constant 0 : index
    %c0_11 = arith.constant 0 : index
    %15 = vector.load %arg5[%c0_10, %c0_11] : memref<1x128xf32, #tpu.memory_space<vmem>>, vector<1x128xf32>
    %16 = vector.broadcast %15 : vector<1x128xf32> to vector<24x128xf32>
    %17 = arith.addf %14, %16 : vector<24x128xf32>
    %cst_12 = arith.constant 0.000000e+00 : f32
    %18 = vector.broadcast %cst_12 : f32 to vector<24x128xf32>
    %19 = arith.cmpf ogt, %17, %18 : vector<24x128xf32>
    %cst_13 = arith.constant 1.000000e-01 : f32
    %20 = vector.broadcast %cst_13 : f32 to vector<24x128xf32>
    %21 = arith.mulf %20, %17 : vector<24x128xf32>
    %22 = arith.select %19, %17, %21 : vector<24x128xi1>, vector<24x128xf32>
    %23 = arith.truncf %22 : vector<24x128xf32> to vector<24x128xbf16>
    %c0_14 = arith.constant 0 : index
    %c0_15 = arith.constant 0 : index
    %24 = vector.load %arg6[%c0_14, %c0_15] : memref<128x64xbf16, #tpu.memory_space<vmem>>, vector<128x64xbf16>
    %cst_16 = arith.constant dense<0.000000e+00> : vector<24x64xf32>
    %25 = tpu.matmul %23, %24, %cst_16 {dimension_numbers = #tpu.dot_dimension_numbers<[1], [0], [0], [1], [0, 0, 1, 1], [], []>} : vector<24x128xbf16>, vector<128x64xbf16>, vector<24x64xf32> -> vector<24x64xf32>
    %c0_17 = arith.constant 0 : index
    %c0_18 = arith.constant 0 : index
    %26 = vector.load %arg7[%c0_17, %c0_18] : memref<1x64xf32, #tpu.memory_space<vmem>>, vector<1x64xf32>
    %27 = vector.broadcast %26 : vector<1x64xf32> to vector<24x64xf32>
    %28 = arith.addf %25, %27 : vector<24x64xf32>
    %cst_19 = arith.constant 0.000000e+00 : f32
    %29 = vector.broadcast %cst_19 : f32 to vector<24x64xf32>
    %30 = arith.cmpf ogt, %28, %29 : vector<24x64xf32>
    %cst_20 = arith.constant 1.000000e-01 : f32
    %31 = vector.broadcast %cst_20 : f32 to vector<24x64xf32>
    %32 = arith.mulf %31, %28 : vector<24x64xf32>
    %33 = arith.select %30, %28, %32 : vector<24x64xi1>, vector<24x64xf32>
    %34 = arith.truncf %33 : vector<24x64xf32> to vector<24x64xbf16>
    %c0_21 = arith.constant 0 : index
    %c0_22 = arith.constant 0 : index
    %35 = vector.load %arg8[%c0_21, %c0_22] : memref<64x32xbf16, #tpu.memory_space<vmem>>, vector<64x32xbf16>
    %cst_23 = arith.constant dense<0.000000e+00> : vector<24x32xf32>
    %36 = tpu.matmul %34, %35, %cst_23 {dimension_numbers = #tpu.dot_dimension_numbers<[1], [0], [0], [1], [0, 0, 1, 1], [], []>} : vector<24x64xbf16>, vector<64x32xbf16>, vector<24x32xf32> -> vector<24x32xf32>
    %c0_24 = arith.constant 0 : index
    %c0_25 = arith.constant 0 : index
    %37 = vector.load %arg9[%c0_24, %c0_25] : memref<1x32xf32, #tpu.memory_space<vmem>>, vector<1x32xf32>
    %38 = vector.broadcast %37 : vector<1x32xf32> to vector<24x32xf32>
    %39 = arith.addf %36, %38 : vector<24x32xf32>
    %cst_26 = arith.constant 0.000000e+00 : f32
    %40 = vector.broadcast %cst_26 : f32 to vector<24x32xf32>
    %41 = arith.cmpf ogt, %39, %40 : vector<24x32xf32>
    %cst_27 = arith.constant 1.000000e-01 : f32
    %42 = vector.broadcast %cst_27 : f32 to vector<24x32xf32>
    %43 = arith.mulf %42, %39 : vector<24x32xf32>
    %44 = arith.select %41, %39, %43 : vector<24x32xi1>, vector<24x32xf32>
    %45 = arith.truncf %44 : vector<24x32xf32> to vector<24x32xbf16>
    %c0_28 = arith.constant 0 : index
    %c0_29 = arith.constant 0 : index
    %46 = vector.load %arg10[%c0_28, %c0_29] : memref<32x32xbf16, #tpu.memory_space<vmem>>, vector<32x32xbf16>
    %cst_30 = arith.constant dense<0.000000e+00> : vector<24x32xf32>
    %47 = tpu.matmul %45, %46, %cst_30 {dimension_numbers = #tpu.dot_dimension_numbers<[1], [0], [0], [1], [0, 0, 1, 1], [], []>} : vector<24x32xbf16>, vector<32x32xbf16>, vector<24x32xf32> -> vector<24x32xf32>
    %c0_31 = arith.constant 0 : index
    %c0_32 = arith.constant 0 : index
    %48 = vector.load %arg21[%c0_31, %c0_32] : memref<24x32xf32, #tpu.memory_space<vmem>>, vector<24x32xf32>
    tpu.vector_store %arg21[%c0_31, %c0_32], %47 {strides = array<i32>} : memref<24x32xf32, #tpu.memory_space<vmem>>, vector<24x32xf32>,
    %49 = arith.truncf %44 : vector<24x32xf32> to vector<24x32xbf16>
    %c0_33 = arith.constant 0 : index
    %c0_34 = arith.constant 0 : index
    %50 = vector.load %arg11[%c0_33, %c0_34] : memref<32x32xbf16, #tpu.memory_space<vmem>>, vector<32x32xbf16>
    %cst_35 = arith.constant dense<0.000000e+00> : vector<24x32xf32>
    %51 = tpu.matmul %49, %50, %cst_35 {dimension_numbers = #tpu.dot_dimension_numbers<[1], [0], [0], [1], [0, 0, 1, 1], [], []>} : vector<24x32xbf16>, vector<32x32xbf16>, vector<24x32xf32> -> vector<24x32xf32>
    %52 = arith.truncf %51 : vector<24x32xf32> to vector<24x32xbf16>
    %c0_36 = arith.constant 0 : index
    %c0_37 = arith.constant 0 : index
    %53 = vector.load %arg12[%c0_36, %c0_37] : memref<32x64xbf16, #tpu.memory_space<vmem>>, vector<32x64xbf16>
    %cst_38 = arith.constant dense<0.000000e+00> : vector<24x64xf32>
    %54 = tpu.matmul %52, %53, %cst_38 {dimension_numbers = #tpu.dot_dimension_numbers<[1], [0], [0], [1], [0, 0, 1, 1], [], []>} : vector<24x32xbf16>, vector<32x64xbf16>, vector<24x64xf32> -> vector<24x64xf32>
    %c0_39 = arith.constant 0 : index
    %c0_40 = arith.constant 0 : index
    %55 = vector.load %arg13[%c0_39, %c0_40] : memref<1x64xf32, #tpu.memory_space<vmem>>, vector<1x64xf32>
    %56 = vector.broadcast %55 : vector<1x64xf32> to vector<24x64xf32>
    %57 = arith.addf %54, %56 : vector<24x64xf32>
    %cst_41 = arith.constant 0.000000e+00 : f32
    %58 = vector.broadcast %cst_41 : f32 to vector<24x64xf32>
    %59 = arith.cmpf ogt, %57, %58 : vector<24x64xf32>
    %cst_42 = arith.constant 1.000000e-01 : f32
    %60 = vector.broadcast %cst_42 : f32 to vector<24x64xf32>
    %61 = arith.mulf %60, %57 : vector<24x64xf32>
    %62 = arith.select %59, %57, %61 : vector<24x64xi1>, vector<24x64xf32>
    %63 = arith.truncf %62 : vector<24x64xf32> to vector<24x64xbf16>
    %c0_43 = arith.constant 0 : index
    %c0_44 = arith.constant 0 : index
    %64 = vector.load %arg14[%c0_43, %c0_44] : memref<64x128xbf16, #tpu.memory_space<vmem>>, vector<64x128xbf16>
    %cst_45 = arith.constant dense<0.000000e+00> : vector<24x128xf32>
    %65 = tpu.matmul %63, %64, %cst_45 {dimension_numbers = #tpu.dot_dimension_numbers<[1], [0], [0], [1], [0, 0, 1, 1], [], []>} : vector<24x64xbf16>, vector<64x128xbf16>, vector<24x128xf32> -> vector<24x128xf32>
    %c0_46 = arith.constant 0 : index
    %c0_47 = arith.constant 0 : index
    %66 = vector.load %arg15[%c0_46, %c0_47] : memref<1x128xf32, #tpu.memory_space<vmem>>, vector<1x128xf32>
    %67 = vector.broadcast %66 : vector<1x128xf32> to vector<24x128xf32>
    %68 = arith.addf %65, %67 : vector<24x128xf32>
    %cst_48 = arith.constant 0.000000e+00 : f32
    %69 = vector.broadcast %cst_48 : f32 to vector<24x128xf32>
    %70 = arith.cmpf ogt, %68, %69 : vector<24x128xf32>
    %cst_49 = arith.constant 1.000000e-01 : f32
    %71 = vector.broadcast %cst_49 : f32 to vector<24x128xf32>
    %72 = arith.mulf %71, %68 : vector<24x128xf32>
    %73 = arith.select %70, %68, %72 : vector<24x128xi1>, vector<24x128xf32>
    %74 = arith.truncf %73 : vector<24x128xf32> to vector<24x128xbf16>
    %c0_50 = arith.constant 0 : index
    %c0_51 = arith.constant 0 : index
    %75 = vector.load %arg16[%c0_50, %c0_51] : memref<128x256xbf16, #tpu.memory_space<vmem>>, vector<128x256xbf16>
    %cst_52 = arith.constant dense<0.000000e+00> : vector<24x256xf32>
    %76 = tpu.matmul %74, %75, %cst_52 {dimension_numbers = #tpu.dot_dimension_numbers<[1], [0], [0], [1], [0, 0, 1, 1], [], []>} : vector<24x128xbf16>, vector<128x256xbf16>, vector<24x256xf32> -> vector<24x256xf32>
    %c0_53 = arith.constant 0 : index
    %c0_54 = arith.constant 0 : index
    %77 = vector.load %arg17[%c0_53, %c0_54] : memref<1x256xf32, #tpu.memory_space<vmem>>, vector<1x256xf32>
    %78 = vector.broadcast %77 : vector<1x256xf32> to vector<24x256xf32>
    %79 = arith.addf %76, %78 : vector<24x256xf32>
    %cst_55 = arith.constant 0.000000e+00 : f32
    %80 = vector.broadcast %cst_55 : f32 to vector<24x256xf32>
    %81 = arith.cmpf ogt, %79, %80 : vector<24x256xf32>
    %cst_56 = arith.constant 1.000000e-01 : f32
    %82 = vector.broadcast %cst_56 : f32 to vector<24x256xf32>
    %83 = arith.mulf %82, %79 : vector<24x256xf32>
    %84 = arith.select %81, %79, %83 : vector<24x256xi1>, vector<24x256xf32>
    %85 = arith.truncf %84 : vector<24x256xf32> to vector<24x256xbf16>
    %c0_57 = arith.constant 0 : index
    %c0_58 = arith.constant 0 : index
    %86 = vector.load %arg18[%c0_57, %c0_58] : memref<256x1600xbf16, #tpu.memory_space<vmem>>, vector<256x1600xbf16>
    %cst_59 = arith.constant dense<0.000000e+00> : vector<24x1600xf32>
    %87 = tpu.matmul %85, %86, %cst_59 {dimension_numbers = #tpu.dot_dimension_numbers<[1], [0], [0], [1], [0, 0, 1, 1], [], []>} : vector<24x256xbf16>, vector<256x1600xbf16>, vector<24x1600xf32> -> vector<24x1600xf32>
    %c0_60 = arith.constant 0 : index
    %c0_61 = arith.constant 0 : index
    %88 = vector.load %arg19[%c0_60, %c0_61] : memref<1x1600xf32, #tpu.memory_space<vmem>>, vector<1x1600xf32>
    %89 = vector.broadcast %88 : vector<1x1600xf32> to vector<24x1600xf32>
    %90 = arith.addf %87, %89 : vector<24x1600xf32>
    %cst_62 = arith.constant 0.000000e+00 : f32
    %91 = vector.broadcast %cst_62 : f32 to vector<24x1600xf32>
    %92 = arith.cmpf ogt, %90, %91 : vector<24x1600xf32>
    %cst_63 = arith.constant 1.000000e-01 : f32
    %93 = vector.broadcast %cst_63 : f32 to vector<24x1600xf32>
    %94 = arith.mulf %93, %90 : vector<24x1600xf32>
    %95 = arith.select %92, %90, %94 : vector<24x1600xi1>, vector<24x1600xf32>
    %c0_64 = arith.constant 0 : index
    %c0_65 = arith.constant 0 : index
    %96 = vector.load %arg20[%c0_64, %c0_65] : memref<24x1600xf32, #tpu.memory_space<vmem>>, vector<24x1600xf32>
    tpu.vector_store %arg20[%c0_64, %c0_65], %95 {strides = array<i32>} : memref<24x1600xf32, #tpu.memory_space<vmem>>, vector<24x1600xf32>,
    return
  }
  func.func @transform_0(%arg0: i32) -> (i32, i32) {
    %c0_i32 = arith.constant 0 : i32
    %c0_i32_0 = arith.constant 0 : i32
    %c0_i32_1 = arith.constant 0 : i32
    return %c0_i32, %c0_i32_0 : i32, i32
  }
  func.func @transform_1(%arg0: i32) -> (i32, i32) {
    %c0_i32 = arith.constant 0 : i32
    %c0_i32_0 = arith.constant 0 : i32
    %c0_i32_1 = arith.constant 0 : i32
    return %c0_i32, %c0_i32_0 : i32, i32
  }
  func.func @transform_2(%arg0: i32) -> (i32, i32) {
    %c0_i32 = arith.constant 0 : i32
    %c0_i32_0 = arith.constant 0 : i32
    %c0_i32_1 = arith.constant 0 : i32
    return %c0_i32, %c0_i32_0 : i32, i32
  }
  func.func @transform_3(%arg0: i32) -> (i32, i32) {
    %c0_i32 = arith.constant 0 : i32
    %c0_i32_0 = arith.constant 0 : i32
    %c0_i32_1 = arith.constant 0 : i32
    return %c0_i32, %c0_i32_0 : i32, i32
  }
  func.func @transform_4(%arg0: i32) -> (i32, i32) {
    %c0_i32 = arith.constant 0 : i32
    %c0_i32_0 = arith.constant 0 : i32
    %c0_i32_1 = arith.constant 0 : i32
    return %c0_i32, %c0_i32_0 : i32, i32
  }
  func.func @transform_5(%arg0: i32) -> (i32, i32) {
    %c0_i32 = arith.constant 0 : i32
    %c0_i32_0 = arith.constant 0 : i32
    %c0_i32_1 = arith.constant 0 : i32
    return %c0_i32, %c0_i32_0 : i32, i32
  }
  func.func @transform_6(%arg0: i32) -> (i32, i32) {
    %c0_i32 = arith.constant 0 : i32
    %c0_i32_0 = arith.constant 0 : i32
    %c0_i32_1 = arith.constant 0 : i32
    return %c0_i32, %c0_i32_0 : i32, i32
  }
  func.func @transform_7(%arg0: i32) -> (i32, i32) {
    %c0_i32 = arith.constant 0 : i32
    %c0_i32_0 = arith.constant 0 : i32
    %c0_i32_1 = arith.constant 0 : i32
    return %c0_i32, %c0_i32_0 : i32, i32
  }
  func.func @transform_8(%arg0: i32) -> (i32, i32) {
    %c0_i32 = arith.constant 0 : i32
    %c0_i32_0 = arith.constant 0 : i32
    %c0_i32_1 = arith.constant 0 : i32
    return %c0_i32, %c0_i32_0 : i32, i32
  }
  func.func @transform_9(%arg0: i32) -> (i32, i32) {
    %c0_i32 = arith.constant 0 : i32
    %c0_i32_0 = arith.constant 0 : i32
    %c0_i32_1 = arith.constant 0 : i32
    return %c0_i32, %c0_i32_0 : i32, i32
  }
  func.func @transform_10(%arg0: i32) -> (i32, i32) {
    %c0_i32 = arith.constant 0 : i32
    %c0_i32_0 = arith.constant 0 : i32
    %c0_i32_1 = arith.constant 0 : i32
    return %c0_i32, %c0_i32_0 : i32, i32
  }
  func.func @transform_11(%arg0: i32) -> (i32, i32) {
    %c0_i32 = arith.constant 0 : i32
    %c0_i32_0 = arith.constant 0 : i32
    %c0_i32_1 = arith.constant 0 : i32
    return %c0_i32, %c0_i32_0 : i32, i32
  }
  func.func @transform_12(%arg0: i32) -> (i32, i32) {
    %c0_i32 = arith.constant 0 : i32
    %c0_i32_0 = arith.constant 0 : i32
    %c0_i32_1 = arith.constant 0 : i32
    return %c0_i32, %c0_i32_0 : i32, i32
  }
  func.func @transform_13(%arg0: i32) -> (i32, i32) {
    %c0_i32 = arith.constant 0 : i32
    %c0_i32_0 = arith.constant 0 : i32
    %c0_i32_1 = arith.constant 0 : i32
    return %c0_i32, %c0_i32_0 : i32, i32
  }
  func.func @transform_14(%arg0: i32) -> (i32, i32) {
    %c0_i32 = arith.constant 0 : i32
    %c0_i32_0 = arith.constant 0 : i32
    %c0_i32_1 = arith.constant 0 : i32
    return %c0_i32, %c0_i32_0 : i32, i32
  }
  func.func @transform_15(%arg0: i32) -> (i32, i32) {
    %c0_i32 = arith.constant 0 : i32
    %c0_i32_0 = arith.constant 0 : i32
    %c0_i32_1 = arith.constant 0 : i32
    return %c0_i32, %c0_i32_0 : i32, i32
  }
  func.func @transform_16(%arg0: i32) -> (i32, i32) {
    %c0_i32 = arith.constant 0 : i32
    %c0_i32_0 = arith.constant 0 : i32
    %c0_i32_1 = arith.constant 0 : i32
    return %c0_i32, %c0_i32_0 : i32, i32
  }
  func.func @transform_17(%arg0: i32) -> (i32, i32) {
    %c0_i32 = arith.constant 0 : i32
    %c0_i32_0 = arith.constant 0 : i32
    %c0_i32_1 = arith.constant 0 : i32
    return %c0_i32, %c0_i32_0 : i32, i32
  }
  func.func @transform_18(%arg0: i32) -> (i32, i32) {
    %c0_i32 = arith.constant 0 : i32
    %c0_i32_0 = arith.constant 0 : i32
    %c0_i32_1 = arith.constant 0 : i32
    return %c0_i32, %c0_i32_0 : i32, i32
  }
  func.func @transform_19(%arg0: i32) -> (i32, i32) {
    %c0_i32 = arith.constant 0 : i32
    %c0_i32_0 = arith.constant 0 : i32
    %c0_i32_1 = arith.constant 0 : i32
    return %c0_i32, %c0_i32_0 : i32, i32
  }
  func.func @transform_20(%arg0: i32) -> (i32, i32) {
    %c0_i32 = arith.constant 0 : i32
    %c0_i32_0 = arith.constant 0 : i32
    %c0_i32_1 = arith.constant 0 : i32
    return %c0_i32, %c0_i32_0 : i32, i32
  }
}

</mosaic_0001>

<llo_original>
// kernel: vae_forward.1
$region0: #{vae_forward.1}
  #allocation0 [shape = 'u32[]', space=smem, size = 0x4, offset = 0x4, fixed_abs, tag = 'smem constant byte address 0x4 - core index']
  #allocation1 [shape = 'u32[144,128]{1,0:T(1,128)}', space=vmem, size = 0x12000, scoped, tag = 'internal scratch']
  %s0 = inlined_call_operand.vmem [shape: f32[24,1600], index: 0, kind: input, shape index: {}]
  %s1 = inlined_call_operand.vmem [shape: bf16[1600,256], index: 1, kind: input, shape index: {}]
  %s2 = inlined_call_operand.vmem [shape: f32[1,256], index: 2, kind: input, shape index: {}]
  %s3 = inlined_call_operand.vmem [shape: bf16[256,128], index: 3, kind: input, shape index: {}]
  %s4 = inlined_call_operand.vmem [shape: f32[1,128], index: 4, kind: input, shape index: {}]
  %s5 = inlined_call_operand.vmem [shape: bf16[128,64], index: 5, kind: input, shape index: {}]
  %s6 = inlined_call_operand.vmem [shape: f32[1,64], index: 6, kind: input, shape index: {}]
  %s7 = inlined_call_operand.vmem [shape: bf16[64,32], index: 7, kind: input, shape index: {}]
  %s8 = inlined_call_operand.vmem [shape: f32[1,32], index: 8, kind: input, shape index: {}]
  %s9 = inlined_call_operand.vmem [shape: bf16[32,32], index: 9, kind: input, shape index: {}]
  %s10 = inlined_call_operand.vmem [shape: bf16[32,32], index: 10, kind: input, shape index: {}]
  %s11 = inlined_call_operand.vmem [shape: bf16[32,64], index: 11, kind: input, shape index: {}]
  %s12 = inlined_call_operand.vmem [shape: f32[1,64], index: 12, kind: input, shape index: {}]
  %s13 = inlined_call_operand.vmem [shape: bf16[64,128], index: 13, kind: input, shape index: {}]
  %s14 = inlined_call_operand.vmem [shape: f32[1,128], index: 14, kind: input, shape index: {}]
  %s15 = inlined_call_operand.vmem [shape: bf16[128,256], index: 15, kind: input, shape index: {}]
  %s16 = inlined_call_operand.vmem [shape: f32[1,256], index: 16, kind: input, shape index: {}]
  %s17 = inlined_call_operand.vmem [shape: bf16[256,1600], index: 17, kind: input, shape index: {}]
  %s18 = inlined_call_operand.vmem [shape: f32[1,1600], index: 18, kind: input, shape index: {}]
  %s19 = inlined_call_operand.vmem [shape: f32[24,1600], index: 19, kind: output, shape index: {0}]
  %s20 = inlined_call_operand.vmem [shape: f32[24,32], index: 20, kind: output, shape index: {1}]
  %21 = xla_tuple %s19, %s20
  %s22 = sld [smem:[#allocation0]]
  $region94: #{vae_forward.1} parent=0
    _
  %s24 = ssub.s32 1, %s22
  %s25 = scalar_select 0, %s24, %s22
  // Predicated region
  $region2: #{vae_forward.1} parent=0 // pred_check
    _
  $region3: #{vae_forward.1} parent=0 // pred_check_branch
    %27 = sbr.rel (0) target = $region5
  $region4: #{vae_forward.1} parent=0 // pred_region
    _
  $region5: #{vae_forward.1} parent=0 // pred_fallthru
    _
  // Predicated region
  $region6: #{vae_forward.1} parent=0 // pred_check
    _
  $region7: #{vae_forward.1} parent=0 // pred_check_branch
    %29 = sbr.rel (0) target = $region9
  $region8: #{vae_forward.1} parent=0 // pred_region
    _
  $region9: #{vae_forward.1} parent=0 // pred_fallthru
    _
  // Predicated region
  $region10: #{vae_forward.1} parent=0 // pred_check
    _
  $region11: #{vae_forward.1} parent=0 // pred_check_branch
    %31 = sbr.rel (0) target = $region13
  $region12: #{vae_forward.1} parent=0 // pred_region
    _
  $region13: #{vae_forward.1} parent=0 // pred_fallthru
    _
  // Predicated region
  $region14: #{vae_forward.1} parent=0 // pred_check
    _
  $region15: #{vae_forward.1} parent=0 // pred_check_branch
    %33 = sbr.rel (0) target = $region17
  $region16: #{vae_forward.1} parent=0 // pred_region
    _
  $region17: #{vae_forward.1} parent=0 // pred_fallthru
    _
  // Predicated region
  $region18: #{vae_forward.1} parent=0 // pred_check
    _
  $region19: #{vae_forward.1} parent=0 // pred_check_branch
    %35 = sbr.rel (0) target = $region21
  $region20: #{vae_forward.1} parent=0 // pred_region
    _
  $region21: #{vae_forward.1} parent=0 // pred_fallthru
    _
  // Predicated region
  $region22: #{vae_forward.1} parent=0 // pred_check
    _
  $region23: #{vae_forward.1} parent=0 // pred_check_branch
    %37 = sbr.rel (0) target = $region25
  $region24: #{vae_forward.1} parent=0 // pred_region
    _
  $region25: #{vae_forward.1} parent=0 // pred_fallthru
    _
  // Predicated region
  $region26: #{vae_forward.1} parent=0 // pred_check
    _
  $region27: #{vae_forward.1} parent=0 // pred_check_branch
    %39 = sbr.rel (0) target = $region29
  $region28: #{vae_forward.1} parent=0 // pred_region
    _
  $region29: #{vae_forward.1} parent=0 // pred_fallthru
    _
  // Predicated region
  $region30: #{vae_forward.1} parent=0 // pred_check
    _
  $region31: #{vae_forward.1} parent=0 // pred_check_branch
    %41 = sbr.rel (0) target = $region33
  $region32: #{vae_forward.1} parent=0 // pred_region
    _
  $region33: #{vae_forward.1} parent=0 // pred_fallthru
    _
  // Predicated region
  $region34: #{vae_forward.1} parent=0 // pred_check
    _
  $region35: #{vae_forward.1} parent=0 // pred_check_branch
    %43 = sbr.rel (0) target = $region37
  $region36: #{vae_forward.1} parent=0 // pred_region
    _
  $region37: #{vae_forward.1} parent=0 // pred_fallthru
    _
  // Predicated region
  $region38: #{vae_forward.1} parent=0 // pred_check
    _
  $region39: #{vae_forward.1} parent=0 // pred_check_branch
    %45 = sbr.rel (0) target = $region41
  $region40: #{vae_forward.1} parent=0 // pred_region
    _
  $region41: #{vae_forward.1} parent=0 // pred_fallthru
    _
  // Predicated region
  $region42: #{vae_forward.1} parent=0 // pred_check
    _
  $region43: #{vae_forward.1} parent=0 // pred_check_branch
    %47 = sbr.rel (0) target = $region45
  $region44: #{vae_forward.1} parent=0 // pred_region
    _
  $region45: #{vae_forward.1} parent=0 // pred_fallthru
    _
  // Predicated region
  $region46: #{vae_forward.1} parent=0 // pred_check
    _
  $region47: #{vae_forward.1} parent=0 // pred_check_branch
    %49 = sbr.rel (0) target = $region49
  $region48: #{vae_forward.1} parent=0 // pred_region
    _
  $region49: #{vae_forward.1} parent=0 // pred_fallthru
    _
  // Predicated region
  $region50: #{vae_forward.1} parent=0 // pred_check
    _
  $region51: #{vae_forward.1} parent=0 // pred_check_branch
    %51 = sbr.rel (0) target = $region53
  $region52: #{vae_forward.1} parent=0 // pred_region
    _
  $region53: #{vae_forward.1} parent=0 // pred_fallthru
    _
  // Predicated region
  $region54: #{vae_forward.1} parent=0 // pred_check
    _
  $region55: #{vae_forward.1} parent=0 // pred_check_branch
    %53 = sbr.rel (0) target = $region57
  $region56: #{vae_forward.1} parent=0 // pred_region
    _
  $region57: #{vae_forward.1} parent=0 // pred_fallthru
    _
  // Predicated region
  $region58: #{vae_forward.1} parent=0 // pred_check
    _
  $region59: #{vae_forward.1} parent=0 // pred_check_branch
    %55 = sbr.rel (0) target = $region61
  $region60: #{vae_forward.1} parent=0 // pred_region
    _
  $region61: #{vae_forward.1} parent=0 // pred_fallthru
    _
  // Predicated region
  $region62: #{vae_forward.1} parent=0 // pred_check
    _
  $region63: #{vae_forward.1} parent=0 // pred_check_branch
    %57 = sbr.rel (0) target = $region65
  $region64: #{vae_forward.1} parent=0 // pred_region
    _
  $region65: #{vae_forward.1} parent=0 // pred_fallthru
    _
  // Predicated region
  $region66: #{vae_forward.1} parent=0 // pred_check
    _
  $region67: #{vae_forward.1} parent=0 // pred_check_branch
    %59 = sbr.rel (0) target = $region69
  $region68: #{vae_forward.1} parent=0 // pred_region
    _
  $region69: #{vae_forward.1} parent=0 // pred_fallthru
    _
  // Predicated region
  $region70: #{vae_forward.1} parent=0 // pred_check
    _
  $region71: #{vae_forward.1} parent=0 // pred_check_branch
    %61 = sbr.rel (0) target = $region73
  $region72: #{vae_forward.1} parent=0 // pred_region
    _
  $region73: #{vae_forward.1} parent=0 // pred_fallthru
    _
  // Predicated region
  $region74: #{vae_forward.1} parent=0 // pred_check
    _
  $region75: #{vae_forward.1} parent=0 // pred_check_branch
    %63 = sbr.rel (0) target = $region77
  $region76: #{vae_forward.1} parent=0 // pred_region
    _
  $region77: #{vae_forward.1} parent=0 // pred_fallthru
    _
  %v65 = vld [vmem:[%s0] sm:$0xff]
  %v66 = vld [vmem:[%s0 + $0x8] sm:$0xff]
  %v67 = vld [vmem:[%s0 + $0x10] sm:$0xff]
  %v68 = vld [vmem:[%s0 + $0x18] sm:$0xff]
  %v69 = vld [vmem:[%s0 + $0x20] sm:$0xff]
  %v70 = vld [vmem:[%s0 + $0x28] sm:$0xff]
  %v71 = vld [vmem:[%s0 + $0x30] sm:$0xff]
  %v72 = vld [vmem:[%s0 + $0x38] sm:$0xff]
  %v73 = vld [vmem:[%s0 + $0x40] sm:$0xff]
  %v74 = vld [vmem:[%s0 + $0x48] sm:$0xff]
  %v75 = vld [vmem:[%s0 + $0x50] sm:$0xff]
  %v76 = vld [vmem:[%s0 + $0x58] sm:$0xff]
  %v77 = vld [vmem:[%s0 + $0x60] sm:$0xff]
  %v78 = vld [vmem:[%s0 + $0x68] sm:$0xff]
  %v79 = vld [vmem:[%s0 + $0x70] sm:$0xff]
  %v80 = vld [vmem:[%s0 + $0x78] sm:$0xff]
  %v81 = vld [vmem:[%s0 + $0x80] sm:$0xff]
  %v82 = vld [vmem:[%s0 + $0x88] sm:$0xff]
  %v83 = vld [vmem:[%s0 + $0x90] sm:$0xff]
  %v84 = vld [vmem:[%s0 + $0x98] sm:$0xff]
  %v85 = vld [vmem:[%s0 + $0xa0] sm:$0xff]
  %v86 = vld [vmem:[%s0 + $0xa8] sm:$0xff]
  %v87 = vld [vmem:[%s0 + $0xb0] sm:$0xff]
  %v88 = vld [vmem:[%s0 + $0xb8] sm:$0xff]
  %v89 = vld [vmem:[%s0 + $0xc0] sm:$0xff]
  %v90 = vld [vmem:[%s0 + $0xc8] sm:$0xff]
  %v91 = vld [vmem:[%s0 + $0xd0] sm:$0xff]
  %v92 = vld [vmem:[%s0 + $0xd8] sm:$0xff]
  %v93 = vld [vmem:[%s0 + $0xe0] sm:$0xff]
  %v94 = vld [vmem:[%s0 + $0xe8] sm:$0xff]
  %v95 = vld [vmem:[%s0 + $0xf0] sm:$0xff]
  %v96 = vld [vmem:[%s0 + $0xf8] sm:$0xff]
  %v97 = vld [vmem:[%s0 + $0x100] sm:$0xff]
  %v98 = vld [vmem:[%s0 + $0x108] sm:$0xff]
  %v99 = vld [vmem:[%s0 + $0x110] sm:$0xff]
  %v100 = vld [vmem:[%s0 + $0x118] sm:$0xff]
  %v101 = vld [vmem:[%s0 + $0x120] sm:$0xff]
  %v102 = vld [vmem:[%s0 + $0x128] sm:$0xff]
  %v103 = vld [vmem:[%s0 + $0x130] sm:$0xff]
  %v104 = vpack.c.bf16 %v78, %v65
  %v105 = vpack.c.bf16 %v79, %v66
  %v106 = vpack.c.bf16 %v80, %v67
  %v107 = vpack.c.bf16 %v81, %v68
  %v108 = vpack.c.bf16 %v82, %v69
  %v109 = vpack.c.bf16 %v83, %v70
  %v110 = vpack.c.bf16 %v84, %v71
  %v111 = vpack.c.bf16 %v85, %v72
  %v112 = vpack.c.bf16 %v86, %v73
  %v113 = vpack.c.bf16 %v87, %v74
  %v114 = vpack.c.bf16 %v88, %v75
  %v115 = vpack.c.bf16 %v89, %v76
  %v116 = vpack.c.bf16 %v90, %v77
  %v117 = vpack.c.bf16 %v91, %v91
  %v118 = vpack.c.bf16 %v92, %v92
  %v119 = vpack.c.bf16 %v93, %v93
  %v120 = vpack.c.bf16 %v94, %v94
  %v121 = vpack.c.bf16 %v95, %v95
  %v122 = vpack.c.bf16 %v96, %v96
  %v123 = vpack.c.bf16 %v97, %v97
  %v124 = vpack.c.bf16 %v98, %v98
  %v125 = vpack.c.bf16 %v99, %v99
  %v126 = vpack.c.bf16 %v100, %v100
  %v127 = vpack.c.bf16 %v101, %v101
  %v128 = vpack.c.bf16 %v102, %v102
  %v129 = vpack.c.bf16 %v103, %v103
  %v130 = vld [vmem:[%s1] sm:$0xff]
  %v131 = vld [vmem:[%s1 + $0x8] sm:$0xff]
  %v132 = vld [vmem:[%s1 + $0x10] sm:$0xff]
  %v133 = vld [vmem:[%s1 + $0x18] sm:$0xff]
  %v134 = vld [vmem:[%s1 + $0x20] sm:$0xff]
  %v135 = vld [vmem:[%s1 + $0x28] sm:$0xff]
  %v136 = vld [vmem:[%s1 + $0x30] sm:$0xff]
  %v137 = vld [vmem:[%s1 + $0x38] sm:$0xff]
  %v138 = vld [vmem:[%s1 + $0x40] sm:$0xff]
  %v139 = vld [vmem:[%s1 + $0x48] sm:$0xff]
  %v140 = vld [vmem:[%s1 + $0x50] sm:$0xff]
  %v141 = vld [vmem:[%s1 + $0x58] sm:$0xff]
  %v142 = vld [vmem:[%s1 + $0x60] sm:$0xff]
  %v143 = vld [vmem:[%s1 + $0x68] sm:$0xff]
  %v144 = vld [vmem:[%s1 + $0x70] sm:$0xff]
  %v145 = vld [vmem:[%s1 + $0x78] sm:$0xff]
  %v146 = vld [vmem:[%s1 + $0x80] sm:$0xff]
  %v147 = vld [vmem:[%s1 + $0x88] sm:$0xff]
  %v148 = vld [vmem:[%s1 + $0x90] sm:$0xff]
  %v149 = vld [vmem:[%s1 + $0x98] sm:$0xff]
  %v150 = vld [vmem:[%s1 + $0xa0] sm:$0xff]
  %v151 = vld [vmem:[%s1 + $0xa8] sm:$0xff]
  %v152 = vld [vmem:[%s1 + $0xb0] sm:$0xff]
  %v153 = vld [vmem:[%s1 + $0xb8] sm:$0xff]
  %v154 = vld [vmem:[%s1 + $0xc0] sm:$0xff]
  %v155 = vld [vmem:[%s1 + $0xc8] sm:$0xff]
  %v156 = vld [vmem:[%s1 + $0xd0] sm:$0xff]
  %v157 = vld [vmem:[%s1 + $0xd8] sm:$0xff]
  %v158 = vld [vmem:[%s1 + $0xe0] sm:$0xff]
  %v159 = vld [vmem:[%s1 + $0xe8] sm:$0xff]
  %v160 = vld [vmem:[%s1 + $0xf0] sm:$0xff]
  %v161 = vld [vmem:[%s1 + $0xf8] sm:$0xff]
  %v162 = vld [vmem:[%s1 + $0x100] sm:$0xff]
  %v163 = vld [vmem:[%s1 + $0x108] sm:$0xff]
  %v164 = vld [vmem:[%s1 + $0x110] sm:$0xff]
  %v165 = vld [vmem:[%s1 + $0x118] sm:$0xff]
  %v166 = vld [vmem:[%s1 + $0x120] sm:$0xff]
  %v167 = vld [vmem:[%s1 + $0x128] sm:$0xff]
  %v168 = vld [vmem:[%s1 + $0x130] sm:$0xff]
  %v169 = vld [vmem:[%s1 + $0x138] sm:$0xff]
  %v170 = vld [vmem:[%s1 + $0x140] sm:$0xff]
  %v171 = vld [vmem:[%s1 + $0x148] sm:$0xff]
  %v172 = vld [vmem:[%s1 + $0x150] sm:$0xff]
  %v173 = vld [vmem:[%s1 + $0x158] sm:$0xff]
  %v174 = vld [vmem:[%s1 + $0x160] sm:$0xff]
  %v175 = vld [vmem:[%s1 + $0x168] sm:$0xff]
  %v176 = vld [vmem:[%s1 + $0x170] sm:$0xff]
  %v177 = vld [vmem:[%s1 + $0x178] sm:$0xff]
  %v178 = vld [vmem:[%s1 + $0x180] sm:$0xff]
  %v179 = vld [vmem:[%s1 + $0x188] sm:$0xff]
  %v180 = vld [vmem:[%s1 + $0x190] sm:$0xff]
  %v181 = vld [vmem:[%s1 + $0x198] sm:$0xff]
  %v182 = vld [vmem:[%s1 + $0x1a0] sm:$0xff]
  %v183 = vld [vmem:[%s1 + $0x1a8] sm:$0xff]
  %v184 = vld [vmem:[%s1 + $0x1b0] sm:$0xff]
  %v185 = vld [vmem:[%s1 + $0x1b8] sm:$0xff]
  %v186 = vld [vmem:[%s1 + $0x1c0] sm:$0xff]
  %v187 = vld [vmem:[%s1 + $0x1c8] sm:$0xff]
  %v188 = vld [vmem:[%s1 + $0x1d0] sm:$0xff]
  %v189 = vld [vmem:[%s1 + $0x1d8] sm:$0xff]
  %v190 = vld [vmem:[%s1 + $0x1e0] sm:$0xff]
  %v191 = vld [vmem:[%s1 + $0x1e8] sm:$0xff]
  %v192 = vld [vmem:[%s1 + $0x1f0] sm:$0xff]
  %v193 = vld [vmem:[%s1 + $0x1f8] sm:$0xff]
  %v194 = vld [vmem:[%s1 + $0x200] sm:$0xff]
  %v195 = vld [vmem:[%s1 + $0x208] sm:$0xff]
  %v196 = vld [vmem:[%s1 + $0x210] sm:$0xff]
  %v197 = vld [vmem:[%s1 + $0x218] sm:$0xff]
  %v198 = vld [vmem:[%s1 + $0x220] sm:$0xff]
  %v199 = vld [vmem:[%s1 + $0x228] sm:$0xff]
  %v200 = vld [vmem:[%s1 + $0x230] sm:$0xff]
  %v201 = vld [vmem:[%s1 + $0x238] sm:$0xff]
  %v202 = vld [vmem:[%s1 + $0x240] sm:$0xff]
  %v203 = vld [vmem:[%s1 + $0x248] sm:$0xff]
  %v204 = vld [vmem:[%s1 + $0x250] sm:$0xff]
  %v205 = vld [vmem:[%s1 + $0x258] sm:$0xff]
  %v206 = vld [vmem:[%s1 + $0x260] sm:$0xff]
  %v207 = vld [vmem:[%s1 + $0x268] sm:$0xff]
  %v208 = vld [vmem:[%s1 + $0x270] sm:$0xff]
  %v209 = vld [vmem:[%s1 + $0x278] sm:$0xff]
  %v210 = vld [vmem:[%s1 + $0x280] sm:$0xff]
  %v211 = vld [vmem:[%s1 + $0x288] sm:$0xff]
  %v212 = vld [vmem:[%s1 + $0x290] sm:$0xff]
  %v213 = vld [vmem:[%s1 + $0x298] sm:$0xff]
  %v214 = vld [vmem:[%s1 + $0x2a0] sm:$0xff]
  %v215 = vld [vmem:[%s1 + $0x2a8] sm:$0xff]
  %v216 = vld [vmem:[%s1 + $0x2b0] sm:$0xff]
  %v217 = vld [vmem:[%s1 + $0x2b8] sm:$0xff]
  %v218 = vld [vmem:[%s1 + $0x2c0] sm:$0xff]
  %v219 = vld [vmem:[%s1 + $0x2c8] sm:$0xff]
  %v220 = vld [vmem:[%s1 + $0x2d0] sm:$0xff]
  %v221 = vld [vmem:[%s1 + $0x2d8] sm:$0xff]
  %v222 = vld [vmem:[%s1 + $0x2e0] sm:$0xff]
  %v223 = vld [vmem:[%s1 + $0x2e8] sm:$0xff]
  %v224 = vld [vmem:[%s1 + $0x2f0] sm:$0xff]
  %v225 = vld [vmem:[%s1 + $0x2f8] sm:$0xff]
  %v226 = vld [vmem:[%s1 + $0x300] sm:$0xff]
  %v227 = vld [vmem:[%s1 + $0x308] sm:$0xff]
  %v228 = vld [vmem:[%s1 + $0x310] sm:$0xff]
  %v229 = vld [vmem:[%s1 + $0x318] sm:$0xff]
  %v230 = vld [vmem:[%s1 + $0x320] sm:$0xff]
  %v231 = vld [vmem:[%s1 + $0x328] sm:$0xff]
  %v232 = vld [vmem:[%s1 + $0x330] sm:$0xff]
  %v233 = vld [vmem:[%s1 + $0x338] sm:$0xff]
  %v234 = vld [vmem:[%s1 + $0x340] sm:$0xff]
  %v235 = vld [vmem:[%s1 + $0x348] sm:$0xff]
  %v236 = vld [vmem:[%s1 + $0x350] sm:$0xff]
  %v237 = vld [vmem:[%s1 + $0x358] sm:$0xff]
  %v238 = vld [vmem:[%s1 + $0x360] sm:$0xff]
  %v239 = vld [vmem:[%s1 + $0x368] sm:$0xff]
  %v240 = vld [vmem:[%s1 + $0x370] sm:$0xff]
  %v241 = vld [vmem:[%s1 + $0x378] sm:$0xff]
  %v242 = vld [vmem:[%s1 + $0x380] sm:$0xff]
  %v243 = vld [vmem:[%s1 + $0x388] sm:$0xff]
  %v244 = vld [vmem:[%s1 + $0x390] sm:$0xff]
  %v245 = vld [vmem:[%s1 + $0x398] sm:$0xff]
  %v246 = vld [vmem:[%s1 + $0x3a0] sm:$0xff]
  %v247 = vld [vmem:[%s1 + $0x3a8] sm:$0xff]
  %v248 = vld [vmem:[%s1 + $0x3b0] sm:$0xff]
  %v249 = vld [vmem:[%s1 + $0x3b8] sm:$0xff]
  %v250 = vld [vmem:[%s1 + $0x3c0] sm:$0xff]
  %v251 = vld [vmem:[%s1 + $0x3c8] sm:$0xff]
  %v252 = vld [vmem:[%s1 + $0x3d0] sm:$0xff]
  %v253 = vld [vmem:[%s1 + $0x3d8] sm:$0xff]
  %v254 = vld [vmem:[%s1 + $0x3e0] sm:$0xff]
  %v255 = vld [vmem:[%s1 + $0x3e8] sm:$0xff]
  %v256 = vld [vmem:[%s1 + $0x3f0] sm:$0xff]
  %v257 = vld [vmem:[%s1 + $0x3f8] sm:$0xff]
  %v258 = vld [vmem:[%s1 + $0x400] sm:$0xff]
  %v259 = vld [vmem:[%s1 + $0x408] sm:$0xff]
  %v260 = vld [vmem:[%s1 + $0x410] sm:$0xff]
  %v261 = vld [vmem:[%s1 + $0x418] sm:$0xff]
  %v262 = vld [vmem:[%s1 + $0x420] sm:$0xff]
  %v263 = vld [vmem:[%s1 + $0x428] sm:$0xff]
  %v264 = vld [vmem:[%s1 + $0x430] sm:$0xff]
  %v265 = vld [vmem:[%s1 + $0x438] sm:$0xff]
  %v266 = vld [vmem:[%s1 + $0x440] sm:$0xff]
  %v267 = vld [vmem:[%s1 + $0x448] sm:$0xff]
  %v268 = vld [vmem:[%s1 + $0x450] sm:$0xff]
  %v269 = vld [vmem:[%s1 + $0x458] sm:$0xff]
  %v270 = vld [vmem:[%s1 + $0x460] sm:$0xff]
  %v271 = vld [vmem:[%s1 + $0x468] sm:$0xff]
  %v272 = vld [vmem:[%s1 + $0x470] sm:$0xff]
  %v273 = vld [vmem:[%s1 + $0x478] sm:$0xff]
  %v274 = vld [vmem:[%s1 + $0x480] sm:$0xff]
  %v275 = vld [vmem:[%s1 + $0x488] sm:$0xff]
  %v276 = vld [vmem:[%s1 + $0x490] sm:$0xff]
  %v277 = vld [vmem:[%s1 + $0x498] sm:$0xff]
  %v278 = vld [vmem:[%s1 + $0x4a0] sm:$0xff]
  %v279 = vld [vmem:[%s1 + $0x4a8] sm:$0xff]
  %v280 = vld [vmem:[%s1 + $0x4b0] sm:$0xff]
  %v281 = vld [vmem:[%s1 + $0x4b8] sm:$0xff]
  %v282 = vld [vmem:[%s1 + $0x4c0] sm:$0xff]
  %v283 = vld [vmem:[%s1 + $0x4c8] sm:$0xff]
  %v284 = vld [vmem:[%s1 + $0x4d0] sm:$0xff]
  %v285 = vld [vmem:[%s1 + $0x4d8] sm:$0xff]
  %v286 = vld [vmem:[%s1 + $0x4e0] sm:$0xff]
  %v287 = vld [vmem:[%s1 + $0x4e8] sm:$0xff]
  %v288 = vld [vmem:[%s1 + $0x4f0] sm:$0xff]
  %v289 = vld [vmem:[%s1 + $0x4f8] sm:$0xff]
  %v290 = vld [vmem:[%s1 + $0x500] sm:$0xff]
  %v291 = vld [vmem:[%s1 + $0x508] sm:$0xff]
  %v292 = vld [vmem:[%s1 + $0x510] sm:$0xff]
  %v293 = vld [vmem:[%s1 + $0x518] sm:$0xff]
  %v294 = vld [vmem:[%s1 + $0x520] sm:$0xff]
  %v295 = vld [vmem:[%s1 + $0x528] sm:$0xff]
  %v296 = vld [vmem:[%s1 + $0x530] sm:$0xff]
  %v297 = vld [vmem:[%s1 + $0x538] sm:$0xff]
  %v298 = vld [vmem:[%s1 + $0x540] sm:$0xff]
  %v299 = vld [vmem:[%s1 + $0x548] sm:$0xff]
  %v300 = vld [vmem:[%s1 + $0x550] sm:$0xff]
  %v301 = vld [vmem:[%s1 + $0x558] sm:$0xff]
  %v302 = vld [vmem:[%s1 + $0x560] sm:$0xff]
  %v303 = vld [vmem:[%s1 + $0x568] sm:$0xff]
  %v304 = vld [vmem:[%s1 + $0x570] sm:$0xff]
  %v305 = vld [vmem:[%s1 + $0x578] sm:$0xff]
  %v306 = vld [vmem:[%s1 + $0x580] sm:$0xff]
  %v307 = vld [vmem:[%s1 + $0x588] sm:$0xff]
  %v308 = vld [vmem:[%s1 + $0x590] sm:$0xff]
  %v309 = vld [vmem:[%s1 + $0x598] sm:$0xff]
  %v310 = vld [vmem:[%s1 + $0x5a0] sm:$0xff]
  %v311 = vld [vmem:[%s1 + $0x5a8] sm:$0xff]
  %v312 = vld [vmem:[%s1 + $0x5b0] sm:$0xff]
  %v313 = vld [vmem:[%s1 + $0x5b8] sm:$0xff]
  %v314 = vld [vmem:[%s1 + $0x5c0] sm:$0xff]
  %v315 = vld [vmem:[%s1 + $0x5c8] sm:$0xff]
  %v316 = vld [vmem:[%s1 + $0x5d0] sm:$0xff]
  %v317 = vld [vmem:[%s1 + $0x5d8] sm:$0xff]
  %v318 = vld [vmem:[%s1 + $0x5e0] sm:$0xff]
  %v319 = vld [vmem:[%s1 + $0x5e8] sm:$0xff]
  %v320 = vld [vmem:[%s1 + $0x5f0] sm:$0xff]
  %v321 = vld [vmem:[%s1 + $0x5f8] sm:$0xff]
  %v322 = vld [vmem:[%s1 + $0x600] sm:$0xff]
  %v323 = vld [vmem:[%s1 + $0x608] sm:$0xff]
  %v324 = vld [vmem:[%s1 + $0x610] sm:$0xff]
  %v325 = vld [vmem:[%s1 + $0x618] sm:$0xff]
  %v326 = vld [vmem:[%s1 + $0x620] sm:$0xff]
  %v327 = vld [vmem:[%s1 + $0x628] sm:$0xff]
  %v328 = vld [vmem:[%s1 + $0x630] sm:$0xff]
  %v329 = vld [vmem:[%s1 + $0x638] sm:$0xff]
  %v330 = vld [vmem:[%s2] sm:$0x3]
  %v332 = vlaneseq
  %v333 = vshrl.u32 %v332, 7
  %v334 = vsub.s32 0, %v333
  %v335 = vrot.slane %v330, %v334
  %v336 = vlaneseq
  %v337 = vshrl.u32 %v336, 7
  %v338 = vsub.s32 1, %v337
  %v339 = vrot.slane %v330, %v338
  %v542 = vunpack.c.l.b16 %v130
  %v543 = vunpack.c.h.b16 %v130
  %v544 = vunpack.c.l.b16 %v131
  %v545 = vunpack.c.h.b16 %v131
  %v546 = vunpack.c.l.b16 %v132
  %v547 = vunpack.c.h.b16 %v132
  %v548 = vunpack.c.l.b16 %v133
  %v549 = vunpack.c.h.b16 %v133
  %v550 = vunpack.c.l.b16 %v134
  %v551 = vunpack.c.h.b16 %v134
  %v552 = vunpack.c.l.b16 %v135
  %v553 = vunpack.c.h.b16 %v135
  %v554 = vunpack.c.l.b16 %v136
  %v555 = vunpack.c.h.b16 %v136
  %v556 = vunpack.c.l.b16 %v137
  %v557 = vunpack.c.h.b16 %v137
  %v558 = vunpack.c.l.b16 %v138
  %v559 = vunpack.c.h.b16 %v138
  %v560 = vunpack.c.l.b16 %v139
  %v561 = vunpack.c.h.b16 %v139
  %v562 = vunpack.c.l.b16 %v140
  %v563 = vunpack.c.h.b16 %v140
  %v564 = vunpack.c.l.b16 %v141
  %v565 = vunpack.c.h.b16 %v141
  %v566 = vunpack.c.l.b16 %v142
  %v567 = vunpack.c.h.b16 %v142
  %v568 = vunpack.c.l.b16 %v143
  %v569 = vunpack.c.h.b16 %v143
  %v570 = vunpack.c.l.b16 %v144
  %v571 = vunpack.c.h.b16 %v144
  %v572 = vunpack.c.l.b16 %v145
  %v573 = vunpack.c.h.b16 %v145
  %v574 = vunpack.c.l.b16 %v146
  %v575 = vunpack.c.h.b16 %v146
  %v576 = vunpack.c.l.b16 %v147
  %v577 = vunpack.c.h.b16 %v147
  %v578 = vunpack.c.l.b16 %v148
  %v579 = vunpack.c.h.b16 %v148
  %v580 = vunpack.c.l.b16 %v149
  %v581 = vunpack.c.h.b16 %v149
  %v582 = vunpack.c.l.b16 %v150
  %v583 = vunpack.c.h.b16 %v150
  %v584 = vunpack.c.l.b16 %v151
  %v585 = vunpack.c.h.b16 %v151
  %v586 = vunpack.c.l.b16 %v152
  %v587 = vunpack.c.h.b16 %v152
  %v588 = vunpack.c.l.b16 %v153
  %v589 = vunpack.c.h.b16 %v153
  %v590 = vunpack.c.l.b16 %v154
  %v591 = vunpack.c.h.b16 %v154
  %v592 = vunpack.c.l.b16 %v155
  %v593 = vunpack.c.h.b16 %v155
  %v594 = vunpack.c.l.b16 %v156
  %v595 = vunpack.c.h.b16 %v156
  %v596 = vunpack.c.l.b16 %v157
  %v597 = vunpack.c.h.b16 %v157
  %v598 = vunpack.c.l.b16 %v158
  %v599 = vunpack.c.h.b16 %v158
  %v600 = vunpack.c.l.b16 %v159
  %v601 = vunpack.c.h.b16 %v159
  %v602 = vunpack.c.l.b16 %v160
  %v603 = vunpack.c.h.b16 %v160
  %v604 = vunpack.c.l.b16 %v161
  %v605 = vunpack.c.h.b16 %v161
  %v606 = vunpack.c.l.b16 %v162
  %v607 = vunpack.c.h.b16 %v162
  %v608 = vunpack.c.l.b16 %v163
  %v609 = vunpack.c.h.b16 %v163
  %v610 = vunpack.c.l.b16 %v164
  %v611 = vunpack.c.h.b16 %v164
  %v612 = vunpack.c.l.b16 %v165
  %v613 = vunpack.c.h.b16 %v165
  %v614 = vunpack.c.l.b16 %v166
  %v615 = vunpack.c.h.b16 %v166
  %v616 = vunpack.c.l.b16 %v167
  %v617 = vunpack.c.h.b16 %v167
  %v618 = vunpack.c.l.b16 %v168
  %v619 = vunpack.c.h.b16 %v168
  %v620 = vunpack.c.l.b16 %v169
  %v621 = vunpack.c.h.b16 %v169
  %v622 = vunpack.c.l.b16 %v170
  %v623 = vunpack.c.h.b16 %v170
  %v624 = vunpack.c.l.b16 %v171
  %v625 = vunpack.c.h.b16 %v171
  %v626 = vunpack.c.l.b16 %v172
  %v627 = vunpack.c.h.b16 %v172
  %v628 = vunpack.c.l.b16 %v173
  %v629 = vunpack.c.h.b16 %v173
  %v630 = vunpack.c.l.b16 %v174
  %v631 = vunpack.c.h.b16 %v174
  %v632 = vunpack.c.l.b16 %v175
  %v633 = vunpack.c.h.b16 %v175
  %v634 = vunpack.c.l.b16 %v176
  %v635 = vunpack.c.h.b16 %v176
  %v636 = vunpack.c.l.b16 %v177
  %v637 = vunpack.c.h.b16 %v177
  %v638 = vunpack.c.l.b16 %v178
  %v639 = vunpack.c.h.b16 %v178
  %v640 = vunpack.c.l.b16 %v179
  %v641 = vunpack.c.h.b16 %v179
  %v642 = vunpack.c.l.b16 %v180
  %v643 = vunpack.c.h.b16 %v180
  %v644 = vunpack.c.l.b16 %v181
  %v645 = vunpack.c.h.b16 %v181
  %v646 = vunpack.c.l.b16 %v182
  %v647 = vunpack.c.h.b16 %v182
  %v648 = vunpack.c.l.b16 %v183
  %v649 = vunpack.c.h.b16 %v183
  %v650 = vunpack.c.l.b16 %v184
  %v651 = vunpack.c.h.b16 %v184
  %v652 = vunpack.c.l.b16 %v185
  %v653 = vunpack.c.h.b16 %v185
  %v654 = vunpack.c.l.b16 %v186
  %v655 = vunpack.c.h.b16 %v186
  %v656 = vunpack.c.l.b16 %v187
  %v657 = vunpack.c.h.b16 %v187
  %v658 = vunpack.c.l.b16 %v188
  %v659 = vunpack.c.h.b16 %v188
  %v660 = vunpack.c.l.b16 %v189
  %v661 = vunpack.c.h.b16 %v189
  %v662 = vunpack.c.l.b16 %v190
  %v663 = vunpack.c.h.b16 %v190
  %v664 = vunpack.c.l.b16 %v191
  %v665 = vunpack.c.h.b16 %v191
  %v666 = vunpack.c.l.b16 %v192
  %v667 = vunpack.c.h.b16 %v192
  %v668 = vunpack.c.l.b16 %v193
  %v669 = vunpack.c.h.b16 %v193
  %v670 = vunpack.c.l.b16 %v194
  %v671 = vunpack.c.h.b16 %v194
  %v672 = vunpack.c.l.b16 %v195
  %v673 = vunpack.c.h.b16 %v195
  %v674 = vunpack.c.l.b16 %v196
  %v675 = vunpack.c.h.b16 %v196
  %v676 = vunpack.c.l.b16 %v197
  %v677 = vunpack.c.h.b16 %v197
  %v678 = vunpack.c.l.b16 %v198
  %v679 = vunpack.c.h.b16 %v198
  %v680 = vunpack.c.l.b16 %v199
  %v681 = vunpack.c.h.b16 %v199
  %v682 = vunpack.c.l.b16 %v200
  %v683 = vunpack.c.h.b16 %v200
  %v684 = vunpack.c.l.b16 %v201
  %v685 = vunpack.c.h.b16 %v201
  %v686 = vunpack.c.l.b16 %v202
  %v687 = vunpack.c.h.b16 %v202
  %v688 = vunpack.c.l.b16 %v203
  %v689 = vunpack.c.h.b16 %v203
  %v690 = vunpack.c.l.b16 %v204
  %v691 = vunpack.c.h.b16 %v204
  %v692 = vunpack.c.l.b16 %v205
  %v693 = vunpack.c.h.b16 %v205
  %v694 = vunpack.c.l.b16 %v206
  %v695 = vunpack.c.h.b16 %v206
  %v696 = vunpack.c.l.b16 %v207
  %v697 = vunpack.c.h.b16 %v207
  %v698 = vunpack.c.l.b16 %v208
  %v699 = vunpack.c.h.b16 %v208
  %v700 = vunpack.c.l.b16 %v209
  %v701 = vunpack.c.h.b16 %v209
  %v702 = vunpack.c.l.b16 %v210
  %v703 = vunpack.c.h.b16 %v210
  %v704 = vunpack.c.l.b16 %v211
  %v705 = vunpack.c.h.b16 %v211
  %v706 = vunpack.c.l.b16 %v212
  %v707 = vunpack.c.h.b16 %v212
  %v708 = vunpack.c.l.b16 %v213
  %v709 = vunpack.c.h.b16 %v213
  %v710 = vunpack.c.l.b16 %v214
  %v711 = vunpack.c.h.b16 %v214
  %v712 = vunpack.c.l.b16 %v215
  %v713 = vunpack.c.h.b16 %v215
  %v714 = vunpack.c.l.b16 %v216
  %v715 = vunpack.c.h.b16 %v216
  %v716 = vunpack.c.l.b16 %v217
  %v717 = vunpack.c.h.b16 %v217
  %v718 = vunpack.c.l.b16 %v218
  %v719 = vunpack.c.h.b16 %v218
  %v720 = vunpack.c.l.b16 %v219
  %v721 = vunpack.c.h.b16 %v219
  %v722 = vunpack.c.l.b16 %v220
  %v723 = vunpack.c.h.b16 %v220
  %v724 = vunpack.c.l.b16 %v221
  %v725 = vunpack.c.h.b16 %v221
  %v726 = vunpack.c.l.b16 %v222
  %v727 = vunpack.c.h.b16 %v222
  %v728 = vunpack.c.l.b16 %v223
  %v729 = vunpack.c.h.b16 %v223
  %v730 = vunpack.c.l.b16 %v224
  %v731 = vunpack.c.h.b16 %v224
  %v732 = vunpack.c.l.b16 %v225
  %v733 = vunpack.c.h.b16 %v225
  %v734 = vunpack.c.l.b16 %v226
  %v735 = vunpack.c.h.b16 %v226
  %v736 = vunpack.c.l.b16 %v227
  %v737 = vunpack.c.h.b16 %v227
  %v738 = vunpack.c.l.b16 %v228
  %v739 = vunpack.c.h.b16 %v228
  %v740 = vunpack.c.l.b16 %v229
  %v741 = vunpack.c.h.b16 %v229
  %v742 = vunpack.c.l.b16 %v230
  %v743 = vunpack.c.h.b16 %v230
  %v744 = vunpack.c.l.b16 %v231
  %v745 = vunpack.c.h.b16 %v231
  %v746 = vunpack.c.l.b16 %v232
  %v747 = vunpack.c.h.b16 %v232
  %v748 = vunpack.c.l.b16 %v233
  %v749 = vunpack.c.h.b16 %v233
  %v750 = vunpack.c.l.b16 %v234
  %v751 = vunpack.c.h.b16 %v234
  %v752 = vunpack.c.l.b16 %v235
  %v753 = vunpack.c.h.b16 %v235
  %v754 = vunpack.c.l.b16 %v236
  %v755 = vunpack.c.h.b16 %v236
  %v756 = vunpack.c.l.b16 %v237
  %v757 = vunpack.c.h.b16 %v237
  %v758 = vunpack.c.l.b16 %v238
  %v759 = vunpack.c.h.b16 %v238
  %v760 = vunpack.c.l.b16 %v239
  %v761 = vunpack.c.h.b16 %v239
  %v762 = vunpack.c.l.b16 %v240
  %v763 = vunpack.c.h.b16 %v240
  %v764 = vunpack.c.l.b16 %v241
  %v765 = vunpack.c.h.b16 %v241
  %v766 = vunpack.c.l.b16 %v242
  %v767 = vunpack.c.h.b16 %v242
  %v768 = vunpack.c.l.b16 %v243
  %v769 = vunpack.c.h.b16 %v243
  %v770 = vunpack.c.l.b16 %v244
  %v771 = vunpack.c.h.b16 %v244
  %v772 = vunpack.c.l.b16 %v245
  %v773 = vunpack.c.h.b16 %v245
  %v774 = vunpack.c.l.b16 %v246
  %v775 = vunpack.c.h.b16 %v246
  %v776 = vunpack.c.l.b16 %v247
  %v777 = vunpack.c.h.b16 %v247
  %v778 = vunpack.c.l.b16 %v248
  %v779 = vunpack.c.h.b16 %v248
  %v780 = vunpack.c.l.b16 %v249
  %v781 = vunpack.c.h.b16 %v249
  %v782 = vunpack.c.l.b16 %v250
  %v783 = vunpack.c.h.b16 %v250
  %v784 = vunpack.c.l.b16 %v251
  %v785 = vunpack.c.h.b16 %v251
  %v786 = vunpack.c.l.b16 %v252
  %v787 = vunpack.c.h.b16 %v252
  %v788 = vunpack.c.l.b16 %v253
  %v789 = vunpack.c.h.b16 %v253
  %v790 = vunpack.c.l.b16 %v254
  %v791 = vunpack.c.h.b16 %v254
  %v792 = vunpack.c.l.b16 %v255
  %v793 = vunpack.c.h.b16 %v255
  %v794 = vunpack.c.l.b16 %v256
  %v795 = vunpack.c.h.b16 %v256
  %v796 = vunpack.c.l.b16 %v257
  %v797 = vunpack.c.h.b16 %v257
  %v798 = vunpack.c.l.b16 %v258
  %v799 = vunpack.c.h.b16 %v258
  %v800 = vunpack.c.l.b16 %v259
  %v801 = vunpack.c.h.b16 %v259
  %v802 = vunpack.c.l.b16 %v260
  %v803 = vunpack.c.h.b16 %v260
  %v804 = vunpack.c.l.b16 %v261
  %v805 = vunpack.c.h.b16 %v261
  %v806 = vunpack.c.l.b16 %v262
  %v807 = vunpack.c.h.b16 %v262
  %v808 = vunpack.c.l.b16 %v263
  %v809 = vunpack.c.h.b16 %v263
  %v810 = vunpack.c.l.b16 %v264
  %v811 = vunpack.c.h.b16 %v264
  %v812 = vunpack.c.l.b16 %v265
  %v813 = vunpack.c.h.b16 %v265
  %v814 = vunpack.c.l.b16 %v266
  %v815 = vunpack.c.h.b16 %v266
  %v816 = vunpack.c.l.b16 %v267
  %v817 = vunpack.c.h.b16 %v267
  %v818 = vunpack.c.l.b16 %v268
  %v819 = vunpack.c.h.b16 %v268
  %v820 = vunpack.c.l.b16 %v269
  %v821 = vunpack.c.h.b16 %v269
  %v822 = vunpack.c.l.b16 %v270
  %v823 = vunpack.c.h.b16 %v270
  %v824 = vunpack.c.l.b16 %v271
  %v825 = vunpack.c.h.b16 %v271
  %v826 = vunpack.c.l.b16 %v272
  %v827 = vunpack.c.h.b16 %v272
  %v828 = vunpack.c.l.b16 %v273
  %v829 = vunpack.c.h.b16 %v273
  %v830 = vunpack.c.l.b16 %v274
  %v831 = vunpack.c.h.b16 %v274
  %v832 = vunpack.c.l.b16 %v275
  %v833 = vunpack.c.h.b16 %v275
  %v834 = vunpack.c.l.b16 %v276
  %v835 = vunpack.c.h.b16 %v276
  %v836 = vunpack.c.l.b16 %v277
  %v837 = vunpack.c.h.b16 %v277
  %v838 = vunpack.c.l.b16 %v278
  %v839 = vunpack.c.h.b16 %v278
  %v840 = vunpack.c.l.b16 %v279
  %v841 = vunpack.c.h.b16 %v279
  %v842 = vunpack.c.l.b16 %v280
  %v843 = vunpack.c.h.b16 %v280
  %v844 = vunpack.c.l.b16 %v281
  %v845 = vunpack.c.h.b16 %v281
  %v846 = vunpack.c.l.b16 %v282
  %v847 = vunpack.c.h.b16 %v282
  %v848 = vunpack.c.l.b16 %v283
  %v849 = vunpack.c.h.b16 %v283
  %v850 = vunpack.c.l.b16 %v284
  %v851 = vunpack.c.h.b16 %v284
  %v852 = vunpack.c.l.b16 %v285
  %v853 = vunpack.c.h.b16 %v285
  %v854 = vunpack.c.l.b16 %v286
  %v855 = vunpack.c.h.b16 %v286
  %v856 = vunpack.c.l.b16 %v287
  %v857 = vunpack.c.h.b16 %v287
  %v858 = vunpack.c.l.b16 %v288
  %v859 = vunpack.c.h.b16 %v288
  %v860 = vunpack.c.l.b16 %v289
  %v861 = vunpack.c.h.b16 %v289
  %v862 = vunpack.c.l.b16 %v290
  %v863 = vunpack.c.h.b16 %v290
  %v864 = vunpack.c.l.b16 %v291
  %v865 = vunpack.c.h.b16 %v291
  %v866 = vunpack.c.l.b16 %v292
  %v867 = vunpack.c.h.b16 %v292
  %v868 = vunpack.c.l.b16 %v293
  %v869 = vunpack.c.h.b16 %v293
  %v870 = vunpack.c.l.b16 %v294
  %v871 = vunpack.c.h.b16 %v294
  %v872 = vunpack.c.l.b16 %v295
  %v873 = vunpack.c.h.b16 %v295
  %v874 = vunpack.c.l.b16 %v296
  %v875 = vunpack.c.h.b16 %v296
  %v876 = vunpack.c.l.b16 %v297
  %v877 = vunpack.c.h.b16 %v297
  %v878 = vunpack.c.l.b16 %v298
  %v879 = vunpack.c.h.b16 %v298
  %v880 = vunpack.c.l.b16 %v299
  %v881 = vunpack.c.h.b16 %v299
  %v882 = vunpack.c.l.b16 %v300
  %v883 = vunpack.c.h.b16 %v300
  %v884 = vunpack.c.l.b16 %v301
  %v885 = vunpack.c.h.b16 %v301
  %v886 = vunpack.c.l.b16 %v302
  %v887 = vunpack.c.h.b16 %v302
  %v888 = vunpack.c.l.b16 %v303
  %v889 = vunpack.c.h.b16 %v303
  %v890 = vunpack.c.l.b16 %v304
  %v891 = vunpack.c.h.b16 %v304
  %v892 = vunpack.c.l.b16 %v305
  %v893 = vunpack.c.h.b16 %v305
  %v894 = vunpack.c.l.b16 %v306
  %v895 = vunpack.c.h.b16 %v306
  %v896 = vunpack.c.l.b16 %v307
  %v897 = vunpack.c.h.b16 %v307
  %v898 = vunpack.c.l.b16 %v308
  %v899 = vunpack.c.h.b16 %v308
  %v900 = vunpack.c.l.b16 %v309
  %v901 = vunpack.c.h.b16 %v309
  %v902 = vunpack.c.l.b16 %v310
  %v903 = vunpack.c.h.b16 %v310
  %v904 = vunpack.c.l.b16 %v311
  %v905 = vunpack.c.h.b16 %v311
  %v906 = vunpack.c.l.b16 %v312
  %v907 = vunpack.c.h.b16 %v312
  %v908 = vunpack.c.l.b16 %v313
  %v909 = vunpack.c.h.b16 %v313
  %v910 = vunpack.c.l.b16 %v314
  %v911 = vunpack.c.h.b16 %v314
  %v912 = vunpack.c.l.b16 %v315
  %v913 = vunpack.c.h.b16 %v315
  %v914 = vunpack.c.l.b16 %v316
  %v915 = vunpack.c.h.b16 %v316
  %v916 = vunpack.c.l.b16 %v317
  %v917 = vunpack.c.h.b16 %v317
  %v918 = vunpack.c.l.b16 %v318
  %v919 = vunpack.c.h.b16 %v318
  %v920 = vunpack.c.l.b16 %v319
  %v921 = vunpack.c.h.b16 %v319
  %v922 = vunpack.c.l.b16 %v320
  %v923 = vunpack.c.h.b16 %v320
  %v924 = vunpack.c.l.b16 %v321
  %v925 = vunpack.c.h.b16 %v321
  %v926 = vunpack.c.l.b16 %v322
  %v927 = vunpack.c.h.b16 %v322
  %v928 = vunpack.c.l.b16 %v323
  %v929 = vunpack.c.h.b16 %v323
  %v930 = vunpack.c.l.b16 %v324
  %v931 = vunpack.c.h.b16 %v324
  %v932 = vunpack.c.l.b16 %v325
  %v933 = vunpack.c.h.b16 %v325
  %v934 = vunpack.c.l.b16 %v326
  %v935 = vunpack.c.h.b16 %v326
  %v936 = vunpack.c.l.b16 %v327
  %v937 = vunpack.c.h.b16 %v327
  %v938 = vunpack.c.l.b16 %v328
  %v939 = vunpack.c.h.b16 %v328
  %v940 = vunpack.c.l.b16 %v329
  %v941 = vunpack.c.h.b16 %v329
  %v942 = vpack.c.b16 %v544, %v542
  %v943 = vpack.c.b16 %v545, %v543
  %v944 = vpack.c.b16 %v548, %v546
  %v945 = vpack.c.b16 %v549, %v547
  %v946 = vpack.c.b16 %v552, %v550
  %v947 = vpack.c.b16 %v553, %v551
  %v948 = vpack.c.b16 %v556, %v554
  %v949 = vpack.c.b16 %v557, %v555
  %v950 = vpack.c.b16 %v560, %v558
  %v951 = vpack.c.b16 %v561, %v559
  %v952 = vpack.c.b16 %v564, %v562
  %v953 = vpack.c.b16 %v565, %v563
  %v954 = vpack.c.b16 %v568, %v566
  %v955 = vpack.c.b16 %v569, %v567
  %v956 = vpack.c.b16 %v572, %v570
  %v957 = vpack.c.b16 %v573, %v571
  %v958 = vpack.c.b16 %v576, %v574
  %v959 = vpack.c.b16 %v577, %v575
  %v960 = vpack.c.b16 %v580, %v578
  %v961 = vpack.c.b16 %v581, %v579
  %v962 = vpack.c.b16 %v584, %v582
  %v963 = vpack.c.b16 %v585, %v583
  %v964 = vpack.c.b16 %v588, %v586
  %v965 = vpack.c.b16 %v589, %v587
  %v966 = vpack.c.b16 %v592, %v590
  %v967 = vpack.c.b16 %v593, %v591
  %v968 = vpack.c.b16 %v596, %v594
  %v969 = vpack.c.b16 %v597, %v595
  %v970 = vpack.c.b16 %v600, %v598
  %v971 = vpack.c.b16 %v601, %v599
  %v972 = vpack.c.b16 %v604, %v602
  %v973 = vpack.c.b16 %v605, %v603
  %v974 = vpack.c.b16 %v608, %v606
  %v975 = vpack.c.b16 %v609, %v607
  %v976 = vpack.c.b16 %v612, %v610
  %v977 = vpack.c.b16 %v613, %v611
  %v978 = vpack.c.b16 %v616, %v614
  %v979 = vpack.c.b16 %v617, %v615
  %v980 = vpack.c.b16 %v620, %v618
  %v981 = vpack.c.b16 %v621, %v619
  %v982 = vpack.c.b16 %v624, %v622
  %v983 = vpack.c.b16 %v625, %v623
  %v984 = vpack.c.b16 %v628, %v626
  %v985 = vpack.c.b16 %v629, %v627
  %v986 = vpack.c.b16 %v632, %v630
  %v987 = vpack.c.b16 %v633, %v631
  %v988 = vpack.c.b16 %v636, %v634
  %v989 = vpack.c.b16 %v637, %v635
  %v990 = vpack.c.b16 %v640, %v638
  %v991 = vpack.c.b16 %v641, %v639
  %v992 = vpack.c.b16 %v644, %v642
  %v993 = vpack.c.b16 %v645, %v643
  %v994 = vpack.c.b16 %v648, %v646
  %v995 = vpack.c.b16 %v649, %v647
  %v996 = vpack.c.b16 %v652, %v650
  %v997 = vpack.c.b16 %v653, %v651
  %v998 = vpack.c.b16 %v656, %v654
  %v999 = vpack.c.b16 %v657, %v655
  %v1000 = vpack.c.b16 %v660, %v658
  %v1001 = vpack.c.b16 %v661, %v659
  %v1002 = vpack.c.b16 %v664, %v662
  %v1003 = vpack.c.b16 %v665, %v663
  %v1004 = vpack.c.b16 %v668, %v666
  %v1005 = vpack.c.b16 %v669, %v667
  %v1006 = vpack.c.b16 %v672, %v670
  %v1007 = vpack.c.b16 %v673, %v671
  %v1008 = vpack.c.b16 %v676, %v674
  %v1009 = vpack.c.b16 %v677, %v675
  %v1010 = vpack.c.b16 %v680, %v678
  %v1011 = vpack.c.b16 %v681, %v679
  %v1012 = vpack.c.b16 %v684, %v682
  %v1013 = vpack.c.b16 %v685, %v683
  %v1014 = vpack.c.b16 %v688, %v686
  %v1015 = vpack.c.b16 %v689, %v687
  %v1016 = vpack.c.b16 %v692, %v690
  %v1017 = vpack.c.b16 %v693, %v691
  %v1018 = vpack.c.b16 %v696, %v694
  %v1019 = vpack.c.b16 %v697, %v695
  %v1020 = vpack.c.b16 %v700, %v698
  %v1021 = vpack.c.b16 %v701, %v699
  %v1022 = vpack.c.b16 %v704, %v702
  %v1023 = vpack.c.b16 %v705, %v703
  %v1024 = vpack.c.b16 %v708, %v706
  %v1025 = vpack.c.b16 %v709, %v707
  %v1026 = vpack.c.b16 %v712, %v710
  %v1027 = vpack.c.b16 %v713, %v711
  %v1028 = vpack.c.b16 %v716, %v714
  %v1029 = vpack.c.b16 %v717, %v715
  %v1030 = vpack.c.b16 %v720, %v718
  %v1031 = vpack.c.b16 %v721, %v719
  %v1032 = vpack.c.b16 %v724, %v722
  %v1033 = vpack.c.b16 %v725, %v723
  %v1034 = vpack.c.b16 %v728, %v726
  %v1035 = vpack.c.b16 %v729, %v727
  %v1036 = vpack.c.b16 %v732, %v730
  %v1037 = vpack.c.b16 %v733, %v731
  %v1038 = vpack.c.b16 %v736, %v734
  %v1039 = vpack.c.b16 %v737, %v735
  %v1040 = vpack.c.b16 %v740, %v738
  %v1041 = vpack.c.b16 %v741, %v739
  %v1042 = vpack.c.b16 %v744, %v742
  %v1043 = vpack.c.b16 %v745, %v743
  %v1044 = vpack.c.b16 %v748, %v746
  %v1045 = vpack.c.b16 %v749, %v747
  %v1046 = vpack.c.b16 %v752, %v750
  %v1047 = vpack.c.b16 %v753, %v751
  %v1048 = vpack.c.b16 %v756, %v754
  %v1049 = vpack.c.b16 %v757, %v755
  %v1050 = vpack.c.b16 %v760, %v758
  %v1051 = vpack.c.b16 %v761, %v759
  %v1052 = vpack.c.b16 %v764, %v762
  %v1053 = vpack.c.b16 %v765, %v763
  %v1054 = vpack.c.b16 %v768, %v766
  %v1055 = vpack.c.b16 %v769, %v767
  %v1056 = vpack.c.b16 %v772, %v770
  %v1057 = vpack.c.b16 %v773, %v771
  %v1058 = vpack.c.b16 %v776, %v774
  %v1059 = vpack.c.b16 %v777, %v775
  %v1060 = vpack.c.b16 %v780, %v778
  %v1061 = vpack.c.b16 %v781, %v779
  %v1062 = vpack.c.b16 %v784, %v782
  %v1063 = vpack.c.b16 %v785, %v783
  %v1064 = vpack.c.b16 %v788, %v786
  %v1065 = vpack.c.b16 %v789, %v787
  %v1066 = vpack.c.b16 %v792, %v790
  %v1067 = vpack.c.b16 %v793, %v791
  %v1068 = vpack.c.b16 %v796, %v794
  %v1069 = vpack.c.b16 %v797, %v795
  %v1070 = vpack.c.b16 %v800, %v798
  %v1071 = vpack.c.b16 %v801, %v799
  %v1072 = vpack.c.b16 %v804, %v802
  %v1073 = vpack.c.b16 %v805, %v803
  %v1074 = vpack.c.b16 %v808, %v806
  %v1075 = vpack.c.b16 %v809, %v807
  %v1076 = vpack.c.b16 %v812, %v810
  %v1077 = vpack.c.b16 %v813, %v811
  %v1078 = vpack.c.b16 %v816, %v814
  %v1079 = vpack.c.b16 %v817, %v815
  %v1080 = vpack.c.b16 %v820, %v818
  %v1081 = vpack.c.b16 %v821, %v819
  %v1082 = vpack.c.b16 %v824, %v822
  %v1083 = vpack.c.b16 %v825, %v823
  %v1084 = vpack.c.b16 %v828, %v826
  %v1085 = vpack.c.b16 %v829, %v827
  %v1086 = vpack.c.b16 %v832, %v830
  %v1087 = vpack.c.b16 %v833, %v831
  %v1088 = vpack.c.b16 %v836, %v834
  %v1089 = vpack.c.b16 %v837, %v835
  %v1090 = vpack.c.b16 %v840, %v838
  %v1091 = vpack.c.b16 %v841, %v839
  %v1092 = vpack.c.b16 %v844, %v842
  %v1093 = vpack.c.b16 %v845, %v843
  %v1094 = vpack.c.b16 %v848, %v846
  %v1095 = vpack.c.b16 %v849, %v847
  %v1096 = vpack.c.b16 %v852, %v850
  %v1097 = vpack.c.b16 %v853, %v851
  %v1098 = vpack.c.b16 %v856, %v854
  %v1099 = vpack.c.b16 %v857, %v855
  %v1100 = vpack.c.b16 %v860, %v858
  %v1101 = vpack.c.b16 %v861, %v859
  %v1102 = vpack.c.b16 %v864, %v862
  %v1103 = vpack.c.b16 %v865, %v863
  %v1104 = vpack.c.b16 %v868, %v866
  %v1105 = vpack.c.b16 %v869, %v867
  %v1106 = vpack.c.b16 %v872, %v870
  %v1107 = vpack.c.b16 %v873, %v871
  %v1108 = vpack.c.b16 %v876, %v874
  %v1109 = vpack.c.b16 %v877, %v875
  %v1110 = vpack.c.b16 %v880, %v878
  %v1111 = vpack.c.b16 %v881, %v879
  %v1112 = vpack.c.b16 %v884, %v882
  %v1113 = vpack.c.b16 %v885, %v883
  %v1114 = vpack.c.b16 %v888, %v886
  %v1115 = vpack.c.b16 %v889, %v887
  %v1116 = vpack.c.b16 %v892, %v890
  %v1117 = vpack.c.b16 %v893, %v891
  %v1118 = vpack.c.b16 %v896, %v894
  %v1119 = vpack.c.b16 %v897, %v895
  %v1120 = vpack.c.b16 %v900, %v898
  %v1121 = vpack.c.b16 %v901, %v899
  %v1122 = vpack.c.b16 %v904, %v902
  %v1123 = vpack.c.b16 %v905, %v903
  %v1124 = vpack.c.b16 %v908, %v906
  %v1125 = vpack.c.b16 %v909, %v907
  %v1126 = vpack.c.b16 %v912, %v910
  %v1127 = vpack.c.b16 %v913, %v911
  %v1128 = vpack.c.b16 %v916, %v914
  %v1129 = vpack.c.b16 %v917, %v915
  %v1130 = vpack.c.b16 %v920, %v918
  %v1131 = vpack.c.b16 %v921, %v919
  %v1132 = vpack.c.b16 %v924, %v922
  %v1133 = vpack.c.b16 %v925, %v923
  %v1134 = vpack.c.b16 %v928, %v926
  %v1135 = vpack.c.b16 %v929, %v927
  %v1136 = vpack.c.b16 %v932, %v930
  %v1137 = vpack.c.b16 %v933, %v931
  %v1138 = vpack.c.b16 %v936, %v934
  %v1139 = vpack.c.b16 %v937, %v935
  %v1140 = vpack.c.b16 %v940, %v938
  %v1141 = vpack.c.b16 %v941, %v939
  %vm1342 = vcmask 523264
  %v1344 = vsel %vm1342, %v116, 0
  %v1347 = vsel %vm1342, %v129, 0
  %1349 = vmatprep.subr.bf16.mxu0 %v943
  %1350 = vmatpush1.bf16.msra.mxu0 %v942
  %1351 = vmatprep.subr.bf16.mxu0 %v945
  %1352 = vmatpush1.bf16.msra.mxu0 %v944
  %1353 = vmatprep.subr.bf16.mxu0 %v947
  %1354 = vmatpush1.bf16.msra.mxu0 %v946
  %1355 = vmatprep.subr.bf16.mxu0 %v949
  %1356 = vmatpush1.bf16.msra.mxu0 %v948
  %1357 = vmatprep.subr.bf16.mxu0 %v951
  %1358 = vmatpush1.bf16.msra.mxu0 %v950
  %1359 = vmatprep.subr.bf16.mxu0 %v953
  %1360 = vmatpush1.bf16.msra.mxu0 %v952
  %1361 = vmatprep.subr.bf16.mxu0 %v955
  %1362 = vmatpush1.bf16.msra.mxu0 %v954
  %1363 = vmatprep.subr.bf16.mxu0 %v957
  %1364 = vmatpush1.bf16.msra.mxu0 %v956
  %1365 = vmatprep.subr.bf16.mxu0 %v959
  %1366 = vmatpush1.bf16.msra.mxu0 %v958
  %1367 = vmatprep.subr.bf16.mxu0 %v961
  %1368 = vmatpush1.bf16.msra.mxu0 %v960
  %1369 = vmatprep.subr.bf16.mxu0 %v963
  %1370 = vmatpush1.bf16.msra.mxu0 %v962
  %1371 = vmatprep.subr.bf16.mxu0 %v965
  %1372 = vmatpush1.bf16.msra.mxu0 %v964
  %1373 = vmatprep.subr.bf16.mxu0 %v967
  %1374 = vmatpush1.bf16.msra.mxu0 %v966
  %1375 = vmatprep.subr.bf16.mxu0 %v969
  %1376 = vmatpush1.bf16.msra.mxu0 %v968
  %1377 = vmatprep.subr.bf16.mxu0 %v971
  %1378 = vmatpush1.bf16.msra.mxu0 %v970
  %1379 = vmatprep.subr.bf16.mxu0 %v973
  %1380 = vmatpush1.bf16.msra.mxu0 %v972
  %1381 = vmatprep.mubr.bf16.mxu0 %v105
  %1382 = vmatmul.mubr.bf16.gmra.mrb[0].mxu0 %v104
  %v1383 = vpop.f32.mrb[0].mxu0
  %v1384 = vadd.f32 %v335, %v1383
  %v1385 = vpop.f32.mrb[0].mxu0
  %v1386 = vadd.f32 %v339, %v1385
  %v1387 = vpop.f32.mrb[0].mxu0
  %v1388 = vadd.f32 %v335, %v1387
  %v1389 = vpop.f32.mrb[0].mxu0
  %v1390 = vadd.f32 %v339, %v1389
  %1391 = vmatprep.mubr.bf16.mxu0 %v118
  %1392 = vmatmul.mubr.bf16.gmra.mrb[0].mxu0 %v117
  %v1393 = vpop.f32.mrb[0].mxu0
  %v1394 = vadd.f32 %v335, %v1393
  %v1395 = vpop.f32.mrb[0].mxu0
  %v1396 = vadd.f32 %v339, %v1395
  %v1397 = vpop.f32.mrb[0].mxu0
  %v1398 = vpop.f32.mrb[0].mxu0
  %1399 = vdwg.mxu0
  %1400 = vmatprep.subr.bf16.mxu0 %v975
  %1401 = vmatpush1.bf16.msra.mxu0 %v974
  %1402 = vmatprep.subr.bf16.mxu0 %v977
  %1403 = vmatpush1.bf16.msra.mxu0 %v976
  %1404 = vmatprep.subr.bf16.mxu0 %v979
  %1405 = vmatpush1.bf16.msra.mxu0 %v978
  %1406 = vmatprep.subr.bf16.mxu0 %v981
  %1407 = vmatpush1.bf16.msra.mxu0 %v980
  %1408 = vmatprep.subr.bf16.mxu0 %v983
  %1409 = vmatpush1.bf16.msra.mxu0 %v982
  %1410 = vmatprep.subr.bf16.mxu0 %v985
  %1411 = vmatpush1.bf16.msra.mxu0 %v984
  %1412 = vmatprep.subr.bf16.mxu0 %v987
  %1413 = vmatpush1.bf16.msra.mxu0 %v986
  %1414 = vmatprep.subr.bf16.mxu0 %v989
  %1415 = vmatpush1.bf16.msra.mxu0 %v988
  %1416 = vmatprep.subr.bf16.mxu0 %v991
  %1417 = vmatpush1.bf16.msra.mxu0 %v990
  %1418 = vmatprep.subr.bf16.mxu0 %v993
  %1419 = vmatpush1.bf16.msra.mxu0 %v992
  %1420 = vmatprep.subr.bf16.mxu0 %v995
  %1421 = vmatpush1.bf16.msra.mxu0 %v994
  %1422 = vmatprep.subr.bf16.mxu0 %v997
  %1423 = vmatpush1.bf16.msra.mxu0 %v996
  %1424 = vmatprep.subr.bf16.mxu0 %v999
  %1425 = vmatpush1.bf16.msra.mxu0 %v998
  %1426 = vmatprep.subr.bf16.mxu0 %v1001
  %1427 = vmatpush1.bf16.msra.mxu0 %v1000
  %1428 = vmatprep.subr.bf16.mxu0 %v1003
  %1429 = vmatpush1.bf16.msra.mxu0 %v1002
  %1430 = vmatprep.subr.bf16.mxu0 %v1005
  %1431 = vmatpush1.bf16.msra.mxu0 %v1004
  %1432 = vmatprep.mubr.bf16.mxu0 %v107
  %1433 = vmatmul.mubr.bf16.gmra.mrb[0].mxu0 %v106
  %v1434 = vpop.f32.mrb[0].mxu0
  %v1435 = vadd.f32 %v1384, %v1434
  %v1436 = vpop.f32.mrb[0].mxu0
  %v1437 = vadd.f32 %v1386, %v1436
  %v1438 = vpop.f32.mrb[0].mxu0
  %v1439 = vadd.f32 %v1388, %v1438
  %v1440 = vpop.f32.mrb[0].mxu0
  %v1441 = vadd.f32 %v1390, %v1440
  %1442 = vmatprep.mubr.bf16.mxu0 %v120
  %1443 = vmatmul.mubr.bf16.gmra.mrb[0].mxu0 %v119
  %v1444 = vpop.f32.mrb[0].mxu0
  %v1445 = vadd.f32 %v1394, %v1444
  %v1446 = vpop.f32.mrb[0].mxu0
  %v1447 = vadd.f32 %v1396, %v1446
  %v1448 = vpop.f32.mrb[0].mxu0
  %v1449 = vpop.f32.mrb[0].mxu0
  %1450 = vdwg.mxu0
  %1451 = vmatprep.subr.bf16.mxu0 %v1007
  %1452 = vmatpush1.bf16.msra.mxu0 %v1006
  %1453 = vmatprep.subr.bf16.mxu0 %v1009
  %1454 = vmatpush1.bf16.msra.mxu0 %v1008
  %1455 = vmatprep.subr.bf16.mxu0 %v1011
  %1456 = vmatpush1.bf16.msra.mxu0 %v1010
  %1457 = vmatprep.subr.bf16.mxu0 %v1013
  %1458 = vmatpush1.bf16.msra.mxu0 %v1012
  %1459 = vmatprep.subr.bf16.mxu0 %v1015
  %1460 = vmatpush1.bf16.msra.mxu0 %v1014
  %1461 = vmatprep.subr.bf16.mxu0 %v1017
  %1462 = vmatpush1.bf16.msra.mxu0 %v1016
  %1463 = vmatprep.subr.bf16.mxu0 %v1019
  %1464 = vmatpush1.bf16.msra.mxu0 %v1018
  %1465 = vmatprep.subr.bf16.mxu0 %v1021
  %1466 = vmatpush1.bf16.msra.mxu0 %v1020
  %1467 = vmatprep.subr.bf16.mxu0 %v1023
  %1468 = vmatpush1.bf16.msra.mxu0 %v1022
  %1469 = vmatprep.subr.bf16.mxu0 %v1025
  %1470 = vmatpush1.bf16.msra.mxu0 %v1024
  %1471 = vmatprep.subr.bf16.mxu0 %v1027
  %1472 = vmatpush1.bf16.msra.mxu0 %v1026
  %1473 = vmatprep.subr.bf16.mxu0 %v1029
  %1474 = vmatpush1.bf16.msra.mxu0 %v1028
  %1475 = vmatprep.subr.bf16.mxu0 %v1031
  %1476 = vmatpush1.bf16.msra.mxu0 %v1030
  %1477 = vmatprep.subr.bf16.mxu0 %v1033
  %1478 = vmatpush1.bf16.msra.mxu0 %v1032
  %1479 = vmatprep.subr.bf16.mxu0 %v1035
  %1480 = vmatpush1.bf16.msra.mxu0 %v1034
  %1481 = vmatprep.subr.bf16.mxu0 %v1037
  %1482 = vmatpush1.bf16.msra.mxu0 %v1036
  %1483 = vmatprep.mubr.bf16.mxu0 %v109
  %1484 = vmatmul.mubr.bf16.gmra.mrb[0].mxu0 %v108
  %v1485 = vpop.f32.mrb[0].mxu0
  %v1486 = vadd.f32 %v1435, %v1485
  %v1487 = vpop.f32.mrb[0].mxu0
  %v1488 = vadd.f32 %v1437, %v1487
  %v1489 = vpop.f32.mrb[0].mxu0
  %v1490 = vadd.f32 %v1439, %v1489
  %v1491 = vpop.f32.mrb[0].mxu0
  %v1492 = vadd.f32 %v1441, %v1491
  %1493 = vmatprep.mubr.bf16.mxu0 %v122
  %1494 = vmatmul.mubr.bf16.gmra.mrb[0].mxu0 %v121
  %v1495 = vpop.f32.mrb[0].mxu0
  %v1496 = vadd.f32 %v1445, %v1495
  %v1497 = vpop.f32.mrb[0].mxu0
  %v1498 = vadd.f32 %v1447, %v1497
  %v1499 = vpop.f32.mrb[0].mxu0
  %v1500 = vpop.f32.mrb[0].mxu0
  %1501 = vdwg.mxu0
  %1502 = vmatprep.subr.bf16.mxu0 %v1039
  %1503 = vmatpush1.bf16.msra.mxu0 %v1038
  %1504 = vmatprep.subr.bf16.mxu0 %v1041
  %1505 = vmatpush1.bf16.msra.mxu0 %v1040
  %1506 = vmatprep.subr.bf16.mxu0 %v1043
  %1507 = vmatpush1.bf16.msra.mxu0 %v1042
  %1508 = vmatprep.subr.bf16.mxu0 %v1045
  %1509 = vmatpush1.bf16.msra.mxu0 %v1044
  %1510 = vmatprep.subr.bf16.mxu0 %v1047
  %1511 = vmatpush1.bf16.msra.mxu0 %v1046
  %1512 = vmatprep.subr.bf16.mxu0 %v1049
  %1513 = vmatpush1.bf16.msra.mxu0 %v1048
  %1514 = vmatprep.subr.bf16.mxu0 %v1051
  %1515 = vmatpush1.bf16.msra.mxu0 %v1050
  %1516 = vmatprep.subr.bf16.mxu0 %v1053
  %1517 = vmatpush1.bf16.msra.mxu0 %v1052
  %1518 = vmatprep.subr.bf16.mxu0 %v1055
  %1519 = vmatpush1.bf16.msra.mxu0 %v1054
  %1520 = vmatprep.subr.bf16.mxu0 %v1057
  %1521 = vmatpush1.bf16.msra.mxu0 %v1056
  %1522 = vmatprep.subr.bf16.mxu0 %v1059
  %1523 = vmatpush1.bf16.msra.mxu0 %v1058
  %1524 = vmatprep.subr.bf16.mxu0 %v1061
  %1525 = vmatpush1.bf16.msra.mxu0 %v1060
  %1526 = vmatprep.subr.bf16.mxu0 %v1063
  %1527 = vmatpush1.bf16.msra.mxu0 %v1062
  %1528 = vmatprep.subr.bf16.mxu0 %v1065
  %1529 = vmatpush1.bf16.msra.mxu0 %v1064
  %1530 = vmatprep.subr.bf16.mxu0 %v1067
  %1531 = vmatpush1.bf16.msra.mxu0 %v1066
  %1532 = vmatprep.subr.bf16.mxu0 %v1069
  %1533 = vmatpush1.bf16.msra.mxu0 %v1068
  %1534 = vmatprep.mubr.bf16.mxu0 %v111
  %1535 = vmatmul.mubr.bf16.gmra.mrb[0].mxu0 %v110
  %v1536 = vpop.f32.mrb[0].mxu0
  %v1537 = vadd.f32 %v1486, %v1536
  %v1538 = vpop.f32.mrb[0].mxu0
  %v1539 = vadd.f32 %v1488, %v1538
  %v1540 = vpop.f32.mrb[0].mxu0
  %v1541 = vadd.f32 %v1490, %v1540
  %v1542 = vpop.f32.mrb[0].mxu0
  %v1543 = vadd.f32 %v1492, %v1542
  %1544 = vmatprep.mubr.bf16.mxu0 %v124
  %1545 = vmatmul.mubr.bf16.gmra.mrb[0].mxu0 %v123
  %v1546 = vpop.f32.mrb[0].mxu0
  %v1547 = vadd.f32 %v1496, %v1546
  %v1548 = vpop.f32.mrb[0].mxu0
  %v1549 = vadd.f32 %v1498, %v1548
  %v1550 = vpop.f32.mrb[0].mxu0
  %v1551 = vpop.f32.mrb[0].mxu0
  %1552 = vdwg.mxu0
  %1553 = vmatprep.subr.bf16.mxu0 %v1071
  %1554 = vmatpush1.bf16.msra.mxu0 %v1070
  %1555 = vmatprep.subr.bf16.mxu0 %v1073
  %1556 = vmatpush1.bf16.msra.mxu0 %v1072
  %1557 = vmatprep.subr.bf16.mxu0 %v1075
  %1558 = vmatpush1.bf16.msra.mxu0 %v1074
  %1559 = vmatprep.subr.bf16.mxu0 %v1077
  %1560 = vmatpush1.bf16.msra.mxu0 %v1076
  %1561 = vmatprep.subr.bf16.mxu0 %v1079
  %1562 = vmatpush1.bf16.msra.mxu0 %v1078
  %1563 = vmatprep.subr.bf16.mxu0 %v1081
  %1564 = vmatpush1.bf16.msra.mxu0 %v1080
  %1565 = vmatprep.subr.bf16.mxu0 %v1083
  %1566 = vmatpush1.bf16.msra.mxu0 %v1082
  %1567 = vmatprep.subr.bf16.mxu0 %v1085
  %1568 = vmatpush1.bf16.msra.mxu0 %v1084
  %1569 = vmatprep.subr.bf16.mxu0 %v1087
  %1570 = vmatpush1.bf16.msra.mxu0 %v1086
  %1571 = vmatprep.subr.bf16.mxu0 %v1089
  %1572 = vmatpush1.bf16.msra.mxu0 %v1088
  %1573 = vmatprep.subr.bf16.mxu0 %v1091
  %1574 = vmatpush1.bf16.msra.mxu0 %v1090
  %1575 = vmatprep.subr.bf16.mxu0 %v1093
  %1576 = vmatpush1.bf16.msra.mxu0 %v1092
  %1577 = vmatprep.subr.bf16.mxu0 %v1095
  %1578 = vmatpush1.bf16.msra.mxu0 %v1094
  %1579 = vmatprep.subr.bf16.mxu0 %v1097
  %1580 = vmatpush1.bf16.msra.mxu0 %v1096
  %1581 = vmatprep.subr.bf16.mxu0 %v1099
  %1582 = vmatpush1.bf16.msra.mxu0 %v1098
  %1583 = vmatprep.subr.bf16.mxu0 %v1101
  %1584 = vmatpush1.bf16.msra.mxu0 %v1100
  %1585 = vmatprep.mubr.bf16.mxu0 %v113
  %1586 = vmatmul.mubr.bf16.gmra.mrb[0].mxu0 %v112
  %v1587 = vpop.f32.mrb[0].mxu0
  %v1588 = vadd.f32 %v1537, %v1587
  %v1589 = vpop.f32.mrb[0].mxu0
  %v1590 = vadd.f32 %v1539, %v1589
  %v1591 = vpop.f32.mrb[0].mxu0
  %v1592 = vadd.f32 %v1541, %v1591
  %v1593 = vpop.f32.mrb[0].mxu0
  %v1594 = vadd.f32 %v1543, %v1593
  %1595 = vmatprep.mubr.bf16.mxu0 %v126
  %1596 = vmatmul.mubr.bf16.gmra.mrb[0].mxu0 %v125
  %v1597 = vpop.f32.mrb[0].mxu0
  %v1598 = vadd.f32 %v1547, %v1597
  %v1599 = vpop.f32.mrb[0].mxu0
  %v1600 = vadd.f32 %v1549, %v1599
  %v1601 = vpop.f32.mrb[0].mxu0
  %v1602 = vpop.f32.mrb[0].mxu0
  %1603 = vdwg.mxu0
  %1604 = vmatprep.subr.bf16.mxu0 %v1103
  %1605 = vmatpush1.bf16.msra.mxu0 %v1102
  %1606 = vmatprep.subr.bf16.mxu0 %v1105
  %1607 = vmatpush1.bf16.msra.mxu0 %v1104
  %1608 = vmatprep.subr.bf16.mxu0 %v1107
  %1609 = vmatpush1.bf16.msra.mxu0 %v1106
  %1610 = vmatprep.subr.bf16.mxu0 %v1109
  %1611 = vmatpush1.bf16.msra.mxu0 %v1108
  %1612 = vmatprep.subr.bf16.mxu0 %v1111
  %1613 = vmatpush1.bf16.msra.mxu0 %v1110
  %1614 = vmatprep.subr.bf16.mxu0 %v1113
  %1615 = vmatpush1.bf16.msra.mxu0 %v1112
  %1616 = vmatprep.subr.bf16.mxu0 %v1115
  %1617 = vmatpush1.bf16.msra.mxu0 %v1114
  %1618 = vmatprep.subr.bf16.mxu0 %v1117
  %1619 = vmatpush1.bf16.msra.mxu0 %v1116
  %1620 = vmatprep.subr.bf16.mxu0 %v1119
  %1621 = vmatpush1.bf16.msra.mxu0 %v1118
  %1622 = vmatprep.subr.bf16.mxu0 %v1121
  %1623 = vmatpush1.bf16.msra.mxu0 %v1120
  %1624 = vmatprep.subr.bf16.mxu0 %v1123
  %1625 = vmatpush1.bf16.msra.mxu0 %v1122
  %1626 = vmatprep.subr.bf16.mxu0 %v1125
  %1627 = vmatpush1.bf16.msra.mxu0 %v1124
  %1628 = vmatprep.subr.bf16.mxu0 %v1127
  %1629 = vmatpush1.bf16.msra.mxu0 %v1126
  %1630 = vmatprep.subr.bf16.mxu0 %v1129
  %1631 = vmatpush1.bf16.msra.mxu0 %v1128
  %1632 = vmatprep.subr.bf16.mxu0 %v1131
  %1633 = vmatpush1.bf16.msra.mxu0 %v1130
  %1634 = vmatprep.subr.bf16.mxu0 %v1133
  %1635 = vmatpush1.bf16.msra.mxu0 %v1132
  %1636 = vmatprep.mubr.bf16.mxu0 %v115
  %1637 = vmatmul.mubr.bf16.gmra.mrb[0].mxu0 %v114
  %v1638 = vpop.f32.mrb[0].mxu0
  %v1639 = vadd.f32 %v1588, %v1638
  %v1640 = vpop.f32.mrb[0].mxu0
  %v1641 = vadd.f32 %v1590, %v1640
  %v1642 = vpop.f32.mrb[0].mxu0
  %v1643 = vadd.f32 %v1592, %v1642
  %v1644 = vpop.f32.mrb[0].mxu0
  %v1645 = vadd.f32 %v1594, %v1644
  %1646 = vmatprep.mubr.bf16.mxu0 %v128
  %1647 = vmatmul.mubr.bf16.gmra.mrb[0].mxu0 %v127
  %v1648 = vpop.f32.mrb[0].mxu0
  %v1649 = vadd.f32 %v1598, %v1648
  %v1650 = vpop.f32.mrb[0].mxu0
  %v1651 = vadd.f32 %v1600, %v1650
  %v1652 = vpop.f32.mrb[0].mxu0
  %v1653 = vpop.f32.mrb[0].mxu0
  %1654 = vdwg.mxu0
  %1655 = vmatprep.subr.bf16.mxu0 %v1135
  %1656 = vmatpush1.bf16.msra.mxu0 %v1134
  %1657 = vmatprep.subr.bf16.mxu0 %v1137
  %1658 = vmatpush1.bf16.msra.mxu0 %v1136
  %1659 = vmatprep.subr.bf16.mxu0 %v1139
  %1660 = vmatpush1.bf16.msra.mxu0 %v1138
  %1661 = vmatprep.subr.bf16.mxu0 %v1141
  %1662 = vmatpush1.bf16.msra.mxu0 %v1140
  %1663 = vmatprep.subr.bf16.mxu0 0
  %1664 = vmatpush1.bf16.msra.mxu0 0
  %1665 = vmatprep.subr.bf16.mxu0 0
  %1666 = vmatpush1.bf16.msra.mxu0 0
  %1667 = vmatprep.subr.bf16.mxu0 0
  %1668 = vmatpush1.bf16.msra.mxu0 0
  %1669 = vmatprep.subr.bf16.mxu0 0
  %1670 = vmatpush1.bf16.msra.mxu0 0
  %1671 = vmatprep.subr.bf16.mxu0 0
  %1672 = vmatpush1.bf16.msra.mxu0 0
  %1673 = vmatprep.subr.bf16.mxu0 0
  %1674 = vmatpush1.bf16.msra.mxu0 0
  %1675 = vmatprep.subr.bf16.mxu0 0
  %1676 = vmatpush1.bf16.msra.mxu0 0
  %1677 = vmatprep.subr.bf16.mxu0 0
  %1678 = vmatpush1.bf16.msra.mxu0 0
  %1679 = vmatprep.subr.bf16.mxu0 0
  %1680 = vmatpush1.bf16.msra.mxu0 0
  %1681 = vmatprep.subr.bf16.mxu0 0
  %1682 = vmatpush1.bf16.msra.mxu0 0
  %1683 = vmatprep.subr.bf16.mxu0 0
  %1684 = vmatpush1.bf16.msra.mxu0 0
  %1685 = vmatprep.subr.bf16.mxu0 0
  %1686 = vmatpush1.bf16.msra.mxu0 0
  %1687 = vmatprep.mubr.bf16.mxu0 0
  %1688 = vmatmul.mubr.bf16.gmra.mrb[0].mxu0 %v1344
  %v1689 = vpop.f32.mrb[0].mxu0
  %v1690 = vadd.f32 %v1639, %v1689
  %v1691 = vpop.f32.mrb[0].mxu0
  %v1692 = vadd.f32 %v1641, %v1691
  %v1693 = vpop.f32.mrb[0].mxu0
  %v1694 = vadd.f32 %v1643, %v1693
  %v1695 = vpop.f32.mrb[0].mxu0
  %v1696 = vadd.f32 %v1645, %v1695
  %1697 = vmatprep.mubr.bf16.mxu0 0
  %1698 = vmatmul.mubr.bf16.gmra.mrb[0].mxu0 %v1347
  %v1699 = vpop.f32.mrb[0].mxu0
  %v1700 = vadd.f32 %v1649, %v1699
  %v1701 = vpop.f32.mrb[0].mxu0
  %v1702 = vadd.f32 %v1651, %v1701
  %v1703 = vpop.f32.mrb[0].mxu0
  %v1704 = vpop.f32.mrb[0].mxu0
  %1705 = vdwg.mxu0
  %vm1706 = vcmp.gt.f32.partialorder %v1690, 0.0
  %vm1707 = vcmp.gt.f32.partialorder %v1692, 0.0
  %vm1708 = vcmp.gt.f32.partialorder %v1694, 0.0
  %vm1709 = vcmp.gt.f32.partialorder %v1696, 0.0
  %vm1710 = vcmp.gt.f32.partialorder %v1700, 0.0
  %vm1711 = vcmp.gt.f32.partialorder %v1702, 0.0
  %v1712 = vmul.f32 %v1690, 0.1
  %v1713 = vmul.f32 %v1692, 0.1
  %v1714 = vmul.f32 %v1694, 0.1
  %v1715 = vmul.f32 %v1696, 0.1
  %v1716 = vmul.f32 %v1700, 0.1
  %v1717 = vmul.f32 %v1702, 0.1
  %v1718 = vsel %vm1706, %v1690, %v1712
  %v1719 = vsel %vm1707, %v1692, %v1713
  %v1720 = vsel %vm1708, %v1694, %v1714
  %v1721 = vsel %vm1709, %v1696, %v1715
  %v1722 = vsel %vm1710, %v1700, %v1716
  %v1723 = vsel %vm1711, %v1702, %v1717
  %v1724 = vpack.c.bf16 %v1720, %v1718
  %v1725 = vpack.c.bf16 %v1721, %v1719
  %v1726 = vpack.c.bf16 %v1722, %v1722
  %v1727 = vpack.c.bf16 %v1723, %v1723
  %v1728 = vld [vmem:[%s3] sm:$0xf]
  %v1729 = vld [vmem:[%s3 + $0x4] sm:$0xf]
  %v1730 = vld [vmem:[%s3 + $0x8] sm:$0xf]
  %v1731 = vld [vmem:[%s3 + $0xc] sm:$0xf]
  %v1732 = vld [vmem:[%s3 + $0x10] sm:$0xf]
  %v1733 = vld [vmem:[%s3 + $0x14] sm:$0xf]
  %v1734 = vld [vmem:[%s3 + $0x18] sm:$0xf]
  %v1735 = vld [vmem:[%s3 + $0x1c] sm:$0xf]
  %v1736 = vld [vmem:[%s3 + $0x20] sm:$0xf]
  %v1737 = vld [vmem:[%s3 + $0x24] sm:$0xf]
  %v1738 = vld [vmem:[%s3 + $0x28] sm:$0xf]
  %v1739 = vld [vmem:[%s3 + $0x2c] sm:$0xf]
  %v1740 = vld [vmem:[%s3 + $0x30] sm:$0xf]
  %v1741 = vld [vmem:[%s3 + $0x34] sm:$0xf]
  %v1742 = vld [vmem:[%s3 + $0x38] sm:$0xf]
  %v1743 = vld [vmem:[%s3 + $0x3c] sm:$0xf]
  %v1744 = vld [vmem:[%s3 + $0x40] sm:$0xf]
  %v1745 = vld [vmem:[%s3 + $0x44] sm:$0xf]
  %v1746 = vld [vmem:[%s3 + $0x48] sm:$0xf]
  %v1747 = vld [vmem:[%s3 + $0x4c] sm:$0xf]
  %v1748 = vld [vmem:[%s3 + $0x50] sm:$0xf]
  %v1749 = vld [vmem:[%s3 + $0x54] sm:$0xf]
  %v1750 = vld [vmem:[%s3 + $0x58] sm:$0xf]
  %v1751 = vld [vmem:[%s3 + $0x5c] sm:$0xf]
  %v1752 = vld [vmem:[%s3 + $0x60] sm:$0xf]
  %v1753 = vld [vmem:[%s3 + $0x64] sm:$0xf]
  %v1754 = vld [vmem:[%s3 + $0x68] sm:$0xf]
  %v1755 = vld [vmem:[%s3 + $0x6c] sm:$0xf]
  %v1756 = vld [vmem:[%s3 + $0x70] sm:$0xf]
  %v1757 = vld [vmem:[%s3 + $0x74] sm:$0xf]
  %v1758 = vld [vmem:[%s3 + $0x78] sm:$0xf]
  %v1759 = vld [vmem:[%s3 + $0x7c] sm:$0xf]
  %v1760 = vld [vmem:[%s4] sm:$0x1]
  %v1762 = vlaneseq
  %v1763 = vshrl.u32 %v1762, 7
  %v1764 = vsub.s32 0, %v1763
  %v1765 = vrot.slane %v1760, %v1764
  %v1799 = vunpack.c.l.b16 %v1728
  %v1800 = vunpack.c.l.b16 %v1729
  %v1801 = vunpack.c.l.b16 %v1730
  %v1802 = vunpack.c.l.b16 %v1731
  %v1803 = vunpack.c.l.b16 %v1732
  %v1804 = vunpack.c.l.b16 %v1733
  %v1805 = vunpack.c.l.b16 %v1734
  %v1806 = vunpack.c.l.b16 %v1735
  %v1807 = vunpack.c.l.b16 %v1736
  %v1808 = vunpack.c.l.b16 %v1737
  %v1809 = vunpack.c.l.b16 %v1738
  %v1810 = vunpack.c.l.b16 %v1739
  %v1811 = vunpack.c.l.b16 %v1740
  %v1812 = vunpack.c.l.b16 %v1741
  %v1813 = vunpack.c.l.b16 %v1742
  %v1814 = vunpack.c.l.b16 %v1743
  %v1815 = vunpack.c.l.b16 %v1744
  %v1816 = vunpack.c.l.b16 %v1745
  %v1817 = vunpack.c.l.b16 %v1746
  %v1818 = vunpack.c.l.b16 %v1747
  %v1819 = vunpack.c.l.b16 %v1748
  %v1820 = vunpack.c.l.b16 %v1749
  %v1821 = vunpack.c.l.b16 %v1750
  %v1822 = vunpack.c.l.b16 %v1751
  %v1823 = vunpack.c.l.b16 %v1752
  %v1824 = vunpack.c.l.b16 %v1753
  %v1825 = vunpack.c.l.b16 %v1754
  %v1826 = vunpack.c.l.b16 %v1755
  %v1827 = vunpack.c.l.b16 %v1756
  %v1828 = vunpack.c.l.b16 %v1757
  %v1829 = vunpack.c.l.b16 %v1758
  %v1830 = vunpack.c.l.b16 %v1759
  %v1831 = vpack.c.b16 %v1800, %v1799
  %v1832 = vpack.c.b16 %v1802, %v1801
  %v1833 = vpack.c.b16 %v1804, %v1803
  %v1834 = vpack.c.b16 %v1806, %v1805
  %v1835 = vpack.c.b16 %v1808, %v1807
  %v1836 = vpack.c.b16 %v1810, %v1809
  %v1837 = vpack.c.b16 %v1812, %v1811
  %v1838 = vpack.c.b16 %v1814, %v1813
  %v1839 = vpack.c.b16 %v1816, %v1815
  %v1840 = vpack.c.b16 %v1818, %v1817
  %v1841 = vpack.c.b16 %v1820, %v1819
  %v1842 = vpack.c.b16 %v1822, %v1821
  %v1843 = vpack.c.b16 %v1824, %v1823
  %v1844 = vpack.c.b16 %v1826, %v1825
  %v1845 = vpack.c.b16 %v1828, %v1827
  %v1846 = vpack.c.b16 %v1830, %v1829
  %1863 = vmatprep.subr.bf16.mxu0 0
  %1864 = vmatpush1.bf16.msra.mxu0 %v1831
  %1865 = vmatprep.subr.bf16.mxu0 0
  %1866 = vmatpush1.bf16.msra.mxu0 %v1832
  %1867 = vmatprep.subr.bf16.mxu0 0
  %1868 = vmatpush1.bf16.msra.mxu0 %v1833
  %1869 = vmatprep.subr.bf16.mxu0 0
  %1870 = vmatpush1.bf16.msra.mxu0 %v1834
  %1871 = vmatprep.subr.bf16.mxu0 0
  %1872 = vmatpush1.bf16.msra.mxu0 %v1835
  %1873 = vmatprep.subr.bf16.mxu0 0
  %1874 = vmatpush1.bf16.msra.mxu0 %v1836
  %1875 = vmatprep.subr.bf16.mxu0 0
  %1876 = vmatpush1.bf16.msra.mxu0 %v1837
  %1877 = vmatprep.subr.bf16.mxu0 0
  %1878 = vmatpush1.bf16.msra.mxu0 %v1838
  %1879 = vmatprep.subr.bf16.mxu0 0
  %1880 = vmatpush1.bf16.msra.mxu0 %v1839
  %1881 = vmatprep.subr.bf16.mxu0 0
  %1882 = vmatpush1.bf16.msra.mxu0 %v1840
  %1883 = vmatprep.subr.bf16.mxu0 0
  %1884 = vmatpush1.bf16.msra.mxu0 %v1841
  %1885 = vmatprep.subr.bf16.mxu0 0
  %1886 = vmatpush1.bf16.msra.mxu0 %v1842
  %1887 = vmatprep.subr.bf16.mxu0 0
  %1888 = vmatpush1.bf16.msra.mxu0 %v1843
  %1889 = vmatprep.subr.bf16.mxu0 0
  %1890 = vmatpush1.bf16.msra.mxu0 %v1844
  %1891 = vmatprep.subr.bf16.mxu0 0
  %1892 = vmatpush1.bf16.msra.mxu0 %v1845
  %1893 = vmatprep.subr.bf16.mxu0 0
  %1894 = vmatpush1.bf16.msra.mxu0 %v1846
  %1895 = vmatprep.mubr.bf16.mxu0 %v1725
  %1896 = vmatmul.mubr.bf16.gmra.mrb[0].mxu0 %v1724
  %v1897 = vpop.f32.mrb[0].mxu0
  %v1898 = vadd.f32 %v1765, %v1897
  %v1899 = vpop.f32.mrb[0].mxu0
  %v1900 = vpop.f32.mrb[0].mxu0
  %v1901 = vadd.f32 %v1765, %v1900
  %v1902 = vpop.f32.mrb[0].mxu0
  %1903 = vmatprep.mubr.bf16.mxu0 %v1727
  %1904 = vmatmul.mubr.bf16.gmra.mrb[0].mxu0 %v1726
  %v1905 = vpop.f32.mrb[0].mxu0
  %v1906 = vadd.f32 %v1765, %v1905
  %v1907 = vpop.f32.mrb[0].mxu0
  %v1908 = vpop.f32.mrb[0].mxu0
  %v1909 = vpop.f32.mrb[0].mxu0
  %1910 = vdwg.mxu0
  %vm1911 = vcmp.gt.f32.partialorder %v1898, 0.0
  %vm1912 = vcmp.gt.f32.partialorder %v1901, 0.0
  %vm1913 = vcmp.gt.f32.partialorder %v1906, 0.0
  %v1914 = vmul.f32 %v1898, 0.1
  %v1915 = vmul.f32 %v1901, 0.1
  %v1916 = vmul.f32 %v1906, 0.1
  %v1917 = vsel %vm1911, %v1898, %v1914
  %v1918 = vsel %vm1912, %v1901, %v1915
  %v1919 = vsel %vm1913, %v1906, %v1916
  %v1920 = vpack.c.bf16 %v1918, %v1917
  %v1921 = vpack.c.bf16 %v1919, %v1919
  %v1922 = vld [vmem:[%s5] sm:$0xf]
  %v1923 = vld [vmem:[%s5 + $0x4] sm:$0xf]
  %v1924 = vld [vmem:[%s5 + $0x8] sm:$0xf]
  %v1925 = vld [vmem:[%s5 + $0xc] sm:$0xf]
  %v1926 = vld [vmem:[%s5 + $0x10] sm:$0xf]
  %v1927 = vld [vmem:[%s5 + $0x14] sm:$0xf]
  %v1928 = vld [vmem:[%s5 + $0x18] sm:$0xf]
  %v1929 = vld [vmem:[%s5 + $0x1c] sm:$0xf]
  %v1930 = vld [vmem:[%s5 + $0x20] sm:$0xf]
  %v1931 = vld [vmem:[%s5 + $0x24] sm:$0xf]
  %v1932 = vld [vmem:[%s5 + $0x28] sm:$0xf]
  %v1933 = vld [vmem:[%s5 + $0x2c] sm:$0xf]
  %v1934 = vld [vmem:[%s5 + $0x30] sm:$0xf]
  %v1935 = vld [vmem:[%s5 + $0x34] sm:$0xf]
  %v1936 = vld [vmem:[%s5 + $0x38] sm:$0xf]
  %v1937 = vld [vmem:[%s5 + $0x3c] sm:$0xf]
  %v1938 = vld [vmem:[%s6] sm:$0x1]
  %v1940 = vlaneseq
  %v1941 = vshrl.u32 %v1940, 7
  %v1942 = vsub.s32 0, %v1941
  %v1943 = vrot.slane %v1938, %v1942
  %v1961 = vunpack.c.l.b16 %v1922
  %v1962 = vunpack.c.l.b16 %v1923
  %v1963 = vunpack.c.l.b16 %v1924
  %v1964 = vunpack.c.l.b16 %v1925
  %v1965 = vunpack.c.l.b16 %v1926
  %v1966 = vunpack.c.l.b16 %v1927
  %v1967 = vunpack.c.l.b16 %v1928
  %v1968 = vunpack.c.l.b16 %v1929
  %v1969 = vunpack.c.l.b16 %v1930
  %v1970 = vunpack.c.l.b16 %v1931
  %v1971 = vunpack.c.l.b16 %v1932
  %v1972 = vunpack.c.l.b16 %v1933
  %v1973 = vunpack.c.l.b16 %v1934
  %v1974 = vunpack.c.l.b16 %v1935
  %v1975 = vunpack.c.l.b16 %v1936
  %v1976 = vunpack.c.l.b16 %v1937
  %v1977 = vpack.c.b16 %v1962, %v1961
  %v1978 = vpack.c.b16 %v1964, %v1963
  %v1979 = vpack.c.b16 %v1966, %v1965
  %v1980 = vpack.c.b16 %v1968, %v1967
  %v1981 = vpack.c.b16 %v1970, %v1969
  %v1982 = vpack.c.b16 %v1972, %v1971
  %v1983 = vpack.c.b16 %v1974, %v1973
  %v1984 = vpack.c.b16 %v1976, %v1975
  %1993 = vmatprep.subr.bf16.mxu0 0
  %1994 = vmatpush1.bf16.msra.mxu0 %v1977
  %1995 = vmatprep.subr.bf16.mxu0 0
  %1996 = vmatpush1.bf16.msra.mxu0 %v1978
  %1997 = vmatprep.subr.bf16.mxu0 0
  %1998 = vmatpush1.bf16.msra.mxu0 %v1979
  %1999 = vmatprep.subr.bf16.mxu0 0
  %2000 = vmatpush1.bf16.msra.mxu0 %v1980
  %2001 = vmatprep.subr.bf16.mxu0 0
  %2002 = vmatpush1.bf16.msra.mxu0 %v1981
  %2003 = vmatprep.subr.bf16.mxu0 0
  %2004 = vmatpush1.bf16.msra.mxu0 %v1982
  %2005 = vmatprep.subr.bf16.mxu0 0
  %2006 = vmatpush1.bf16.msra.mxu0 %v1983
  %2007 = vmatprep.subr.bf16.mxu0 0
  %2008 = vmatpush1.bf16.msra.mxu0 %v1984
  %2009 = vmatprep.subr.bf16.mxu0 0
  %2010 = vmatpush1.bf16.msra.mxu0 0
  %2011 = vmatprep.subr.bf16.mxu0 0
  %2012 = vmatpush1.bf16.msra.mxu0 0
  %2013 = vmatprep.subr.bf16.mxu0 0
  %2014 = vmatpush1.bf16.msra.mxu0 0
  %2015 = vmatprep.subr.bf16.mxu0 0
  %2016 = vmatpush1.bf16.msra.mxu0 0
  %2017 = vmatprep.subr.bf16.mxu0 0
  %2018 = vmatpush1.bf16.msra.mxu0 0
  %2019 = vmatprep.subr.bf16.mxu0 0
  %2020 = vmatpush1.bf16.msra.mxu0 0
  %2021 = vmatprep.subr.bf16.mxu0 0
  %2022 = vmatpush1.bf16.msra.mxu0 0
  %2023 = vmatprep.subr.bf16.mxu0 0
  %2024 = vmatpush1.bf16.msra.mxu0 0
  %2025 = vmatprep.mubr.bf16.mxu0 0
  %2026 = vmatmul.mubr.bf16.gmra.mrb[0].mxu0 %v1920
  %v2027 = vpop.f32.mrb[0].mxu0
  %v2028 = vadd.f32 %v1943, %v2027
  %v2029 = vpop.f32.mrb[0].mxu0
  %v2030 = vpop.f32.mrb[0].mxu0
  %v2031 = vadd.f32 %v1943, %v2030
  %v2032 = vpop.f32.mrb[0].mxu0
  %2033 = vmatprep.mubr.bf16.mxu0 0
  %2034 = vmatmul.mubr.bf16.gmra.mrb[0].mxu0 %v1921
  %v2035 = vpop.f32.mrb[0].mxu0
  %v2036 = vadd.f32 %v1943, %v2035
  %v2037 = vpop.f32.mrb[0].mxu0
  %v2038 = vpop.f32.mrb[0].mxu0
  %v2039 = vpop.f32.mrb[0].mxu0
  %2040 = vdwg.mxu0
  %vm2041 = vcmp.gt.f32.partialorder %v2028, 0.0
  %vm2042 = vcmp.gt.f32.partialorder %v2031, 0.0
  %vm2043 = vcmp.gt.f32.partialorder %v2036, 0.0
  %v2044 = vmul.f32 %v2028, 0.1
  %v2045 = vmul.f32 %v2031, 0.1
  %v2046 = vmul.f32 %v2036, 0.1
  %v2047 = vsel %vm2041, %v2028, %v2044
  %v2048 = vsel %vm2042, %v2031, %v2045
  %v2049 = vsel %vm2043, %v2036, %v2046
  %v2050 = vpack.c.bf16 %v2048, %v2047
  %v2051 = vpack.c.bf16 %v2049, %v2049
  %v2052 = vld [vmem:[%s7] sm:$0xf]
  %v2053 = vld [vmem:[%s7 + $0x4] sm:$0xf]
  %v2054 = vld [vmem:[%s7 + $0x8] sm:$0xf]
  %v2055 = vld [vmem:[%s7 + $0xc] sm:$0xf]
  %v2056 = vld [vmem:[%s7 + $0x10] sm:$0xf]
  %v2057 = vld [vmem:[%s7 + $0x14] sm:$0xf]
  %v2058 = vld [vmem:[%s7 + $0x18] sm:$0xf]
  %v2059 = vld [vmem:[%s7 + $0x1c] sm:$0xf]
  %v2060 = vld [vmem:[%s8] sm:$0x1]
  %v2062 = vlaneseq
  %v2063 = vshrl.u32 %v2062, 7
  %v2064 = vsub.s32 0, %v2063
  %v2065 = vrot.slane %v2060, %v2064
  %v2075 = vunpack.c.l.b16 %v2052
  %v2076 = vunpack.c.l.b16 %v2053
  %v2077 = vunpack.c.l.b16 %v2054
  %v2078 = vunpack.c.l.b16 %v2055
  %v2079 = vunpack.c.l.b16 %v2056
  %v2080 = vunpack.c.l.b16 %v2057
  %v2081 = vunpack.c.l.b16 %v2058
  %v2082 = vunpack.c.l.b16 %v2059
  %v2083 = vpack.c.b16 %v2076, %v2075
  %v2084 = vpack.c.b16 %v2078, %v2077
  %v2085 = vpack.c.b16 %v2080, %v2079
  %v2086 = vpack.c.b16 %v2082, %v2081
  %v2092 = vsel %vm1342, %v2050, 0
  %v2095 = vsel %vm1342, %v2051, 0
  %2097 = vmatprep.subr.bf16.mxu0 0
  %2098 = vmatpush1.bf16.msra.mxu0 %v2083
  %2099 = vmatprep.subr.bf16.mxu0 0
  %2100 = vmatpush1.bf16.msra.mxu0 %v2084
  %2101 = vmatprep.subr.bf16.mxu0 0
  %2102 = vmatpush1.bf16.msra.mxu0 %v2085
  %2103 = vmatprep.subr.bf16.mxu0 0
  %2104 = vmatpush1.bf16.msra.mxu0 %v2086
  %2105 = vmatprep.subr.bf16.mxu0 0
  %2106 = vmatpush1.bf16.msra.mxu0 0
  %2107 = vmatprep.subr.bf16.mxu0 0
  %2108 = vmatpush1.bf16.msra.mxu0 0
  %2109 = vmatprep.subr.bf16.mxu0 0
  %2110 = vmatpush1.bf16.msra.mxu0 0
  %2111 = vmatprep.subr.bf16.mxu0 0
  %2112 = vmatpush1.bf16.msra.mxu0 0
  %2113 = vmatprep.subr.bf16.mxu0 0
  %2114 = vmatpush1.bf16.msra.mxu0 0
  %2115 = vmatprep.subr.bf16.mxu0 0
  %2116 = vmatpush1.bf16.msra.mxu0 0
  %2117 = vmatprep.subr.bf16.mxu0 0
  %2118 = vmatpush1.bf16.msra.mxu0 0
  %2119 = vmatprep.subr.bf16.mxu0 0
  %2120 = vmatpush1.bf16.msra.mxu0 0
  %2121 = vmatprep.subr.bf16.mxu0 0
  %2122 = vmatpush1.bf16.msra.mxu0 0
  %2123 = vmatprep.subr.bf16.mxu0 0
  %2124 = vmatpush1.bf16.msra.mxu0 0
  %2125 = vmatprep.subr.bf16.mxu0 0
  %2126 = vmatpush1.bf16.msra.mxu0 0
  %2127 = vmatprep.subr.bf16.mxu0 0
  %2128 = vmatpush1.bf16.msra.mxu0 0
  %2129 = vmatprep.mubr.bf16.mxu0 0
  %2130 = vmatmul.mubr.bf16.gmra.mrb[0].mxu0 %v2092
  %v2131 = vpop.f32.mrb[0].mxu0
  %v2132 = vadd.f32 %v2065, %v2131
  %v2133 = vpop.f32.mrb[0].mxu0
  %v2134 = vpop.f32.mrb[0].mxu0
  %v2135 = vadd.f32 %v2065, %v2134
  %v2136 = vpop.f32.mrb[0].mxu0
  %2137 = vmatprep.mubr.bf16.mxu0 0
  %2138 = vmatmul.mubr.bf16.gmra.mrb[0].mxu0 %v2095
  %v2139 = vpop.f32.mrb[0].mxu0
  %v2140 = vadd.f32 %v2065, %v2139
  %v2141 = vpop.f32.mrb[0].mxu0
  %v2142 = vpop.f32.mrb[0].mxu0
  %v2143 = vpop.f32.mrb[0].mxu0
  %2144 = vdwg.mxu0
  %vm2145 = vcmp.gt.f32.partialorder %v2132, 0.0
  %vm2146 = vcmp.gt.f32.partialorder %v2135, 0.0
  %vm2147 = vcmp.gt.f32.partialorder %v2140, 0.0
  %v2148 = vmul.f32 %v2132, 0.1
  %v2149 = vmul.f32 %v2135, 0.1
  %v2150 = vmul.f32 %v2140, 0.1
  %v2151 = vsel %vm2145, %v2132, %v2148
  %v2152 = vsel %vm2146, %v2135, %v2149
  %v2153 = vsel %vm2147, %v2140, %v2150
  %v2154 = vpack.c.bf16 %v2152, %v2151
  %v2155 = vpack.c.bf16 %v2153, %v2153
  %v2156 = vld [vmem:[%s9] sm:$0xf]
  %v2157 = vld [vmem:[%s9 + $0x4] sm:$0xf]
  %v2158 = vld [vmem:[%s9 + $0x8] sm:$0xf]
  %v2159 = vld [vmem:[%s9 + $0xc] sm:$0xf]
  %v2164 = vunpack.c.l.b16 %v2156
  %v2165 = vunpack.c.l.b16 %v2157
  %v2166 = vunpack.c.l.b16 %v2158
  %v2167 = vunpack.c.l.b16 %v2159
  %v2168 = vpack.c.b16 %v2165, %v2164
  %v2169 = vpack.c.b16 %v2167, %v2166
  %vm2172 = vcmask 261120
  %v2174 = vsel %vm2172, %v2154, 0
  %v2177 = vsel %vm2172, %v2155, 0
  %2179 = vmatprep.subr.bf16.mxu0 0
  %2180 = vmatpush1.bf16.msra.mxu0 %v2168
  %2181 = vmatprep.subr.bf16.mxu0 0
  %2182 = vmatpush1.bf16.msra.mxu0 %v2169
  %2183 = vmatprep.subr.bf16.mxu0 0
  %2184 = vmatpush1.bf16.msra.mxu0 0
  %2185 = vmatprep.subr.bf16.mxu0 0
  %2186 = vmatpush1.bf16.msra.mxu0 0
  %2187 = vmatprep.subr.bf16.mxu0 0
  %2188 = vmatpush1.bf16.msra.mxu0 0
  %2189 = vmatprep.subr.bf16.mxu0 0
  %2190 = vmatpush1.bf16.msra.mxu0 0
  %2191 = vmatprep.subr.bf16.mxu0 0
  %2192 = vmatpush1.bf16.msra.mxu0 0
  %2193 = vmatprep.subr.bf16.mxu0 0
  %2194 = vmatpush1.bf16.msra.mxu0 0
  %2195 = vmatprep.subr.bf16.mxu0 0
  %2196 = vmatpush1.bf16.msra.mxu0 0
  %2197 = vmatprep.subr.bf16.mxu0 0
  %2198 = vmatpush1.bf16.msra.mxu0 0
  %2199 = vmatprep.subr.bf16.mxu0 0
  %2200 = vmatpush1.bf16.msra.mxu0 0
  %2201 = vmatprep.subr.bf16.mxu0 0
  %2202 = vmatpush1.bf16.msra.mxu0 0
  %2203 = vmatprep.subr.bf16.mxu0 0
  %2204 = vmatpush1.bf16.msra.mxu0 0
  %2205 = vmatprep.subr.bf16.mxu0 0
  %2206 = vmatpush1.bf16.msra.mxu0 0
  %2207 = vmatprep.subr.bf16.mxu0 0
  %2208 = vmatpush1.bf16.msra.mxu0 0
  %2209 = vmatprep.subr.bf16.mxu0 0
  %2210 = vmatpush1.bf16.msra.mxu0 0
  %2211 = vmatprep.mubr.bf16.mxu0 0
  %2212 = vmatmul.mubr.bf16.gmra.mrb[0].mxu0 %v2174
  %v2213 = vpop.f32.mrb[0].mxu0
  %v2214 = vadd.f32 0.0, %v2213
  %v2215 = vpop.f32.mrb[0].mxu0
  %v2216 = vpop.f32.mrb[0].mxu0
  %v2217 = vadd.f32 0.0, %v2216
  %v2218 = vpop.f32.mrb[0].mxu0
  %2219 = vmatprep.mubr.bf16.mxu0 0
  %2220 = vmatmul.mubr.bf16.gmra.mrb[0].mxu0 %v2177
  %v2221 = vpop.f32.mrb[0].mxu0
  %v2222 = vadd.f32 0.0, %v2221
  %v2223 = vpop.f32.mrb[0].mxu0
  %v2224 = vpop.f32.mrb[0].mxu0
  %v2225 = vpop.f32.mrb[0].mxu0
  %2226 = vdwg.mxu0
  %2227 = vst.msk [vmem:[%s20] sm:$0xff] %vm2172, %v2214
  %2228 = vst.msk [vmem:[%s20 + $0x8] sm:$0xff] %vm2172, %v2217
  %2229 = vst.msk [vmem:[%s20 + $0x10] sm:$0xff] %vm2172, %v2222
  %v2230 = vld [vmem:[%s10] sm:$0xf]
  %v2231 = vld [vmem:[%s10 + $0x4] sm:$0xf]
  %v2232 = vld [vmem:[%s10 + $0x8] sm:$0xf]
  %v2233 = vld [vmem:[%s10 + $0xc] sm:$0xf]
  %v2238 = vunpack.c.l.b16 %v2230
  %v2239 = vunpack.c.l.b16 %v2231
  %v2240 = vunpack.c.l.b16 %v2232
  %v2241 = vunpack.c.l.b16 %v2233
  %v2242 = vpack.c.b16 %v2239, %v2238
  %v2243 = vpack.c.b16 %v2241, %v2240
  %2246 = vmatprep.subr.bf16.mxu0 0
  %2247 = vmatpush1.bf16.msra.mxu0 %v2242
  %2248 = vmatprep.subr.bf16.mxu0 0
  %2249 = vmatpush1.bf16.msra.mxu0 %v2243
  %2250 = vmatprep.subr.bf16.mxu0 0
  %2251 = vmatpush1.bf16.msra.mxu0 0
  %2252 = vmatprep.subr.bf16.mxu0 0
  %2253 = vmatpush1.bf16.msra.mxu0 0
  %2254 = vmatprep.subr.bf16.mxu0 0
  %2255 = vmatpush1.bf16.msra.mxu0 0
  %2256 = vmatprep.subr.bf16.mxu0 0
  %2257 = vmatpush1.bf16.msra.mxu0 0
  %2258 = vmatprep.subr.bf16.mxu0 0
  %2259 = vmatpush1.bf16.msra.mxu0 0
  %2260 = vmatprep.subr.bf16.mxu0 0
  %2261 = vmatpush1.bf16.msra.mxu0 0
  %2262 = vmatprep.subr.bf16.mxu0 0
  %2263 = vmatpush1.bf16.msra.mxu0 0
  %2264 = vmatprep.subr.bf16.mxu0 0
  %2265 = vmatpush1.bf16.msra.mxu0 0
  %2266 = vmatprep.subr.bf16.mxu0 0
  %2267 = vmatpush1.bf16.msra.mxu0 0
  %2268 = vmatprep.subr.bf16.mxu0 0
  %2269 = vmatpush1.bf16.msra.mxu0 0
  %2270 = vmatprep.subr.bf16.mxu0 0
  %2271 = vmatpush1.bf16.msra.mxu0 0
  %2272 = vmatprep.subr.bf16.mxu0 0
  %2273 = vmatpush1.bf16.msra.mxu0 0
  %2274 = vmatprep.subr.bf16.mxu0 0
  %2275 = vmatpush1.bf16.msra.mxu0 0
  %2276 = vmatprep.subr.bf16.mxu0 0
  %2277 = vmatpush1.bf16.msra.mxu0 0
  %2278 = vmatprep.mubr.bf16.mxu0 0
  %2279 = vmatmul.mubr.bf16.gmra.mrb[0].mxu0 %v2174
  %v2280 = vpop.f32.mrb[0].mxu0
  %v2281 = vadd.f32 0.0, %v2280
  %v2282 = vpop.f32.mrb[0].mxu0
  %v2283 = vpop.f32.mrb[0].mxu0
  %v2284 = vadd.f32 0.0, %v2283
  %v2285 = vpop.f32.mrb[0].mxu0
  %2286 = vmatprep.mubr.bf16.mxu0 0
  %2287 = vmatmul.mubr.bf16.gmra.mrb[0].mxu0 %v2177
  %v2288 = vpop.f32.mrb[0].mxu0
  %v2289 = vadd.f32 0.0, %v2288
  %v2290 = vpop.f32.mrb[0].mxu0
  %v2291 = vpop.f32.mrb[0].mxu0
  %v2292 = vpop.f32.mrb[0].mxu0
  %2293 = vdwg.mxu0
  %v2294 = vpack.c.bf16 %v2284, %v2281
  %v2295 = vpack.c.bf16 %v2289, %v2289
  %v2296 = vld [vmem:[%s11] sm:$0xf]
  %v2297 = vld [vmem:[%s11 + $0x4] sm:$0xf]
  %v2298 = vld [vmem:[%s11 + $0x8] sm:$0xf]
  %v2299 = vld [vmem:[%s11 + $0xc] sm:$0xf]
  %v2300 = vld [vmem:[%s12] sm:$0x1]
  %v2302 = vlaneseq
  %v2303 = vshrl.u32 %v2302, 7
  %v2304 = vsub.s32 0, %v2303
  %v2305 = vrot.slane %v2300, %v2304
  %v2311 = vunpack.c.l.b16 %v2296
  %v2312 = vunpack.c.l.b16 %v2297
  %v2313 = vunpack.c.l.b16 %v2298
  %v2314 = vunpack.c.l.b16 %v2299
  %v2315 = vpack.c.b16 %v2312, %v2311
  %v2316 = vpack.c.b16 %v2314, %v2313
  %v2320 = vsel %vm2172, %v2294, 0
  %v2323 = vsel %vm2172, %v2295, 0
  %2325 = vmatprep.subr.bf16.mxu0 0
  %2326 = vmatpush1.bf16.msra.mxu0 %v2315
  %2327 = vmatprep.subr.bf16.mxu0 0
  %2328 = vmatpush1.bf16.msra.mxu0 %v2316
  %2329 = vmatprep.subr.bf16.mxu0 0
  %2330 = vmatpush1.bf16.msra.mxu0 0
  %2331 = vmatprep.subr.bf16.mxu0 0
  %2332 = vmatpush1.bf16.msra.mxu0 0
  %2333 = vmatprep.subr.bf16.mxu0 0
  %2334 = vmatpush1.bf16.msra.mxu0 0
  %2335 = vmatprep.subr.bf16.mxu0 0
  %2336 = vmatpush1.bf16.msra.mxu0 0
  %2337 = vmatprep.subr.bf16.mxu0 0
  %2338 = vmatpush1.bf16.msra.mxu0 0
  %2339 = vmatprep.subr.bf16.mxu0 0
  %2340 = vmatpush1.bf16.msra.mxu0 0
  %2341 = vmatprep.subr.bf16.mxu0 0
  %2342 = vmatpush1.bf16.msra.mxu0 0
  %2343 = vmatprep.subr.bf16.mxu0 0
  %2344 = vmatpush1.bf16.msra.mxu0 0
  %2345 = vmatprep.subr.bf16.mxu0 0
  %2346 = vmatpush1.bf16.msra.mxu0 0
  %2347 = vmatprep.subr.bf16.mxu0 0
  %2348 = vmatpush1.bf16.msra.mxu0 0
  %2349 = vmatprep.subr.bf16.mxu0 0
  %2350 = vmatpush1.bf16.msra.mxu0 0
  %2351 = vmatprep.subr.bf16.mxu0 0
  %2352 = vmatpush1.bf16.msra.mxu0 0
  %2353 = vmatprep.subr.bf16.mxu0 0
  %2354 = vmatpush1.bf16.msra.mxu0 0
  %2355 = vmatprep.subr.bf16.mxu0 0
  %2356 = vmatpush1.bf16.msra.mxu0 0
  %2357 = vmatprep.mubr.bf16.mxu0 0
  %2358 = vmatmul.mubr.bf16.gmra.mrb[0].mxu0 %v2320
  %v2359 = vpop.f32.mrb[0].mxu0
  %v2360 = vadd.f32 %v2305, %v2359
  %v2361 = vpop.f32.mrb[0].mxu0
  %v2362 = vpop.f32.mrb[0].mxu0
  %v2363 = vadd.f32 %v2305, %v2362
  %v2364 = vpop.f32.mrb[0].mxu0
  %2365 = vmatprep.mubr.bf16.mxu0 0
  %2366 = vmatmul.mubr.bf16.gmra.mrb[0].mxu0 %v2323
  %v2367 = vpop.f32.mrb[0].mxu0
  %v2368 = vadd.f32 %v2305, %v2367
  %v2369 = vpop.f32.mrb[0].mxu0
  %v2370 = vpop.f32.mrb[0].mxu0
  %v2371 = vpop.f32.mrb[0].mxu0
  %2372 = vdwg.mxu0
  %vm2373 = vcmp.gt.f32.partialorder %v2360, 0.0
  %vm2374 = vcmp.gt.f32.partialorder %v2363, 0.0
  %vm2375 = vcmp.gt.f32.partialorder %v2368, 0.0
  %v2376 = vmul.f32 %v2360, 0.1
  %v2377 = vmul.f32 %v2363, 0.1
  %v2378 = vmul.f32 %v2368, 0.1
  %v2379 = vsel %vm2373, %v2360, %v2376
  %v2380 = vsel %vm2374, %v2363, %v2377
  %v2381 = vsel %vm2375, %v2368, %v2378
  %v2382 = vpack.c.bf16 %v2380, %v2379
  %v2383 = vpack.c.bf16 %v2381, %v2381
  %v2384 = vld [vmem:[%s13] sm:$0xf]
  %v2385 = vld [vmem:[%s13 + $0x4] sm:$0xf]
  %v2386 = vld [vmem:[%s13 + $0x8] sm:$0xf]
  %v2387 = vld [vmem:[%s13 + $0xc] sm:$0xf]
  %v2388 = vld [vmem:[%s13 + $0x10] sm:$0xf]
  %v2389 = vld [vmem:[%s13 + $0x14] sm:$0xf]
  %v2390 = vld [vmem:[%s13 + $0x18] sm:$0xf]
  %v2391 = vld [vmem:[%s13 + $0x1c] sm:$0xf]
  %v2392 = vld [vmem:[%s14] sm:$0x1]
  %v2394 = vlaneseq
  %v2395 = vshrl.u32 %v2394, 7
  %v2396 = vsub.s32 0, %v2395
  %v2397 = vrot.slane %v2392, %v2396
  %v2407 = vunpack.c.l.b16 %v2384
  %v2408 = vunpack.c.l.b16 %v2385
  %v2409 = vunpack.c.l.b16 %v2386
  %v2410 = vunpack.c.l.b16 %v2387
  %v2411 = vunpack.c.l.b16 %v2388
  %v2412 = vunpack.c.l.b16 %v2389
  %v2413 = vunpack.c.l.b16 %v2390
  %v2414 = vunpack.c.l.b16 %v2391
  %v2415 = vpack.c.b16 %v2408, %v2407
  %v2416 = vpack.c.b16 %v2410, %v2409
  %v2417 = vpack.c.b16 %v2412, %v2411
  %v2418 = vpack.c.b16 %v2414, %v2413
  %v2424 = vsel %vm1342, %v2382, 0
  %v2427 = vsel %vm1342, %v2383, 0
  %2429 = vmatprep.subr.bf16.mxu0 0
  %2430 = vmatpush1.bf16.msra.mxu0 %v2415
  %2431 = vmatprep.subr.bf16.mxu0 0
  %2432 = vmatpush1.bf16.msra.mxu0 %v2416
  %2433 = vmatprep.subr.bf16.mxu0 0
  %2434 = vmatpush1.bf16.msra.mxu0 %v2417
  %2435 = vmatprep.subr.bf16.mxu0 0
  %2436 = vmatpush1.bf16.msra.mxu0 %v2418
  %2437 = vmatprep.subr.bf16.mxu0 0
  %2438 = vmatpush1.bf16.msra.mxu0 0
  %2439 = vmatprep.subr.bf16.mxu0 0
  %2440 = vmatpush1.bf16.msra.mxu0 0
  %2441 = vmatprep.subr.bf16.mxu0 0
  %2442 = vmatpush1.bf16.msra.mxu0 0
  %2443 = vmatprep.subr.bf16.mxu0 0
  %2444 = vmatpush1.bf16.msra.mxu0 0
  %2445 = vmatprep.subr.bf16.mxu0 0
  %2446 = vmatpush1.bf16.msra.mxu0 0
  %2447 = vmatprep.subr.bf16.mxu0 0
  %2448 = vmatpush1.bf16.msra.mxu0 0
  %2449 = vmatprep.subr.bf16.mxu0 0
  %2450 = vmatpush1.bf16.msra.mxu0 0
  %2451 = vmatprep.subr.bf16.mxu0 0
  %2452 = vmatpush1.bf16.msra.mxu0 0
  %2453 = vmatprep.subr.bf16.mxu0 0
  %2454 = vmatpush1.bf16.msra.mxu0 0
  %2455 = vmatprep.subr.bf16.mxu0 0
  %2456 = vmatpush1.bf16.msra.mxu0 0
  %2457 = vmatprep.subr.bf16.mxu0 0
  %2458 = vmatpush1.bf16.msra.mxu0 0
  %2459 = vmatprep.subr.bf16.mxu0 0
  %2460 = vmatpush1.bf16.msra.mxu0 0
  %2461 = vmatprep.mubr.bf16.mxu0 0
  %2462 = vmatmul.mubr.bf16.gmra.mrb[0].mxu0 %v2424
  %v2463 = vpop.f32.mrb[0].mxu0
  %v2464 = vadd.f32 %v2397, %v2463
  %v2465 = vpop.f32.mrb[0].mxu0
  %v2466 = vpop.f32.mrb[0].mxu0
  %v2467 = vadd.f32 %v2397, %v2466
  %v2468 = vpop.f32.mrb[0].mxu0
  %2469 = vmatprep.mubr.bf16.mxu0 0
  %2470 = vmatmul.mubr.bf16.gmra.mrb[0].mxu0 %v2427
  %v2471 = vpop.f32.mrb[0].mxu0
  %v2472 = vadd.f32 %v2397, %v2471
  %v2473 = vpop.f32.mrb[0].mxu0
  %v2474 = vpop.f32.mrb[0].mxu0
  %v2475 = vpop.f32.mrb[0].mxu0
  %2476 = vdwg.mxu0
  %vm2477 = vcmp.gt.f32.partialorder %v2464, 0.0
  %vm2478 = vcmp.gt.f32.partialorder %v2467, 0.0
  %vm2479 = vcmp.gt.f32.partialorder %v2472, 0.0
  %v2480 = vmul.f32 %v2464, 0.1
  %v2481 = vmul.f32 %v2467, 0.1
  %v2482 = vmul.f32 %v2472, 0.1
  %v2483 = vsel %vm2477, %v2464, %v2480
  %v2484 = vsel %vm2478, %v2467, %v2481
  %v2485 = vsel %vm2479, %v2472, %v2482
  %v2486 = vpack.c.bf16 %v2484, %v2483
  %v2487 = vpack.c.bf16 %v2485, %v2485
  %v2488 = vld [vmem:[%s15] sm:$0xff]
  %v2489 = vld [vmem:[%s15 + $0x8] sm:$0xff]
  %v2490 = vld [vmem:[%s15 + $0x10] sm:$0xff]
  %v2491 = vld [vmem:[%s15 + $0x18] sm:$0xff]
  %v2492 = vld [vmem:[%s15 + $0x20] sm:$0xff]
  %v2493 = vld [vmem:[%s15 + $0x28] sm:$0xff]
  %v2494 = vld [vmem:[%s15 + $0x30] sm:$0xff]
  %v2495 = vld [vmem:[%s15 + $0x38] sm:$0xff]
  %v2496 = vld [vmem:[%s15 + $0x40] sm:$0xff]
  %v2497 = vld [vmem:[%s15 + $0x48] sm:$0xff]
  %v2498 = vld [vmem:[%s15 + $0x50] sm:$0xff]
  %v2499 = vld [vmem:[%s15 + $0x58] sm:$0xff]
  %v2500 = vld [vmem:[%s15 + $0x60] sm:$0xff]
  %v2501 = vld [vmem:[%s15 + $0x68] sm:$0xff]
  %v2502 = vld [vmem:[%s15 + $0x70] sm:$0xff]
  %v2503 = vld [vmem:[%s15 + $0x78] sm:$0xff]
  %v2504 = vld [vmem:[%s16] sm:$0x3]
  %v2506 = vlaneseq
  %v2507 = vshrl.u32 %v2506, 7
  %v2508 = vsub.s32 0, %v2507
  %v2509 = vrot.slane %v2504, %v2508
  %v2510 = vlaneseq
  %v2511 = vshrl.u32 %v2510, 7
  %v2512 = vsub.s32 1, %v2511
  %v2513 = vrot.slane %v2504, %v2512
  %v2532 = vunpack.c.l.b16 %v2488
  %v2533 = vunpack.c.h.b16 %v2488
  %v2534 = vunpack.c.l.b16 %v2489
  %v2535 = vunpack.c.h.b16 %v2489
  %v2536 = vunpack.c.l.b16 %v2490
  %v2537 = vunpack.c.h.b16 %v2490
  %v2538 = vunpack.c.l.b16 %v2491
  %v2539 = vunpack.c.h.b16 %v2491
  %v2540 = vunpack.c.l.b16 %v2492
  %v2541 = vunpack.c.h.b16 %v2492
  %v2542 = vunpack.c.l.b16 %v2493
  %v2543 = vunpack.c.h.b16 %v2493
  %v2544 = vunpack.c.l.b16 %v2494
  %v2545 = vunpack.c.h.b16 %v2494
  %v2546 = vunpack.c.l.b16 %v2495
  %v2547 = vunpack.c.h.b16 %v2495
  %v2548 = vunpack.c.l.b16 %v2496
  %v2549 = vunpack.c.h.b16 %v2496
  %v2550 = vunpack.c.l.b16 %v2497
  %v2551 = vunpack.c.h.b16 %v2497
  %v2552 = vunpack.c.l.b16 %v2498
  %v2553 = vunpack.c.h.b16 %v2498
  %v2554 = vunpack.c.l.b16 %v2499
  %v2555 = vunpack.c.h.b16 %v2499
  %v2556 = vunpack.c.l.b16 %v2500
  %v2557 = vunpack.c.h.b16 %v2500
  %v2558 = vunpack.c.l.b16 %v2501
  %v2559 = vunpack.c.h.b16 %v2501
  %v2560 = vunpack.c.l.b16 %v2502
  %v2561 = vunpack.c.h.b16 %v2502
  %v2562 = vunpack.c.l.b16 %v2503
  %v2563 = vunpack.c.h.b16 %v2503
  %v2564 = vpack.c.b16 %v2534, %v2532
  %v2565 = vpack.c.b16 %v2535, %v2533
  %v2566 = vpack.c.b16 %v2538, %v2536
  %v2567 = vpack.c.b16 %v2539, %v2537
  %v2568 = vpack.c.b16 %v2542, %v2540
  %v2569 = vpack.c.b16 %v2543, %v2541
  %v2570 = vpack.c.b16 %v2546, %v2544
  %v2571 = vpack.c.b16 %v2547, %v2545
  %v2572 = vpack.c.b16 %v2550, %v2548
  %v2573 = vpack.c.b16 %v2551, %v2549
  %v2574 = vpack.c.b16 %v2554, %v2552
  %v2575 = vpack.c.b16 %v2555, %v2553
  %v2576 = vpack.c.b16 %v2558, %v2556
  %v2577 = vpack.c.b16 %v2559, %v2557
  %v2578 = vpack.c.b16 %v2562, %v2560
  %v2579 = vpack.c.b16 %v2563, %v2561
  %2596 = vmatprep.subr.bf16.mxu0 %v2565
  %2597 = vmatpush1.bf16.msra.mxu0 %v2564
  %2598 = vmatprep.subr.bf16.mxu0 %v2567
  %2599 = vmatpush1.bf16.msra.mxu0 %v2566
  %2600 = vmatprep.subr.bf16.mxu0 %v2569
  %2601 = vmatpush1.bf16.msra.mxu0 %v2568
  %2602 = vmatprep.subr.bf16.mxu0 %v2571
  %2603 = vmatpush1.bf16.msra.mxu0 %v2570
  %2604 = vmatprep.subr.bf16.mxu0 %v2573
  %2605 = vmatpush1.bf16.msra.mxu0 %v2572
  %2606 = vmatprep.subr.bf16.mxu0 %v2575
  %2607 = vmatpush1.bf16.msra.mxu0 %v2574
  %2608 = vmatprep.subr.bf16.mxu0 %v2577
  %2609 = vmatpush1.bf16.msra.mxu0 %v2576
  %2610 = vmatprep.subr.bf16.mxu0 %v2579
  %2611 = vmatpush1.bf16.msra.mxu0 %v2578
  %2612 = vmatprep.subr.bf16.mxu0 0
  %2613 = vmatpush1.bf16.msra.mxu0 0
  %2614 = vmatprep.subr.bf16.mxu0 0
  %2615 = vmatpush1.bf16.msra.mxu0 0
  %2616 = vmatprep.subr.bf16.mxu0 0
  %2617 = vmatpush1.bf16.msra.mxu0 0
  %2618 = vmatprep.subr.bf16.mxu0 0
  %2619 = vmatpush1.bf16.msra.mxu0 0
  %2620 = vmatprep.subr.bf16.mxu0 0
  %2621 = vmatpush1.bf16.msra.mxu0 0
  %2622 = vmatprep.subr.bf16.mxu0 0
  %2623 = vmatpush1.bf16.msra.mxu0 0
  %2624 = vmatprep.subr.bf16.mxu0 0
  %2625 = vmatpush1.bf16.msra.mxu0 0
  %2626 = vmatprep.subr.bf16.mxu0 0
  %2627 = vmatpush1.bf16.msra.mxu0 0
  %2628 = vmatprep.mubr.bf16.mxu0 0
  %2629 = vmatmul.mubr.bf16.gmra.mrb[0].mxu0 %v2486
  %v2630 = vpop.f32.mrb[0].mxu0
  %v2631 = vadd.f32 %v2509, %v2630
  %v2632 = vpop.f32.mrb[0].mxu0
  %v2633 = vadd.f32 %v2513, %v2632
  %v2634 = vpop.f32.mrb[0].mxu0
  %v2635 = vadd.f32 %v2509, %v2634
  %v2636 = vpop.f32.mrb[0].mxu0
  %v2637 = vadd.f32 %v2513, %v2636
  %2638 = vmatprep.mubr.bf16.mxu0 0
  %2639 = vmatmul.mubr.bf16.gmra.mrb[0].mxu0 %v2487
  %v2640 = vpop.f32.mrb[0].mxu0
  %v2641 = vadd.f32 %v2509, %v2640
  %v2642 = vpop.f32.mrb[0].mxu0
  %v2643 = vadd.f32 %v2513, %v2642
  %v2644 = vpop.f32.mrb[0].mxu0
  %v2645 = vpop.f32.mrb[0].mxu0
  %2646 = vdwg.mxu0
  %vm2647 = vcmp.gt.f32.partialorder %v2631, 0.0
  %vm2648 = vcmp.gt.f32.partialorder %v2633, 0.0
  %vm2649 = vcmp.gt.f32.partialorder %v2635, 0.0
  %vm2650 = vcmp.gt.f32.partialorder %v2637, 0.0
  %vm2651 = vcmp.gt.f32.partialorder %v2641, 0.0
  %vm2652 = vcmp.gt.f32.partialorder %v2643, 0.0
  %v2653 = vmul.f32 %v2631, 0.1
  %v2654 = vmul.f32 %v2633, 0.1
  %v2655 = vmul.f32 %v2635, 0.1
  %v2656 = vmul.f32 %v2637, 0.1
  %v2657 = vmul.f32 %v2641, 0.1
  %v2658 = vmul.f32 %v2643, 0.1
  %v2659 = vsel %vm2647, %v2631, %v2653
  %v2660 = vsel %vm2648, %v2633, %v2654
  %v2661 = vsel %vm2649, %v2635, %v2655
  %v2662 = vsel %vm2650, %v2637, %v2656
  %v2663 = vsel %vm2651, %v2641, %v2657
  %v2664 = vsel %vm2652, %v2643, %v2658
  %v2665 = vpack.c.bf16 %v2661, %v2659
  %v2666 = vpack.c.bf16 %v2662, %v2660
  %v2667 = vpack.c.bf16 %v2663, %v2663
  %v2668 = vpack.c.bf16 %v2664, %v2664
  %v2669 = vld [vmem:[%s17] sm:$0xff]
  %v2670 = vld [vmem:[%s17 + $0x8] sm:$0xff]
  %v2671 = vld [vmem:[%s17 + $0x10] sm:$0xff]
  %v2672 = vld [vmem:[%s17 + $0x18] sm:$0xff]
  %v2673 = vld [vmem:[%s17 + $0x20] sm:$0xff]
  %v2674 = vld [vmem:[%s17 + $0x28] sm:$0xff]
  %v2675 = vld [vmem:[%s17 + $0x30] sm:$0xf]
  %v2676 = vld [vmem:[%s17 + $0x34] sm:$0xff]
  %v2677 = vld [vmem:[%s17 + $0x3c] sm:$0xff]
  %v2678 = vld [vmem:[%s17 + $0x44] sm:$0xff]
  %v2679 = vld [vmem:[%s17 + $0x4c] sm:$0xff]
  %v2680 = vld [vmem:[%s17 + $0x54] sm:$0xff]
  %v2681 = vld [vmem:[%s17 + $0x5c] sm:$0xff]
  %v2682 = vld [vmem:[%s17 + $0x64] sm:$0xf]
  %v2683 = vld [vmem:[%s17 + $0x68] sm:$0xff]
  %v2684 = vld [vmem:[%s17 + $0x70] sm:$0xff]
  %v2685 = vld [vmem:[%s17 + $0x78] sm:$0xff]
  %v2686 = vld [vmem:[%s17 + $0x80] sm:$0xff]
  %v2687 = vld [vmem:[%s17 + $0x88] sm:$0xff]
  %v2688 = vld [vmem:[%s17 + $0x90] sm:$0xff]
  %v2689 = vld [vmem:[%s17 + $0x98] sm:$0xf]
  %v2690 = vld [vmem:[%s17 + $0x9c] sm:$0xff]
  %v2691 = vld [vmem:[%s17 + $0xa4] sm:$0xff]
  %v2692 = vld [vmem:[%s17 + $0xac] sm:$0xff]
  %v2693 = vld [vmem:[%s17 + $0xb4] sm:$0xff]
  %v2694 = vld [vmem:[%s17 + $0xbc] sm:$0xff]
  %v2695 = vld [vmem:[%s17 + $0xc4] sm:$0xff]
  %v2696 = vld [vmem:[%s17 + $0xcc] sm:$0xf]
  %v2697 = vld [vmem:[%s17 + $0xd0] sm:$0xff]
  %v2698 = vld [vmem:[%s17 + $0xd8] sm:$0xff]
  %v2699 = vld [vmem:[%s17 + $0xe0] sm:$0xff]
  %v2700 = vld [vmem:[%s17 + $0xe8] sm:$0xff]
  %v2701 = vld [vmem:[%s17 + $0xf0] sm:$0xff]
  %v2702 = vld [vmem:[%s17 + $0xf8] sm:$0xff]
  %v2703 = vld [vmem:[%s17 + $0x100] sm:$0xf]
  %v2704 = vld [vmem:[%s17 + $0x104] sm:$0xff]
  %v2705 = vld [vmem:[%s17 + $0x10c] sm:$0xff]
  %v2706 = vld [vmem:[%s17 + $0x114] sm:$0xff]
  %v2707 = vld [vmem:[%s17 + $0x11c] sm:$0xff]
  %v2708 = vld [vmem:[%s17 + $0x124] sm:$0xff]
  %v2709 = vld [vmem:[%s17 + $0x12c] sm:$0xff]
  %v2710 = vld [vmem:[%s17 + $0x134] sm:$0xf]
  %v2711 = vld [vmem:[%s17 + $0x138] sm:$0xff]
  %v2712 = vld [vmem:[%s17 + $0x140] sm:$0xff]
  %v2713 = vld [vmem:[%s17 + $0x148] sm:$0xff]
  %v2714 = vld [vmem:[%s17 + $0x150] sm:$0xff]
  %v2715 = vld [vmem:[%s17 + $0x158] sm:$0xff]
  %v2716 = vld [vmem:[%s17 + $0x160] sm:$0xff]
  %v2717 = vld [vmem:[%s17 + $0x168] sm:$0xf]
  %v2718 = vld [vmem:[%s17 + $0x16c] sm:$0xff]
  %v2719 = vld [vmem:[%s17 + $0x174] sm:$0xff]
  %v2720 = vld [vmem:[%s17 + $0x17c] sm:$0xff]
  %v2721 = vld [vmem:[%s17 + $0x184] sm:$0xff]
  %v2722 = vld [vmem:[%s17 + $0x18c] sm:$0xff]
  %v2723 = vld [vmem:[%s17 + $0x194] sm:$0xff]
  %v2724 = vld [vmem:[%s17 + $0x19c] sm:$0xf]
  %v2725 = vld [vmem:[%s17 + $0x1a0] sm:$0xff]
  %v2726 = vld [vmem:[%s17 + $0x1a8] sm:$0xff]
  %v2727 = vld [vmem:[%s17 + $0x1b0] sm:$0xff]
  %v2728 = vld [vmem:[%s17 + $0x1b8] sm:$0xff]
  %v2729 = vld [vmem:[%s17 + $0x1c0] sm:$0xff]
  %v2730 = vld [vmem:[%s17 + $0x1c8] sm:$0xff]
  %v2731 = vld [vmem:[%s17 + $0x1d0] sm:$0xf]
  %v2732 = vld [vmem:[%s17 + $0x1d4] sm:$0xff]
  %v2733 = vld [vmem:[%s17 + $0x1dc] sm:$0xff]
  %v2734 = vld [vmem:[%s17 + $0x1e4] sm:$0xff]
  %v2735 = vld [vmem:[%s17 + $0x1ec] sm:$0xff]
  %v2736 = vld [vmem:[%s17 + $0x1f4] sm:$0xff]
  %v2737 = vld [vmem:[%s17 + $0x1fc] sm:$0xff]
  %v2738 = vld [vmem:[%s17 + $0x204] sm:$0xf]
  %v2739 = vld [vmem:[%s17 + $0x208] sm:$0xff]
  %v2740 = vld [vmem:[%s17 + $0x210] sm:$0xff]
  %v2741 = vld [vmem:[%s17 + $0x218] sm:$0xff]
  %v2742 = vld [vmem:[%s17 + $0x220] sm:$0xff]
  %v2743 = vld [vmem:[%s17 + $0x228] sm:$0xff]
  %v2744 = vld [vmem:[%s17 + $0x230] sm:$0xff]
  %v2745 = vld [vmem:[%s17 + $0x238] sm:$0xf]
  %v2746 = vld [vmem:[%s17 + $0x23c] sm:$0xff]
  %v2747 = vld [vmem:[%s17 + $0x244] sm:$0xff]
  %v2748 = vld [vmem:[%s17 + $0x24c] sm:$0xff]
  %v2749 = vld [vmem:[%s17 + $0x254] sm:$0xff]
  %v2750 = vld [vmem:[%s17 + $0x25c] sm:$0xff]
  %v2751 = vld [vmem:[%s17 + $0x264] sm:$0xff]
  %v2752 = vld [vmem:[%s17 + $0x26c] sm:$0xf]
  %v2753 = vld [vmem:[%s17 + $0x270] sm:$0xff]
  %v2754 = vld [vmem:[%s17 + $0x278] sm:$0xff]
  %v2755 = vld [vmem:[%s17 + $0x280] sm:$0xff]
  %v2756 = vld [vmem:[%s17 + $0x288] sm:$0xff]
  %v2757 = vld [vmem:[%s17 + $0x290] sm:$0xff]
  %v2758 = vld [vmem:[%s17 + $0x298] sm:$0xff]
  %v2759 = vld [vmem:[%s17 + $0x2a0] sm:$0xf]
  %v2760 = vld [vmem:[%s17 + $0x2a4] sm:$0xff]
  %v2761 = vld [vmem:[%s17 + $0x2ac] sm:$0xff]
  %v2762 = vld [vmem:[%s17 + $0x2b4] sm:$0xff]
  %v2763 = vld [vmem:[%s17 + $0x2bc] sm:$0xff]
  %v2764 = vld [vmem:[%s17 + $0x2c4] sm:$0xff]
  %v2765 = vld [vmem:[%s17 + $0x2cc] sm:$0xff]
  %v2766 = vld [vmem:[%s17 + $0x2d4] sm:$0xf]
  %v2767 = vld [vmem:[%s17 + $0x2d8] sm:$0xff]
  %v2768 = vld [vmem:[%s17 + $0x2e0] sm:$0xff]
  %v2769 = vld [vmem:[%s17 + $0x2e8] sm:$0xff]
  %v2770 = vld [vmem:[%s17 + $0x2f0] sm:$0xff]
  %v2771 = vld [vmem:[%s17 + $0x2f8] sm:$0xff]
  %v2772 = vld [vmem:[%s17 + $0x300] sm:$0xff]
  %v2773 = vld [vmem:[%s17 + $0x308] sm:$0xf]
  %v2774 = vld [vmem:[%s17 + $0x30c] sm:$0xff]
  %v2775 = vld [vmem:[%s17 + $0x314] sm:$0xff]
  %v2776 = vld [vmem:[%s17 + $0x31c] sm:$0xff]
  %v2777 = vld [vmem:[%s17 + $0x324] sm:$0xff]
  %v2778 = vld [vmem:[%s17 + $0x32c] sm:$0xff]
  %v2779 = vld [vmem:[%s17 + $0x334] sm:$0xff]
  %v2780 = vld [vmem:[%s17 + $0x33c] sm:$0xf]
  %v2781 = vld [vmem:[%s17 + $0x340] sm:$0xff]
  %v2782 = vld [vmem:[%s17 + $0x348] sm:$0xff]
  %v2783 = vld [vmem:[%s17 + $0x350] sm:$0xff]
  %v2784 = vld [vmem:[%s17 + $0x358] sm:$0xff]
  %v2785 = vld [vmem:[%s17 + $0x360] sm:$0xff]
  %v2786 = vld [vmem:[%s17 + $0x368] sm:$0xff]
  %v2787 = vld [vmem:[%s17 + $0x370] sm:$0xf]
  %v2788 = vld [vmem:[%s17 + $0x374] sm:$0xff]
  %v2789 = vld [vmem:[%s17 + $0x37c] sm:$0xff]
  %v2790 = vld [vmem:[%s17 + $0x384] sm:$0xff]
  %v2791 = vld [vmem:[%s17 + $0x38c] sm:$0xff]
  %v2792 = vld [vmem:[%s17 + $0x394] sm:$0xff]
  %v2793 = vld [vmem:[%s17 + $0x39c] sm:$0xff]
  %v2794 = vld [vmem:[%s17 + $0x3a4] sm:$0xf]
  %v2795 = vld [vmem:[%s17 + $0x3a8] sm:$0xff]
  %v2796 = vld [vmem:[%s17 + $0x3b0] sm:$0xff]
  %v2797 = vld [vmem:[%s17 + $0x3b8] sm:$0xff]
  %v2798 = vld [vmem:[%s17 + $0x3c0] sm:$0xff]
  %v2799 = vld [vmem:[%s17 + $0x3c8] sm:$0xff]
  %v2800 = vld [vmem:[%s17 + $0x3d0] sm:$0xff]
  %v2801 = vld [vmem:[%s17 + $0x3d8] sm:$0xf]
  %v2802 = vld [vmem:[%s17 + $0x3dc] sm:$0xff]
  %v2803 = vld [vmem:[%s17 + $0x3e4] sm:$0xff]
  %v2804 = vld [vmem:[%s17 + $0x3ec] sm:$0xff]
  %v2805 = vld [vmem:[%s17 + $0x3f4] sm:$0xff]
  %v2806 = vld [vmem:[%s17 + $0x3fc] sm:$0xff]
  %v2807 = vld [vmem:[%s17 + $0x404] sm:$0xff]
  %v2808 = vld [vmem:[%s17 + $0x40c] sm:$0xf]
  %v2809 = vld [vmem:[%s17 + $0x410] sm:$0xff]
  %v2810 = vld [vmem:[%s17 + $0x418] sm:$0xff]
  %v2811 = vld [vmem:[%s17 + $0x420] sm:$0xff]
  %v2812 = vld [vmem:[%s17 + $0x428] sm:$0xff]
  %v2813 = vld [vmem:[%s17 + $0x430] sm:$0xff]
  %v2814 = vld [vmem:[%s17 + $0x438] sm:$0xff]
  %v2815 = vld [vmem:[%s17 + $0x440] sm:$0xf]
  %v2816 = vld [vmem:[%s17 + $0x444] sm:$0xff]
  %v2817 = vld [vmem:[%s17 + $0x44c] sm:$0xff]
  %v2818 = vld [vmem:[%s17 + $0x454] sm:$0xff]
  %v2819 = vld [vmem:[%s17 + $0x45c] sm:$0xff]
  %v2820 = vld [vmem:[%s17 + $0x464] sm:$0xff]
  %v2821 = vld [vmem:[%s17 + $0x46c] sm:$0xff]
  %v2822 = vld [vmem:[%s17 + $0x474] sm:$0xf]
  %v2823 = vld [vmem:[%s17 + $0x478] sm:$0xff]
  %v2824 = vld [vmem:[%s17 + $0x480] sm:$0xff]
  %v2825 = vld [vmem:[%s17 + $0x488] sm:$0xff]
  %v2826 = vld [vmem:[%s17 + $0x490] sm:$0xff]
  %v2827 = vld [vmem:[%s17 + $0x498] sm:$0xff]
  %v2828 = vld [vmem:[%s17 + $0x4a0] sm:$0xff]
  %v2829 = vld [vmem:[%s17 + $0x4a8] sm:$0xf]
  %v2830 = vld [vmem:[%s17 + $0x4ac] sm:$0xff]
  %v2831 = vld [vmem:[%s17 + $0x4b4] sm:$0xff]
  %v2832 = vld [vmem:[%s17 + $0x4bc] sm:$0xff]
  %v2833 = vld [vmem:[%s17 + $0x4c4] sm:$0xff]
  %v2834 = vld [vmem:[%s17 + $0x4cc] sm:$0xff]
  %v2835 = vld [vmem:[%s17 + $0x4d4] sm:$0xff]
  %v2836 = vld [vmem:[%s17 + $0x4dc] sm:$0xf]
  %v2837 = vld [vmem:[%s17 + $0x4e0] sm:$0xff]
  %v2838 = vld [vmem:[%s17 + $0x4e8] sm:$0xff]
  %v2839 = vld [vmem:[%s17 + $0x4f0] sm:$0xff]
  %v2840 = vld [vmem:[%s17 + $0x4f8] sm:$0xff]
  %v2841 = vld [vmem:[%s17 + $0x500] sm:$0xff]
  %v2842 = vld [vmem:[%s17 + $0x508] sm:$0xff]
  %v2843 = vld [vmem:[%s17 + $0x510] sm:$0xf]
  %v2844 = vld [vmem:[%s17 + $0x514] sm:$0xff]
  %v2845 = vld [vmem:[%s17 + $0x51c] sm:$0xff]
  %v2846 = vld [vmem:[%s17 + $0x524] sm:$0xff]
  %v2847 = vld [vmem:[%s17 + $0x52c] sm:$0xff]
  %v2848 = vld [vmem:[%s17 + $0x534] sm:$0xff]
  %v2849 = vld [vmem:[%s17 + $0x53c] sm:$0xff]
  %v2850 = vld [vmem:[%s17 + $0x544] sm:$0xf]
  %v2851 = vld [vmem:[%s17 + $0x548] sm:$0xff]
  %v2852 = vld [vmem:[%s17 + $0x550] sm:$0xff]
  %v2853 = vld [vmem:[%s17 + $0x558] sm:$0xff]
  %v2854 = vld [vmem:[%s17 + $0x560] sm:$0xff]
  %v2855 = vld [vmem:[%s17 + $0x568] sm:$0xff]
  %v2856 = vld [vmem:[%s17 + $0x570] sm:$0xff]
  %v2857 = vld [vmem:[%s17 + $0x578] sm:$0xf]
  %v2858 = vld [vmem:[%s17 + $0x57c] sm:$0xff]
  %v2859 = vld [vmem:[%s17 + $0x584] sm:$0xff]
  %v2860 = vld [vmem:[%s17 + $0x58c] sm:$0xff]
  %v2861 = vld [vmem:[%s17 + $0x594] sm:$0xff]
  %v2862 = vld [vmem:[%s17 + $0x59c] sm:$0xff]
  %v2863 = vld [vmem:[%s17 + $0x5a4] sm:$0xff]
  %v2864 = vld [vmem:[%s17 + $0x5ac] sm:$0xf]
  %v2865 = vld [vmem:[%s17 + $0x5b0] sm:$0xff]
  %v2866 = vld [vmem:[%s17 + $0x5b8] sm:$0xff]
  %v2867 = vld [vmem:[%s17 + $0x5c0] sm:$0xff]
  %v2868 = vld [vmem:[%s17 + $0x5c8] sm:$0xff]
  %v2869 = vld [vmem:[%s17 + $0x5d0] sm:$0xff]
  %v2870 = vld [vmem:[%s17 + $0x5d8] sm:$0xff]
  %v2871 = vld [vmem:[%s17 + $0x5e0] sm:$0xf]
  %v2872 = vld [vmem:[%s17 + $0x5e4] sm:$0xff]
  %v2873 = vld [vmem:[%s17 + $0x5ec] sm:$0xff]
  %v2874 = vld [vmem:[%s17 + $0x5f4] sm:$0xff]
  %v2875 = vld [vmem:[%s17 + $0x5fc] sm:$0xff]
  %v2876 = vld [vmem:[%s17 + $0x604] sm:$0xff]
  %v2877 = vld [vmem:[%s17 + $0x60c] sm:$0xff]
  %v2878 = vld [vmem:[%s17 + $0x614] sm:$0xf]
  %v2879 = vld [vmem:[%s17 + $0x618] sm:$0xff]
  %v2880 = vld [vmem:[%s17 + $0x620] sm:$0xff]
  %v2881 = vld [vmem:[%s17 + $0x628] sm:$0xff]
  %v2882 = vld [vmem:[%s17 + $0x630] sm:$0xff]
  %v2883 = vld [vmem:[%s17 + $0x638] sm:$0xff]
  %v2884 = vld [vmem:[%s17 + $0x640] sm:$0xff]
  %v2885 = vld [vmem:[%s17 + $0x648] sm:$0xf]
  %v2886 = vld [vmem:[%s17 + $0x64c] sm:$0xff]
  %v2887 = vld [vmem:[%s17 + $0x654] sm:$0xff]
  %v2888 = vld [vmem:[%s17 + $0x65c] sm:$0xff]
  %v2889 = vld [vmem:[%s17 + $0x664] sm:$0xff]
  %v2890 = vld [vmem:[%s17 + $0x66c] sm:$0xff]
  %v2891 = vld [vmem:[%s17 + $0x674] sm:$0xff]
  %v2892 = vld [vmem:[%s17 + $0x67c] sm:$0xf]
  %v2893 = vld [vmem:[%s18] sm:$0xff]
  %v2894 = vld [vmem:[%s18 + $0x8] sm:$0x1f]
  %v2897 = vlaneseq
  %v2898 = vshrl.u32 %v2897, 7
  %v2899 = vsub.s32 0, %v2898
  %v2900 = vrot.slane %v2893, %v2899
  %v2901 = vlaneseq
  %v2902 = vshrl.u32 %v2901, 7
  %v2903 = vsub.s32 1, %v2902
  %v2904 = vrot.slane %v2893, %v2903
  %v2905 = vlaneseq
  %v2906 = vshrl.u32 %v2905, 7
  %v2907 = vsub.s32 2, %v2906
  %v2908 = vrot.slane %v2893, %v2907
  %v2909 = vlaneseq
  %v2910 = vshrl.u32 %v2909, 7
  %v2911 = vsub.s32 3, %v2910
  %v2912 = vrot.slane %v2893, %v2911
  %v2913 = vlaneseq
  %v2914 = vshrl.u32 %v2913, 7
  %v2915 = vsub.s32 4, %v2914
  %v2916 = vrot.slane %v2893, %v2915
  %v2917 = vlaneseq
  %v2918 = vshrl.u32 %v2917, 7
  %v2919 = vsub.s32 5, %v2918
  %v2920 = vrot.slane %v2893, %v2919
  %v2921 = vlaneseq
  %v2922 = vshrl.u32 %v2921, 7
  %v2923 = vsub.s32 6, %v2922
  %v2924 = vrot.slane %v2893, %v2923
  %v2925 = vlaneseq
  %v2926 = vshrl.u32 %v2925, 7
  %v2927 = vsub.s32 7, %v2926
  %v2928 = vrot.slane %v2893, %v2927
  %v2929 = vlaneseq
  %v2930 = vshrl.u32 %v2929, 7
  %v2931 = vsub.s32 0, %v2930
  %v2932 = vrot.slane %v2894, %v2931
  %v2933 = vlaneseq
  %v2934 = vshrl.u32 %v2933, 7
  %v2935 = vsub.s32 1, %v2934
  %v2936 = vrot.slane %v2894, %v2935
  %v2937 = vlaneseq
  %v2938 = vshrl.u32 %v2937, 7
  %v2939 = vsub.s32 2, %v2938
  %v2940 = vrot.slane %v2894, %v2939
  %v2941 = vlaneseq
  %v2942 = vshrl.u32 %v2941, 7
  %v2943 = vsub.s32 3, %v2942
  %v2944 = vrot.slane %v2894, %v2943
  %v2945 = vlaneseq
  %v2946 = vshrl.u32 %v2945, 7
  %v2947 = vsub.s32 4, %v2946
  %v2948 = vrot.slane %v2894, %v2947
  %v3186 = vunpack.c.l.b16 %v2669
  %v3187 = vunpack.c.h.b16 %v2669
  %v3188 = vunpack.c.l.b16 %v2670
  %v3189 = vunpack.c.h.b16 %v2670
  %v3190 = vunpack.c.l.b16 %v2671
  %v3191 = vunpack.c.h.b16 %v2671
  %v3192 = vunpack.c.l.b16 %v2672
  %v3193 = vunpack.c.h.b16 %v2672
  %v3194 = vunpack.c.l.b16 %v2673
  %v3195 = vunpack.c.h.b16 %v2673
  %v3196 = vunpack.c.l.b16 %v2674
  %v3197 = vunpack.c.h.b16 %v2674
  %v3198 = vunpack.c.l.b16 %v2675
  %v3199 = vunpack.c.l.b16 %v2676
  %v3200 = vunpack.c.h.b16 %v2676
  %v3201 = vunpack.c.l.b16 %v2677
  %v3202 = vunpack.c.h.b16 %v2677
  %v3203 = vunpack.c.l.b16 %v2678
  %v3204 = vunpack.c.h.b16 %v2678
  %v3205 = vunpack.c.l.b16 %v2679
  %v3206 = vunpack.c.h.b16 %v2679
  %v3207 = vunpack.c.l.b16 %v2680
  %v3208 = vunpack.c.h.b16 %v2680
  %v3209 = vunpack.c.l.b16 %v2681
  %v3210 = vunpack.c.h.b16 %v2681
  %v3211 = vunpack.c.l.b16 %v2682
  %v3212 = vunpack.c.l.b16 %v2683
  %v3213 = vunpack.c.h.b16 %v2683
  %v3214 = vunpack.c.l.b16 %v2684
  %v3215 = vunpack.c.h.b16 %v2684
  %v3216 = vunpack.c.l.b16 %v2685
  %v3217 = vunpack.c.h.b16 %v2685
  %v3218 = vunpack.c.l.b16 %v2686
  %v3219 = vunpack.c.h.b16 %v2686
  %v3220 = vunpack.c.l.b16 %v2687
  %v3221 = vunpack.c.h.b16 %v2687
  %v3222 = vunpack.c.l.b16 %v2688
  %v3223 = vunpack.c.h.b16 %v2688
  %v3224 = vunpack.c.l.b16 %v2689
  %v3225 = vunpack.c.l.b16 %v2690
  %v3226 = vunpack.c.h.b16 %v2690
  %v3227 = vunpack.c.l.b16 %v2691
  %v3228 = vunpack.c.h.b16 %v2691
  %v3229 = vunpack.c.l.b16 %v2692
  %v3230 = vunpack.c.h.b16 %v2692
  %v3231 = vunpack.c.l.b16 %v2693
  %v3232 = vunpack.c.h.b16 %v2693
  %v3233 = vunpack.c.l.b16 %v2694
  %v3234 = vunpack.c.h.b16 %v2694
  %v3235 = vunpack.c.l.b16 %v2695
  %v3236 = vunpack.c.h.b16 %v2695
  %v3237 = vunpack.c.l.b16 %v2696
  %v3238 = vunpack.c.l.b16 %v2697
  %v3239 = vunpack.c.h.b16 %v2697
  %v3240 = vunpack.c.l.b16 %v2698
  %v3241 = vunpack.c.h.b16 %v2698
  %v3242 = vunpack.c.l.b16 %v2699
  %v3243 = vunpack.c.h.b16 %v2699
  %v3244 = vunpack.c.l.b16 %v2700
  %v3245 = vunpack.c.h.b16 %v2700
  %v3246 = vunpack.c.l.b16 %v2701
  %v3247 = vunpack.c.h.b16 %v2701
  %v3248 = vunpack.c.l.b16 %v2702
  %v3249 = vunpack.c.h.b16 %v2702
  %v3250 = vunpack.c.l.b16 %v2703
  %v3251 = vunpack.c.l.b16 %v2704
  %v3252 = vunpack.c.h.b16 %v2704
  %v3253 = vunpack.c.l.b16 %v2705
  %v3254 = vunpack.c.h.b16 %v2705
  %v3255 = vunpack.c.l.b16 %v2706
  %v3256 = vunpack.c.h.b16 %v2706
  %v3257 = vunpack.c.l.b16 %v2707
  %v3258 = vunpack.c.h.b16 %v2707
  %v3259 = vunpack.c.l.b16 %v2708
  %v3260 = vunpack.c.h.b16 %v2708
  %v3261 = vunpack.c.l.b16 %v2709
  %v3262 = vunpack.c.h.b16 %v2709
  %v3263 = vunpack.c.l.b16 %v2710
  %v3264 = vunpack.c.l.b16 %v2711
  %v3265 = vunpack.c.h.b16 %v2711
  %v3266 = vunpack.c.l.b16 %v2712
  %v3267 = vunpack.c.h.b16 %v2712
  %v3268 = vunpack.c.l.b16 %v2713
  %v3269 = vunpack.c.h.b16 %v2713
  %v3270 = vunpack.c.l.b16 %v2714
  %v3271 = vunpack.c.h.b16 %v2714
  %v3272 = vunpack.c.l.b16 %v2715
  %v3273 = vunpack.c.h.b16 %v2715
  %v3274 = vunpack.c.l.b16 %v2716
  %v3275 = vunpack.c.h.b16 %v2716
  %v3276 = vunpack.c.l.b16 %v2717
  %v3277 = vunpack.c.l.b16 %v2718
  %v3278 = vunpack.c.h.b16 %v2718
  %v3279 = vunpack.c.l.b16 %v2719
  %v3280 = vunpack.c.h.b16 %v2719
  %v3281 = vunpack.c.l.b16 %v2720
  %v3282 = vunpack.c.h.b16 %v2720
  %v3283 = vunpack.c.l.b16 %v2721
  %v3284 = vunpack.c.h.b16 %v2721
  %v3285 = vunpack.c.l.b16 %v2722
  %v3286 = vunpack.c.h.b16 %v2722
  %v3287 = vunpack.c.l.b16 %v2723
  %v3288 = vunpack.c.h.b16 %v2723
  %v3289 = vunpack.c.l.b16 %v2724
  %v3290 = vunpack.c.l.b16 %v2725
  %v3291 = vunpack.c.h.b16 %v2725
  %v3292 = vunpack.c.l.b16 %v2726
  %v3293 = vunpack.c.h.b16 %v2726
  %v3294 = vunpack.c.l.b16 %v2727
  %v3295 = vunpack.c.h.b16 %v2727
  %v3296 = vunpack.c.l.b16 %v2728
  %v3297 = vunpack.c.h.b16 %v2728
  %v3298 = vunpack.c.l.b16 %v2729
  %v3299 = vunpack.c.h.b16 %v2729
  %v3300 = vunpack.c.l.b16 %v2730
  %v3301 = vunpack.c.h.b16 %v2730
  %v3302 = vunpack.c.l.b16 %v2731
  %v3303 = vunpack.c.l.b16 %v2732
  %v3304 = vunpack.c.h.b16 %v2732
  %v3305 = vunpack.c.l.b16 %v2733
  %v3306 = vunpack.c.h.b16 %v2733
  %v3307 = vunpack.c.l.b16 %v2734
  %v3308 = vunpack.c.h.b16 %v2734
  %v3309 = vunpack.c.l.b16 %v2735
  %v3310 = vunpack.c.h.b16 %v2735
  %v3311 = vunpack.c.l.b16 %v2736
  %v3312 = vunpack.c.h.b16 %v2736
  %v3313 = vunpack.c.l.b16 %v2737
  %v3314 = vunpack.c.h.b16 %v2737
  %v3315 = vunpack.c.l.b16 %v2738
  %v3316 = vunpack.c.l.b16 %v2739
  %v3317 = vunpack.c.h.b16 %v2739
  %v3318 = vunpack.c.l.b16 %v2740
  %v3319 = vunpack.c.h.b16 %v2740
  %v3320 = vunpack.c.l.b16 %v2741
  %v3321 = vunpack.c.h.b16 %v2741
  %v3322 = vunpack.c.l.b16 %v2742
  %v3323 = vunpack.c.h.b16 %v2742
  %v3324 = vunpack.c.l.b16 %v2743
  %v3325 = vunpack.c.h.b16 %v2743
  %v3326 = vunpack.c.l.b16 %v2744
  %v3327 = vunpack.c.h.b16 %v2744
  %v3328 = vunpack.c.l.b16 %v2745
  %v3329 = vunpack.c.l.b16 %v2746
  %v3330 = vunpack.c.h.b16 %v2746
  %v3331 = vunpack.c.l.b16 %v2747
  %v3332 = vunpack.c.h.b16 %v2747
  %v3333 = vunpack.c.l.b16 %v2748
  %v3334 = vunpack.c.h.b16 %v2748
  %v3335 = vunpack.c.l.b16 %v2749
  %v3336 = vunpack.c.h.b16 %v2749
  %v3337 = vunpack.c.l.b16 %v2750
  %v3338 = vunpack.c.h.b16 %v2750
  %v3339 = vunpack.c.l.b16 %v2751
  %v3340 = vunpack.c.h.b16 %v2751
  %v3341 = vunpack.c.l.b16 %v2752
  %v3342 = vunpack.c.l.b16 %v2753
  %v3343 = vunpack.c.h.b16 %v2753
  %v3344 = vunpack.c.l.b16 %v2754
  %v3345 = vunpack.c.h.b16 %v2754
  %v3346 = vunpack.c.l.b16 %v2755
  %v3347 = vunpack.c.h.b16 %v2755
  %v3348 = vunpack.c.l.b16 %v2756
  %v3349 = vunpack.c.h.b16 %v2756
  %v3350 = vunpack.c.l.b16 %v2757
  %v3351 = vunpack.c.h.b16 %v2757
  %v3352 = vunpack.c.l.b16 %v2758
  %v3353 = vunpack.c.h.b16 %v2758
  %v3354 = vunpack.c.l.b16 %v2759
  %v3355 = vunpack.c.l.b16 %v2760
  %v3356 = vunpack.c.h.b16 %v2760
  %v3357 = vunpack.c.l.b16 %v2761
  %v3358 = vunpack.c.h.b16 %v2761
  %v3359 = vunpack.c.l.b16 %v2762
  %v3360 = vunpack.c.h.b16 %v2762
  %v3361 = vunpack.c.l.b16 %v2763
  %v3362 = vunpack.c.h.b16 %v2763
  %v3363 = vunpack.c.l.b16 %v2764
  %v3364 = vunpack.c.h.b16 %v2764
  %v3365 = vunpack.c.l.b16 %v2765
  %v3366 = vunpack.c.h.b16 %v2765
  %v3367 = vunpack.c.l.b16 %v2766
  %v3368 = vunpack.c.l.b16 %v2767
  %v3369 = vunpack.c.h.b16 %v2767
  %v3370 = vunpack.c.l.b16 %v2768
  %v3371 = vunpack.c.h.b16 %v2768
  %v3372 = vunpack.c.l.b16 %v2769
  %v3373 = vunpack.c.h.b16 %v2769
  %v3374 = vunpack.c.l.b16 %v2770
  %v3375 = vunpack.c.h.b16 %v2770
  %v3376 = vunpack.c.l.b16 %v2771
  %v3377 = vunpack.c.h.b16 %v2771
  %v3378 = vunpack.c.l.b16 %v2772
  %v3379 = vunpack.c.h.b16 %v2772
  %v3380 = vunpack.c.l.b16 %v2773
  %v3381 = vunpack.c.l.b16 %v2774
  %v3382 = vunpack.c.h.b16 %v2774
  %v3383 = vunpack.c.l.b16 %v2775
  %v3384 = vunpack.c.h.b16 %v2775
  %v3385 = vunpack.c.l.b16 %v2776
  %v3386 = vunpack.c.h.b16 %v2776
  %v3387 = vunpack.c.l.b16 %v2777
  %v3388 = vunpack.c.h.b16 %v2777
  %v3389 = vunpack.c.l.b16 %v2778
  %v3390 = vunpack.c.h.b16 %v2778
  %v3391 = vunpack.c.l.b16 %v2779
  %v3392 = vunpack.c.h.b16 %v2779
  %v3393 = vunpack.c.l.b16 %v2780
  %v3394 = vunpack.c.l.b16 %v2781
  %v3395 = vunpack.c.h.b16 %v2781
  %v3396 = vunpack.c.l.b16 %v2782
  %v3397 = vunpack.c.h.b16 %v2782
  %v3398 = vunpack.c.l.b16 %v2783
  %v3399 = vunpack.c.h.b16 %v2783
  %v3400 = vunpack.c.l.b16 %v2784
  %v3401 = vunpack.c.h.b16 %v2784
  %v3402 = vunpack.c.l.b16 %v2785
  %v3403 = vunpack.c.h.b16 %v2785
  %v3404 = vunpack.c.l.b16 %v2786
  %v3405 = vunpack.c.h.b16 %v2786
  %v3406 = vunpack.c.l.b16 %v2787
  %v3407 = vunpack.c.l.b16 %v2788
  %v3408 = vunpack.c.h.b16 %v2788
  %v3409 = vunpack.c.l.b16 %v2789
  %v3410 = vunpack.c.h.b16 %v2789
  %v3411 = vunpack.c.l.b16 %v2790
  %v3412 = vunpack.c.h.b16 %v2790
  %v3413 = vunpack.c.l.b16 %v2791
  %v3414 = vunpack.c.h.b16 %v2791
  %v3415 = vunpack.c.l.b16 %v2792
  %v3416 = vunpack.c.h.b16 %v2792
  %v3417 = vunpack.c.l.b16 %v2793
  %v3418 = vunpack.c.h.b16 %v2793
  %v3419 = vunpack.c.l.b16 %v2794
  %v3420 = vunpack.c.l.b16 %v2795
  %v3421 = vunpack.c.h.b16 %v2795
  %v3422 = vunpack.c.l.b16 %v2796
  %v3423 = vunpack.c.h.b16 %v2796
  %v3424 = vunpack.c.l.b16 %v2797
  %v3425 = vunpack.c.h.b16 %v2797
  %v3426 = vunpack.c.l.b16 %v2798
  %v3427 = vunpack.c.h.b16 %v2798
  %v3428 = vunpack.c.l.b16 %v2799
  %v3429 = vunpack.c.h.b16 %v2799
  %v3430 = vunpack.c.l.b16 %v2800
  %v3431 = vunpack.c.h.b16 %v2800
  %v3432 = vunpack.c.l.b16 %v2801
  %v3433 = vunpack.c.l.b16 %v2802
  %v3434 = vunpack.c.h.b16 %v2802
  %v3435 = vunpack.c.l.b16 %v2803
  %v3436 = vunpack.c.h.b16 %v2803
  %v3437 = vunpack.c.l.b16 %v2804
  %v3438 = vunpack.c.h.b16 %v2804
  %v3439 = vunpack.c.l.b16 %v2805
  %v3440 = vunpack.c.h.b16 %v2805
  %v3441 = vunpack.c.l.b16 %v2806
  %v3442 = vunpack.c.h.b16 %v2806
  %v3443 = vunpack.c.l.b16 %v2807
  %v3444 = vunpack.c.h.b16 %v2807
  %v3445 = vunpack.c.l.b16 %v2808
  %v3446 = vunpack.c.l.b16 %v2809
  %v3447 = vunpack.c.h.b16 %v2809
  %v3448 = vunpack.c.l.b16 %v2810
  %v3449 = vunpack.c.h.b16 %v2810
  %v3450 = vunpack.c.l.b16 %v2811
  %v3451 = vunpack.c.h.b16 %v2811
  %v3452 = vunpack.c.l.b16 %v2812
  %v3453 = vunpack.c.h.b16 %v2812
  %v3454 = vunpack.c.l.b16 %v2813
  %v3455 = vunpack.c.h.b16 %v2813
  %v3456 = vunpack.c.l.b16 %v2814
  %v3457 = vunpack.c.h.b16 %v2814
  %v3458 = vunpack.c.l.b16 %v2815
  %v3459 = vunpack.c.l.b16 %v2816
  %v3460 = vunpack.c.h.b16 %v2816
  %v3461 = vunpack.c.l.b16 %v2817
  %v3462 = vunpack.c.h.b16 %v2817
  %v3463 = vunpack.c.l.b16 %v2818
  %v3464 = vunpack.c.h.b16 %v2818
  %v3465 = vunpack.c.l.b16 %v2819
  %v3466 = vunpack.c.h.b16 %v2819
  %v3467 = vunpack.c.l.b16 %v2820
  %v3468 = vunpack.c.h.b16 %v2820
  %v3469 = vunpack.c.l.b16 %v2821
  %v3470 = vunpack.c.h.b16 %v2821
  %v3471 = vunpack.c.l.b16 %v2822
  %v3472 = vunpack.c.l.b16 %v2823
  %v3473 = vunpack.c.h.b16 %v2823
  %v3474 = vunpack.c.l.b16 %v2824
  %v3475 = vunpack.c.h.b16 %v2824
  %v3476 = vunpack.c.l.b16 %v2825
  %v3477 = vunpack.c.h.b16 %v2825
  %v3478 = vunpack.c.l.b16 %v2826
  %v3479 = vunpack.c.h.b16 %v2826
  %v3480 = vunpack.c.l.b16 %v2827
  %v3481 = vunpack.c.h.b16 %v2827
  %v3482 = vunpack.c.l.b16 %v2828
  %v3483 = vunpack.c.h.b16 %v2828
  %v3484 = vunpack.c.l.b16 %v2829
  %v3485 = vunpack.c.l.b16 %v2830
  %v3486 = vunpack.c.h.b16 %v2830
  %v3487 = vunpack.c.l.b16 %v2831
  %v3488 = vunpack.c.h.b16 %v2831
  %v3489 = vunpack.c.l.b16 %v2832
  %v3490 = vunpack.c.h.b16 %v2832
  %v3491 = vunpack.c.l.b16 %v2833
  %v3492 = vunpack.c.h.b16 %v2833
  %v3493 = vunpack.c.l.b16 %v2834
  %v3494 = vunpack.c.h.b16 %v2834
  %v3495 = vunpack.c.l.b16 %v2835
  %v3496 = vunpack.c.h.b16 %v2835
  %v3497 = vunpack.c.l.b16 %v2836
  %v3498 = vunpack.c.l.b16 %v2837
  %v3499 = vunpack.c.h.b16 %v2837
  %v3500 = vunpack.c.l.b16 %v2838
  %v3501 = vunpack.c.h.b16 %v2838
  %v3502 = vunpack.c.l.b16 %v2839
  %v3503 = vunpack.c.h.b16 %v2839
  %v3504 = vunpack.c.l.b16 %v2840
  %v3505 = vunpack.c.h.b16 %v2840
  %v3506 = vunpack.c.l.b16 %v2841
  %v3507 = vunpack.c.h.b16 %v2841
  %v3508 = vunpack.c.l.b16 %v2842
  %v3509 = vunpack.c.h.b16 %v2842
  %v3510 = vunpack.c.l.b16 %v2843
  %v3511 = vunpack.c.l.b16 %v2844
  %v3512 = vunpack.c.h.b16 %v2844
  %v3513 = vunpack.c.l.b16 %v2845
  %v3514 = vunpack.c.h.b16 %v2845
  %v3515 = vunpack.c.l.b16 %v2846
  %v3516 = vunpack.c.h.b16 %v2846
  %v3517 = vunpack.c.l.b16 %v2847
  %v3518 = vunpack.c.h.b16 %v2847
  %v3519 = vunpack.c.l.b16 %v2848
  %v3520 = vunpack.c.h.b16 %v2848
  %v3521 = vunpack.c.l.b16 %v2849
  %v3522 = vunpack.c.h.b16 %v2849
  %v3523 = vunpack.c.l.b16 %v2850
  %v3524 = vunpack.c.l.b16 %v2851
  %v3525 = vunpack.c.h.b16 %v2851
  %v3526 = vunpack.c.l.b16 %v2852
  %v3527 = vunpack.c.h.b16 %v2852
  %v3528 = vunpack.c.l.b16 %v2853
  %v3529 = vunpack.c.h.b16 %v2853
  %v3530 = vunpack.c.l.b16 %v2854
  %v3531 = vunpack.c.h.b16 %v2854
  %v3532 = vunpack.c.l.b16 %v2855
  %v3533 = vunpack.c.h.b16 %v2855
  %v3534 = vunpack.c.l.b16 %v2856
  %v3535 = vunpack.c.h.b16 %v2856
  %v3536 = vunpack.c.l.b16 %v2857
  %v3537 = vunpack.c.l.b16 %v2858
  %v3538 = vunpack.c.h.b16 %v2858
  %v3539 = vunpack.c.l.b16 %v2859
  %v3540 = vunpack.c.h.b16 %v2859
  %v3541 = vunpack.c.l.b16 %v2860
  %v3542 = vunpack.c.h.b16 %v2860
  %v3543 = vunpack.c.l.b16 %v2861
  %v3544 = vunpack.c.h.b16 %v2861
  %v3545 = vunpack.c.l.b16 %v2862
  %v3546 = vunpack.c.h.b16 %v2862
  %v3547 = vunpack.c.l.b16 %v2863
  %v3548 = vunpack.c.h.b16 %v2863
  %v3549 = vunpack.c.l.b16 %v2864
  %v3550 = vunpack.c.l.b16 %v2865
  %v3551 = vunpack.c.h.b16 %v2865
  %v3552 = vunpack.c.l.b16 %v2866
  %v3553 = vunpack.c.h.b16 %v2866
  %v3554 = vunpack.c.l.b16 %v2867
  %v3555 = vunpack.c.h.b16 %v2867
  %v3556 = vunpack.c.l.b16 %v2868
  %v3557 = vunpack.c.h.b16 %v2868
  %v3558 = vunpack.c.l.b16 %v2869
  %v3559 = vunpack.c.h.b16 %v2869
  %v3560 = vunpack.c.l.b16 %v2870
  %v3561 = vunpack.c.h.b16 %v2870
  %v3562 = vunpack.c.l.b16 %v2871
  %v3563 = vunpack.c.l.b16 %v2872
  %v3564 = vunpack.c.h.b16 %v2872
  %v3565 = vunpack.c.l.b16 %v2873
  %v3566 = vunpack.c.h.b16 %v2873
  %v3567 = vunpack.c.l.b16 %v2874
  %v3568 = vunpack.c.h.b16 %v2874
  %v3569 = vunpack.c.l.b16 %v2875
  %v3570 = vunpack.c.h.b16 %v2875
  %v3571 = vunpack.c.l.b16 %v2876
  %v3572 = vunpack.c.h.b16 %v2876
  %v3573 = vunpack.c.l.b16 %v2877
  %v3574 = vunpack.c.h.b16 %v2877
  %v3575 = vunpack.c.l.b16 %v2878
  %v3576 = vunpack.c.l.b16 %v2879
  %v3577 = vunpack.c.h.b16 %v2879
  %v3578 = vunpack.c.l.b16 %v2880
  %v3579 = vunpack.c.h.b16 %v2880
  %v3580 = vunpack.c.l.b16 %v2881
  %v3581 = vunpack.c.h.b16 %v2881
  %v3582 = vunpack.c.l.b16 %v2882
  %v3583 = vunpack.c.h.b16 %v2882
  %v3584 = vunpack.c.l.b16 %v2883
  %v3585 = vunpack.c.h.b16 %v2883
  %v3586 = vunpack.c.l.b16 %v2884
  %v3587 = vunpack.c.h.b16 %v2884
  %v3588 = vunpack.c.l.b16 %v2885
  %v3589 = vunpack.c.l.b16 %v2886
  %v3590 = vunpack.c.h.b16 %v2886
  %v3591 = vunpack.c.l.b16 %v2887
  %v3592 = vunpack.c.h.b16 %v2887
  %v3593 = vunpack.c.l.b16 %v2888
  %v3594 = vunpack.c.h.b16 %v2888
  %v3595 = vunpack.c.l.b16 %v2889
  %v3596 = vunpack.c.h.b16 %v2889
  %v3597 = vunpack.c.l.b16 %v2890
  %v3598 = vunpack.c.h.b16 %v2890
  %v3599 = vunpack.c.l.b16 %v2891
  %v3600 = vunpack.c.h.b16 %v2891
  %v3601 = vunpack.c.l.b16 %v2892
  %v3602 = vpack.c.b16 %v3199, %v3186
  %v3603 = vpack.c.b16 %v3200, %v3187
  %v3604 = vpack.c.b16 %v3201, %v3188
  %v3605 = vpack.c.b16 %v3202, %v3189
  %v3606 = vpack.c.b16 %v3203, %v3190
  %v3607 = vpack.c.b16 %v3204, %v3191
  %v3608 = vpack.c.b16 %v3205, %v3192
  %v3609 = vpack.c.b16 %v3206, %v3193
  %v3610 = vpack.c.b16 %v3207, %v3194
  %v3611 = vpack.c.b16 %v3208, %v3195
  %v3612 = vpack.c.b16 %v3209, %v3196
  %v3613 = vpack.c.b16 %v3210, %v3197
  %v3614 = vpack.c.b16 %v3211, %v3198
  %v3615 = vpack.c.b16 %v3225, %v3212
  %v3616 = vpack.c.b16 %v3226, %v3213
  %v3617 = vpack.c.b16 %v3227, %v3214
  %v3618 = vpack.c.b16 %v3228, %v3215
  %v3619 = vpack.c.b16 %v3229, %v3216
  %v3620 = vpack.c.b16 %v3230, %v3217
  %v3621 = vpack.c.b16 %v3231, %v3218
  %v3622 = vpack.c.b16 %v3232, %v3219
  %v3623 = vpack.c.b16 %v3233, %v3220
  %v3624 = vpack.c.b16 %v3234, %v3221
  %v3625 = vpack.c.b16 %v3235, %v3222
  %v3626 = vpack.c.b16 %v3236, %v3223
  %v3627 = vpack.c.b16 %v3237, %v3224
  %v3628 = vpack.c.b16 %v3251, %v3238
  %v3629 = vpack.c.b16 %v3252, %v3239
  %v3630 = vpack.c.b16 %v3253, %v3240
  %v3631 = vpack.c.b16 %v3254, %v3241
  %v3632 = vpack.c.b16 %v3255, %v3242
  %v3633 = vpack.c.b16 %v3256, %v3243
  %v3634 = vpack.c.b16 %v3257, %v3244
  %v3635 = vpack.c.b16 %v3258, %v3245
  %v3636 = vpack.c.b16 %v3259, %v3246
  %v3637 = vpack.c.b16 %v3260, %v3247
  %v3638 = vpack.c.b16 %v3261, %v3248
  %v3639 = vpack.c.b16 %v3262, %v3249
  %v3640 = vpack.c.b16 %v3263, %v3250
  %v3641 = vpack.c.b16 %v3277, %v3264
  %v3642 = vpack.c.b16 %v3278, %v3265
  %v3643 = vpack.c.b16 %v3279, %v3266
  %v3644 = vpack.c.b16 %v3280, %v3267
  %v3645 = vpack.c.b16 %v3281, %v3268
  %v3646 = vpack.c.b16 %v3282, %v3269
  %v3647 = vpack.c.b16 %v3283, %v3270
  %v3648 = vpack.c.b16 %v3284, %v3271
  %v3649 = vpack.c.b16 %v3285, %v3272
  %v3650 = vpack.c.b16 %v3286, %v3273
  %v3651 = vpack.c.b16 %v3287, %v3274
  %v3652 = vpack.c.b16 %v3288, %v3275
  %v3653 = vpack.c.b16 %v3289, %v3276
  %v3654 = vpack.c.b16 %v3303, %v3290
  %v3655 = vpack.c.b16 %v3304, %v3291
  %v3656 = vpack.c.b16 %v3305, %v3292
  %v3657 = vpack.c.b16 %v3306, %v3293
  %v3658 = vpack.c.b16 %v3307, %v3294
  %v3659 = vpack.c.b16 %v3308, %v3295
  %v3660 = vpack.c.b16 %v3309, %v3296
  %v3661 = vpack.c.b16 %v3310, %v3297
  %v3662 = vpack.c.b16 %v3311, %v3298
  %v3663 = vpack.c.b16 %v3312, %v3299
  %v3664 = vpack.c.b16 %v3313, %v3300
  %v3665 = vpack.c.b16 %v3314, %v3301
  %v3666 = vpack.c.b16 %v3315, %v3302
  %v3667 = vpack.c.b16 %v3329, %v3316
  %v3668 = vpack.c.b16 %v3330, %v3317
  %v3669 = vpack.c.b16 %v3331, %v3318
  %v3670 = vpack.c.b16 %v3332, %v3319
  %v3671 = vpack.c.b16 %v3333, %v3320
  %v3672 = vpack.c.b16 %v3334, %v3321
  %v3673 = vpack.c.b16 %v3335, %v3322
  %v3674 = vpack.c.b16 %v3336, %v3323
  %v3675 = vpack.c.b16 %v3337, %v3324
  %v3676 = vpack.c.b16 %v3338, %v3325
  %v3677 = vpack.c.b16 %v3339, %v3326
  %v3678 = vpack.c.b16 %v3340, %v3327
  %v3679 = vpack.c.b16 %v3341, %v3328
  %v3680 = vpack.c.b16 %v3355, %v3342
  %v3681 = vpack.c.b16 %v3356, %v3343
  %v3682 = vpack.c.b16 %v3357, %v3344
  %v3683 = vpack.c.b16 %v3358, %v3345
  %v3684 = vpack.c.b16 %v3359, %v3346
  %v3685 = vpack.c.b16 %v3360, %v3347
  %v3686 = vpack.c.b16 %v3361, %v3348
  %v3687 = vpack.c.b16 %v3362, %v3349
  %v3688 = vpack.c.b16 %v3363, %v3350
  %v3689 = vpack.c.b16 %v3364, %v3351
  %v3690 = vpack.c.b16 %v3365, %v3352
  %v3691 = vpack.c.b16 %v3366, %v3353
  %v3692 = vpack.c.b16 %v3367, %v3354
  %v3693 = vpack.c.b16 %v3381, %v3368
  %v3694 = vpack.c.b16 %v3382, %v3369
  %v3695 = vpack.c.b16 %v3383, %v3370
  %v3696 = vpack.c.b16 %v3384, %v3371
  %v3697 = vpack.c.b16 %v3385, %v3372
  %v3698 = vpack.c.b16 %v3386, %v3373
  %v3699 = vpack.c.b16 %v3387, %v3374
  %v3700 = vpack.c.b16 %v3388, %v3375
  %v3701 = vpack.c.b16 %v3389, %v3376
  %v3702 = vpack.c.b16 %v3390, %v3377
  %v3703 = vpack.c.b16 %v3391, %v3378
  %v3704 = vpack.c.b16 %v3392, %v3379
  %v3705 = vpack.c.b16 %v3393, %v3380
  %v3706 = vpack.c.b16 %v3407, %v3394
  %v3707 = vpack.c.b16 %v3408, %v3395
  %v3708 = vpack.c.b16 %v3409, %v3396
  %v3709 = vpack.c.b16 %v3410, %v3397
  %v3710 = vpack.c.b16 %v3411, %v3398
  %v3711 = vpack.c.b16 %v3412, %v3399
  %v3712 = vpack.c.b16 %v3413, %v3400
  %v3713 = vpack.c.b16 %v3414, %v3401
  %v3714 = vpack.c.b16 %v3415, %v3402
  %v3715 = vpack.c.b16 %v3416, %v3403
  %v3716 = vpack.c.b16 %v3417, %v3404
  %v3717 = vpack.c.b16 %v3418, %v3405
  %v3718 = vpack.c.b16 %v3419, %v3406
  %v3719 = vpack.c.b16 %v3433, %v3420
  %v3720 = vpack.c.b16 %v3434, %v3421
  %v3721 = vpack.c.b16 %v3435, %v3422
  %v3722 = vpack.c.b16 %v3436, %v3423
  %v3723 = vpack.c.b16 %v3437, %v3424
  %v3724 = vpack.c.b16 %v3438, %v3425
  %v3725 = vpack.c.b16 %v3439, %v3426
  %v3726 = vpack.c.b16 %v3440, %v3427
  %v3727 = vpack.c.b16 %v3441, %v3428
  %v3728 = vpack.c.b16 %v3442, %v3429
  %v3729 = vpack.c.b16 %v3443, %v3430
  %v3730 = vpack.c.b16 %v3444, %v3431
  %v3731 = vpack.c.b16 %v3445, %v3432
  %v3732 = vpack.c.b16 %v3459, %v3446
  %v3733 = vpack.c.b16 %v3460, %v3447
  %v3734 = vpack.c.b16 %v3461, %v3448
  %v3735 = vpack.c.b16 %v3462, %v3449
  %v3736 = vpack.c.b16 %v3463, %v3450
  %v3737 = vpack.c.b16 %v3464, %v3451
  %v3738 = vpack.c.b16 %v3465, %v3452
  %v3739 = vpack.c.b16 %v3466, %v3453
  %v3740 = vpack.c.b16 %v3467, %v3454
  %v3741 = vpack.c.b16 %v3468, %v3455
  %v3742 = vpack.c.b16 %v3469, %v3456
  %v3743 = vpack.c.b16 %v3470, %v3457
  %v3744 = vpack.c.b16 %v3471, %v3458
  %v3745 = vpack.c.b16 %v3485, %v3472
  %v3746 = vpack.c.b16 %v3486, %v3473
  %v3747 = vpack.c.b16 %v3487, %v3474
  %v3748 = vpack.c.b16 %v3488, %v3475
  %v3749 = vpack.c.b16 %v3489, %v3476
  %v3750 = vpack.c.b16 %v3490, %v3477
  %v3751 = vpack.c.b16 %v3491, %v3478
  %v3752 = vpack.c.b16 %v3492, %v3479
  %v3753 = vpack.c.b16 %v3493, %v3480
  %v3754 = vpack.c.b16 %v3494, %v3481
  %v3755 = vpack.c.b16 %v3495, %v3482
  %v3756 = vpack.c.b16 %v3496, %v3483
  %v3757 = vpack.c.b16 %v3497, %v3484
  %v3758 = vpack.c.b16 %v3511, %v3498
  %v3759 = vpack.c.b16 %v3512, %v3499
  %v3760 = vpack.c.b16 %v3513, %v3500
  %v3761 = vpack.c.b16 %v3514, %v3501
  %v3762 = vpack.c.b16 %v3515, %v3502
  %v3763 = vpack.c.b16 %v3516, %v3503
  %v3764 = vpack.c.b16 %v3517, %v3504
  %v3765 = vpack.c.b16 %v3518, %v3505
  %v3766 = vpack.c.b16 %v3519, %v3506
  %v3767 = vpack.c.b16 %v3520, %v3507
  %v3768 = vpack.c.b16 %v3521, %v3508
  %v3769 = vpack.c.b16 %v3522, %v3509
  %v3770 = vpack.c.b16 %v3523, %v3510
  %v3771 = vpack.c.b16 %v3537, %v3524
  %v3772 = vpack.c.b16 %v3538, %v3525
  %v3773 = vpack.c.b16 %v3539, %v3526
  %v3774 = vpack.c.b16 %v3540, %v3527
  %v3775 = vpack.c.b16 %v3541, %v3528
  %v3776 = vpack.c.b16 %v3542, %v3529
  %v3777 = vpack.c.b16 %v3543, %v3530
  %v3778 = vpack.c.b16 %v3544, %v3531
  %v3779 = vpack.c.b16 %v3545, %v3532
  %v3780 = vpack.c.b16 %v3546, %v3533
  %v3781 = vpack.c.b16 %v3547, %v3534
  %v3782 = vpack.c.b16 %v3548, %v3535
  %v3783 = vpack.c.b16 %v3549, %v3536
  %v3784 = vpack.c.b16 %v3563, %v3550
  %v3785 = vpack.c.b16 %v3564, %v3551
  %v3786 = vpack.c.b16 %v3565, %v3552
  %v3787 = vpack.c.b16 %v3566, %v3553
  %v3788 = vpack.c.b16 %v3567, %v3554
  %v3789 = vpack.c.b16 %v3568, %v3555
  %v3790 = vpack.c.b16 %v3569, %v3556
  %v3791 = vpack.c.b16 %v3570, %v3557
  %v3792 = vpack.c.b16 %v3571, %v3558
  %v3793 = vpack.c.b16 %v3572, %v3559
  %v3794 = vpack.c.b16 %v3573, %v3560
  %v3795 = vpack.c.b16 %v3574, %v3561
  %v3796 = vpack.c.b16 %v3575, %v3562
  %v3797 = vpack.c.b16 %v3589, %v3576
  %v3798 = vpack.c.b16 %v3590, %v3577
  %v3799 = vpack.c.b16 %v3591, %v3578
  %v3800 = vpack.c.b16 %v3592, %v3579
  %v3801 = vpack.c.b16 %v3593, %v3580
  %v3802 = vpack.c.b16 %v3594, %v3581
  %v3803 = vpack.c.b16 %v3595, %v3582
  %v3804 = vpack.c.b16 %v3596, %v3583
  %v3805 = vpack.c.b16 %v3597, %v3584
  %v3806 = vpack.c.b16 %v3598, %v3585
  %v3807 = vpack.c.b16 %v3599, %v3586
  %v3808 = vpack.c.b16 %v3600, %v3587
  %v3809 = vpack.c.b16 %v3601, %v3588
  %4018 = vmatprep.subr.bf16.mxu0 %v3603
  %4019 = vmatpush1.bf16.msra.mxu0 %v3602
  %4020 = vmatprep.subr.bf16.mxu0 %v3616
  %4021 = vmatpush1.bf16.msra.mxu0 %v3615
  %4022 = vmatprep.subr.bf16.mxu0 %v3629
  %4023 = vmatpush1.bf16.msra.mxu0 %v3628
  %4024 = vmatprep.subr.bf16.mxu0 %v3642
  %4025 = vmatpush1.bf16.msra.mxu0 %v3641
  %4026 = vmatprep.subr.bf16.mxu0 %v3655
  %4027 = vmatpush1.bf16.msra.mxu0 %v3654
  %4028 = vmatprep.subr.bf16.mxu0 %v3668
  %4029 = vmatpush1.bf16.msra.mxu0 %v3667
  %4030 = vmatprep.subr.bf16.mxu0 %v3681
  %4031 = vmatpush1.bf16.msra.mxu0 %v3680
  %4032 = vmatprep.subr.bf16.mxu0 %v3694
  %4033 = vmatpush1.bf16.msra.mxu0 %v3693
  %4034 = vmatprep.subr.bf16.mxu0 %v3707
  %4035 = vmatpush1.bf16.msra.mxu0 %v3706
  %4036 = vmatprep.subr.bf16.mxu0 %v3720
  %4037 = vmatpush1.bf16.msra.mxu0 %v3719
  %4038 = vmatprep.subr.bf16.mxu0 %v3733
  %4039 = vmatpush1.bf16.msra.mxu0 %v3732
  %4040 = vmatprep.subr.bf16.mxu0 %v3746
  %4041 = vmatpush1.bf16.msra.mxu0 %v3745
  %4042 = vmatprep.subr.bf16.mxu0 %v3759
  %4043 = vmatpush1.bf16.msra.mxu0 %v3758
  %4044 = vmatprep.subr.bf16.mxu0 %v3772
  %4045 = vmatpush1.bf16.msra.mxu0 %v3771
  %4046 = vmatprep.subr.bf16.mxu0 %v3785
  %4047 = vmatpush1.bf16.msra.mxu0 %v3784
  %4048 = vmatprep.subr.bf16.mxu0 %v3798
  %4049 = vmatpush1.bf16.msra.mxu0 %v3797
  %4050 = vmatprep.mubr.bf16.mxu0 %v2666
  %4051 = vmatmul.mubr.bf16.gmra.mrb[0].mxu0 %v2665
  %v4052 = vpop.f32.mrb[0].mxu0
  %v4053 = vadd.f32 %v2900, %v4052
  %v4054 = vpop.f32.mrb[0].mxu0
  %v4055 = vadd.f32 %v2904, %v4054
  %v4056 = vpop.f32.mrb[0].mxu0
  %v4057 = vadd.f32 %v2900, %v4056
  %v4058 = vpop.f32.mrb[0].mxu0
  %v4059 = vadd.f32 %v2904, %v4058
  %4060 = vmatprep.mubr.bf16.mxu0 %v2668
  %4061 = vmatmul.mubr.bf16.gmra.mrb[0].mxu0 %v2667
  %v4062 = vpop.f32.mrb[0].mxu0
  %v4063 = vadd.f32 %v2900, %v4062
  %v4064 = vpop.f32.mrb[0].mxu0
  %v4065 = vadd.f32 %v2904, %v4064
  %v4066 = vpop.f32.mrb[0].mxu0
  %v4067 = vpop.f32.mrb[0].mxu0
  %4068 = vdwg.mxu0
  %4069 = vmatprep.subr.bf16.mxu0 %v3605
  %4070 = vmatpush1.bf16.msra.mxu0 %v3604
  %4071 = vmatprep.subr.bf16.mxu0 %v3618
  %4072 = vmatpush1.bf16.msra.mxu0 %v3617
  %4073 = vmatprep.subr.bf16.mxu0 %v3631
  %4074 = vmatpush1.bf16.msra.mxu0 %v3630
  %4075 = vmatprep.subr.bf16.mxu0 %v3644
  %4076 = vmatpush1.bf16.msra.mxu0 %v3643
  %4077 = vmatprep.subr.bf16.mxu0 %v3657
  %4078 = vmatpush1.bf16.msra.mxu0 %v3656
  %4079 = vmatprep.subr.bf16.mxu0 %v3670
  %4080 = vmatpush1.bf16.msra.mxu0 %v3669
  %4081 = vmatprep.subr.bf16.mxu0 %v3683
  %4082 = vmatpush1.bf16.msra.mxu0 %v3682
  %4083 = vmatprep.subr.bf16.mxu0 %v3696
  %4084 = vmatpush1.bf16.msra.mxu0 %v3695
  %4085 = vmatprep.subr.bf16.mxu0 %v3709
  %4086 = vmatpush1.bf16.msra.mxu0 %v3708
  %4087 = vmatprep.subr.bf16.mxu0 %v3722
  %4088 = vmatpush1.bf16.msra.mxu0 %v3721
  %4089 = vmatprep.subr.bf16.mxu0 %v3735
  %4090 = vmatpush1.bf16.msra.mxu0 %v3734
  %4091 = vmatprep.subr.bf16.mxu0 %v3748
  %4092 = vmatpush1.bf16.msra.mxu0 %v3747
  %4093 = vmatprep.subr.bf16.mxu0 %v3761
  %4094 = vmatpush1.bf16.msra.mxu0 %v3760
  %4095 = vmatprep.subr.bf16.mxu0 %v3774
  %4096 = vmatpush1.bf16.msra.mxu0 %v3773
  %4097 = vmatprep.subr.bf16.mxu0 %v3787
  %4098 = vmatpush1.bf16.msra.mxu0 %v3786
  %4099 = vmatprep.subr.bf16.mxu0 %v3800
  %4100 = vmatpush1.bf16.msra.mxu0 %v3799
  %4101 = vmatprep.mubr.bf16.mxu0 %v2666
  %4102 = vmatmul.mubr.bf16.gmra.mrb[0].mxu0 %v2665
  %v4103 = vpop.f32.mrb[0].mxu0
  %v4104 = vadd.f32 %v2908, %v4103
  %v4105 = vpop.f32.mrb[0].mxu0
  %v4106 = vadd.f32 %v2912, %v4105
  %v4107 = vpop.f32.mrb[0].mxu0
  %v4108 = vadd.f32 %v2908, %v4107
  %v4109 = vpop.f32.mrb[0].mxu0
  %v4110 = vadd.f32 %v2912, %v4109
  %4111 = vmatprep.mubr.bf16.mxu0 %v2668
  %4112 = vmatmul.mubr.bf16.gmra.mrb[0].mxu0 %v2667
  %v4113 = vpop.f32.mrb[0].mxu0
  %v4114 = vadd.f32 %v2908, %v4113
  %v4115 = vpop.f32.mrb[0].mxu0
  %v4116 = vadd.f32 %v2912, %v4115
  %v4117 = vpop.f32.mrb[0].mxu0
  %v4118 = vpop.f32.mrb[0].mxu0
  %4119 = vdwg.mxu0
  %4120 = vmatprep.subr.bf16.mxu0 %v3607
  %4121 = vmatpush1.bf16.msra.mxu0 %v3606
  %4122 = vmatprep.subr.bf16.mxu0 %v3620
  %4123 = vmatpush1.bf16.msra.mxu0 %v3619
  %4124 = vmatprep.subr.bf16.mxu0 %v3633
  %4125 = vmatpush1.bf16.msra.mxu0 %v3632
  %4126 = vmatprep.subr.bf16.mxu0 %v3646
  %4127 = vmatpush1.bf16.msra.mxu0 %v3645
  %4128 = vmatprep.subr.bf16.mxu0 %v3659
  %4129 = vmatpush1.bf16.msra.mxu0 %v3658
  %4130 = vmatprep.subr.bf16.mxu0 %v3672
  %4131 = vmatpush1.bf16.msra.mxu0 %v3671
  %4132 = vmatprep.subr.bf16.mxu0 %v3685
  %4133 = vmatpush1.bf16.msra.mxu0 %v3684
  %4134 = vmatprep.subr.bf16.mxu0 %v3698
  %4135 = vmatpush1.bf16.msra.mxu0 %v3697
  %4136 = vmatprep.subr.bf16.mxu0 %v3711
  %4137 = vmatpush1.bf16.msra.mxu0 %v3710
  %4138 = vmatprep.subr.bf16.mxu0 %v3724
  %4139 = vmatpush1.bf16.msra.mxu0 %v3723
  %4140 = vmatprep.subr.bf16.mxu0 %v3737
  %4141 = vmatpush1.bf16.msra.mxu0 %v3736
  %4142 = vmatprep.subr.bf16.mxu0 %v3750
  %4143 = vmatpush1.bf16.msra.mxu0 %v3749
  %4144 = vmatprep.subr.bf16.mxu0 %v3763
  %4145 = vmatpush1.bf16.msra.mxu0 %v3762
  %4146 = vmatprep.subr.bf16.mxu0 %v3776
  %4147 = vmatpush1.bf16.msra.mxu0 %v3775
  %4148 = vmatprep.subr.bf16.mxu0 %v3789
  %4149 = vmatpush1.bf16.msra.mxu0 %v3788
  %4150 = vmatprep.subr.bf16.mxu0 %v3802
  %4151 = vmatpush1.bf16.msra.mxu0 %v3801
  %4152 = vmatprep.mubr.bf16.mxu0 %v2666
  %4153 = vmatmul.mubr.bf16.gmra.mrb[0].mxu0 %v2665
  %v4154 = vpop.f32.mrb[0].mxu0
  %v4155 = vadd.f32 %v2916, %v4154
  %v4156 = vpop.f32.mrb[0].mxu0
  %v4157 = vadd.f32 %v2920, %v4156
  %v4158 = vpop.f32.mrb[0].mxu0
  %v4159 = vadd.f32 %v2916, %v4158
  %v4160 = vpop.f32.mrb[0].mxu0
  %v4161 = vadd.f32 %v2920, %v4160
  %4162 = vmatprep.mubr.bf16.mxu0 %v2668
  %4163 = vmatmul.mubr.bf16.gmra.mrb[0].mxu0 %v2667
  %v4164 = vpop.f32.mrb[0].mxu0
  %v4165 = vadd.f32 %v2916, %v4164
  %v4166 = vpop.f32.mrb[0].mxu0
  %v4167 = vadd.f32 %v2920, %v4166
  %v4168 = vpop.f32.mrb[0].mxu0
  %v4169 = vpop.f32.mrb[0].mxu0
  %4170 = vdwg.mxu0
  %4171 = vmatprep.subr.bf16.mxu0 %v3609
  %4172 = vmatpush1.bf16.msra.mxu0 %v3608
  %4173 = vmatprep.subr.bf16.mxu0 %v3622
  %4174 = vmatpush1.bf16.msra.mxu0 %v3621
  %4175 = vmatprep.subr.bf16.mxu0 %v3635
  %4176 = vmatpush1.bf16.msra.mxu0 %v3634
  %4177 = vmatprep.subr.bf16.mxu0 %v3648
  %4178 = vmatpush1.bf16.msra.mxu0 %v3647
  %4179 = vmatprep.subr.bf16.mxu0 %v3661
  %4180 = vmatpush1.bf16.msra.mxu0 %v3660
  %4181 = vmatprep.subr.bf16.mxu0 %v3674
  %4182 = vmatpush1.bf16.msra.mxu0 %v3673
  %4183 = vmatprep.subr.bf16.mxu0 %v3687
  %4184 = vmatpush1.bf16.msra.mxu0 %v3686
  %4185 = vmatprep.subr.bf16.mxu0 %v3700
  %4186 = vmatpush1.bf16.msra.mxu0 %v3699
  %4187 = vmatprep.subr.bf16.mxu0 %v3713
  %4188 = vmatpush1.bf16.msra.mxu0 %v3712
  %4189 = vmatprep.subr.bf16.mxu0 %v3726
  %4190 = vmatpush1.bf16.msra.mxu0 %v3725
  %4191 = vmatprep.subr.bf16.mxu0 %v3739
  %4192 = vmatpush1.bf16.msra.mxu0 %v3738
  %4193 = vmatprep.subr.bf16.mxu0 %v3752
  %4194 = vmatpush1.bf16.msra.mxu0 %v3751
  %4195 = vmatprep.subr.bf16.mxu0 %v3765
  %4196 = vmatpush1.bf16.msra.mxu0 %v3764
  %4197 = vmatprep.subr.bf16.mxu0 %v3778
  %4198 = vmatpush1.bf16.msra.mxu0 %v3777
  %4199 = vmatprep.subr.bf16.mxu0 %v3791
  %4200 = vmatpush1.bf16.msra.mxu0 %v3790
  %4201 = vmatprep.subr.bf16.mxu0 %v3804
  %4202 = vmatpush1.bf16.msra.mxu0 %v3803
  %4203 = vmatprep.mubr.bf16.mxu0 %v2666
  %4204 = vmatmul.mubr.bf16.gmra.mrb[0].mxu0 %v2665
  %v4205 = vpop.f32.mrb[0].mxu0
  %v4206 = vadd.f32 %v2924, %v4205
  %v4207 = vpop.f32.mrb[0].mxu0
  %v4208 = vadd.f32 %v2928, %v4207
  %v4209 = vpop.f32.mrb[0].mxu0
  %v4210 = vadd.f32 %v2924, %v4209
  %v4211 = vpop.f32.mrb[0].mxu0
  %v4212 = vadd.f32 %v2928, %v4211
  %4213 = vmatprep.mubr.bf16.mxu0 %v2668
  %4214 = vmatmul.mubr.bf16.gmra.mrb[0].mxu0 %v2667
  %v4215 = vpop.f32.mrb[0].mxu0
  %v4216 = vadd.f32 %v2924, %v4215
  %v4217 = vpop.f32.mrb[0].mxu0
  %v4218 = vadd.f32 %v2928, %v4217
  %v4219 = vpop.f32.mrb[0].mxu0
  %v4220 = vpop.f32.mrb[0].mxu0
  %4221 = vdwg.mxu0
  %4222 = vmatprep.subr.bf16.mxu0 %v3611
  %4223 = vmatpush1.bf16.msra.mxu0 %v3610
  %4224 = vmatprep.subr.bf16.mxu0 %v3624
  %4225 = vmatpush1.bf16.msra.mxu0 %v3623
  %4226 = vmatprep.subr.bf16.mxu0 %v3637
  %4227 = vmatpush1.bf16.msra.mxu0 %v3636
  %4228 = vmatprep.subr.bf16.mxu0 %v3650
  %4229 = vmatpush1.bf16.msra.mxu0 %v3649
  %4230 = vmatprep.subr.bf16.mxu0 %v3663
  %4231 = vmatpush1.bf16.msra.mxu0 %v3662
  %4232 = vmatprep.subr.bf16.mxu0 %v3676
  %4233 = vmatpush1.bf16.msra.mxu0 %v3675
  %4234 = vmatprep.subr.bf16.mxu0 %v3689
  %4235 = vmatpush1.bf16.msra.mxu0 %v3688
  %4236 = vmatprep.subr.bf16.mxu0 %v3702
  %4237 = vmatpush1.bf16.msra.mxu0 %v3701
  %4238 = vmatprep.subr.bf16.mxu0 %v3715
  %4239 = vmatpush1.bf16.msra.mxu0 %v3714
  %4240 = vmatprep.subr.bf16.mxu0 %v3728
  %4241 = vmatpush1.bf16.msra.mxu0 %v3727
  %4242 = vmatprep.subr.bf16.mxu0 %v3741
  %4243 = vmatpush1.bf16.msra.mxu0 %v3740
  %4244 = vmatprep.subr.bf16.mxu0 %v3754
  %4245 = vmatpush1.bf16.msra.mxu0 %v3753
  %4246 = vmatprep.subr.bf16.mxu0 %v3767
  %4247 = vmatpush1.bf16.msra.mxu0 %v3766
  %4248 = vmatprep.subr.bf16.mxu0 %v3780
  %4249 = vmatpush1.bf16.msra.mxu0 %v3779
  %4250 = vmatprep.subr.bf16.mxu0 %v3793
  %4251 = vmatpush1.bf16.msra.mxu0 %v3792
  %4252 = vmatprep.subr.bf16.mxu0 %v3806
  %4253 = vmatpush1.bf16.msra.mxu0 %v3805
  %4254 = vmatprep.mubr.bf16.mxu0 %v2666
  %4255 = vmatmul.mubr.bf16.gmra.mrb[0].mxu0 %v2665
  %v4256 = vpop.f32.mrb[0].mxu0
  %v4257 = vadd.f32 %v2932, %v4256
  %v4258 = vpop.f32.mrb[0].mxu0
  %v4259 = vadd.f32 %v2936, %v4258
  %v4260 = vpop.f32.mrb[0].mxu0
  %v4261 = vadd.f32 %v2932, %v4260
  %v4262 = vpop.f32.mrb[0].mxu0
  %v4263 = vadd.f32 %v2936, %v4262
  %4264 = vmatprep.mubr.bf16.mxu0 %v2668
  %4265 = vmatmul.mubr.bf16.gmra.mrb[0].mxu0 %v2667
  %v4266 = vpop.f32.mrb[0].mxu0
  %v4267 = vadd.f32 %v2932, %v4266
  %v4268 = vpop.f32.mrb[0].mxu0
  %v4269 = vadd.f32 %v2936, %v4268
  %v4270 = vpop.f32.mrb[0].mxu0
  %v4271 = vpop.f32.mrb[0].mxu0
  %4272 = vdwg.mxu0
  %4273 = vmatprep.subr.bf16.mxu0 %v3613
  %4274 = vmatpush1.bf16.msra.mxu0 %v3612
  %4275 = vmatprep.subr.bf16.mxu0 %v3626
  %4276 = vmatpush1.bf16.msra.mxu0 %v3625
  %4277 = vmatprep.subr.bf16.mxu0 %v3639
  %4278 = vmatpush1.bf16.msra.mxu0 %v3638
  %4279 = vmatprep.subr.bf16.mxu0 %v3652
  %4280 = vmatpush1.bf16.msra.mxu0 %v3651
  %4281 = vmatprep.subr.bf16.mxu0 %v3665
  %4282 = vmatpush1.bf16.msra.mxu0 %v3664
  %4283 = vmatprep.subr.bf16.mxu0 %v3678
  %4284 = vmatpush1.bf16.msra.mxu0 %v3677
  %4285 = vmatprep.subr.bf16.mxu0 %v3691
  %4286 = vmatpush1.bf16.msra.mxu0 %v3690
  %4287 = vmatprep.subr.bf16.mxu0 %v3704
  %4288 = vmatpush1.bf16.msra.mxu0 %v3703
  %4289 = vmatprep.subr.bf16.mxu0 %v3717
  %4290 = vmatpush1.bf16.msra.mxu0 %v3716
  %4291 = vmatprep.subr.bf16.mxu0 %v3730
  %4292 = vmatpush1.bf16.msra.mxu0 %v3729
  %4293 = vmatprep.subr.bf16.mxu0 %v3743
  %4294 = vmatpush1.bf16.msra.mxu0 %v3742
  %4295 = vmatprep.subr.bf16.mxu0 %v3756
  %4296 = vmatpush1.bf16.msra.mxu0 %v3755
  %4297 = vmatprep.subr.bf16.mxu0 %v3769
  %4298 = vmatpush1.bf16.msra.mxu0 %v3768
  %4299 = vmatprep.subr.bf16.mxu0 %v3782
  %4300 = vmatpush1.bf16.msra.mxu0 %v3781
  %4301 = vmatprep.subr.bf16.mxu0 %v3795
  %4302 = vmatpush1.bf16.msra.mxu0 %v3794
  %4303 = vmatprep.subr.bf16.mxu0 %v3808
  %4304 = vmatpush1.bf16.msra.mxu0 %v3807
  %4305 = vmatprep.mubr.bf16.mxu0 %v2666
  %4306 = vmatmul.mubr.bf16.gmra.mrb[0].mxu0 %v2665
  %v4307 = vpop.f32.mrb[0].mxu0
  %v4308 = vadd.f32 %v2940, %v4307
  %v4309 = vpop.f32.mrb[0].mxu0
  %v4310 = vadd.f32 %v2944, %v4309
  %v4311 = vpop.f32.mrb[0].mxu0
  %v4312 = vadd.f32 %v2940, %v4311
  %v4313 = vpop.f32.mrb[0].mxu0
  %v4314 = vadd.f32 %v2944, %v4313
  %4315 = vmatprep.mubr.bf16.mxu0 %v2668
  %4316 = vmatmul.mubr.bf16.gmra.mrb[0].mxu0 %v2667
  %v4317 = vpop.f32.mrb[0].mxu0
  %v4318 = vadd.f32 %v2940, %v4317
  %v4319 = vpop.f32.mrb[0].mxu0
  %v4320 = vadd.f32 %v2944, %v4319
  %v4321 = vpop.f32.mrb[0].mxu0
  %v4322 = vpop.f32.mrb[0].mxu0
  %4323 = vdwg.mxu0
  %4324 = vmatprep.subr.bf16.mxu0 0
  %4325 = vmatpush1.bf16.msra.mxu0 %v3614
  %4326 = vmatprep.subr.bf16.mxu0 0
  %4327 = vmatpush1.bf16.msra.mxu0 %v3627
  %4328 = vmatprep.subr.bf16.mxu0 0
  %4329 = vmatpush1.bf16.msra.mxu0 %v3640
  %4330 = vmatprep.subr.bf16.mxu0 0
  %4331 = vmatpush1.bf16.msra.mxu0 %v3653
  %4332 = vmatprep.subr.bf16.mxu0 0
  %4333 = vmatpush1.bf16.msra.mxu0 %v3666
  %4334 = vmatprep.subr.bf16.mxu0 0
  %4335 = vmatpush1.bf16.msra.mxu0 %v3679
  %4336 = vmatprep.subr.bf16.mxu0 0
  %4337 = vmatpush1.bf16.msra.mxu0 %v3692
  %4338 = vmatprep.subr.bf16.mxu0 0
  %4339 = vmatpush1.bf16.msra.mxu0 %v3705
  %4340 = vmatprep.subr.bf16.mxu0 0
  %4341 = vmatpush1.bf16.msra.mxu0 %v3718
  %4342 = vmatprep.subr.bf16.mxu0 0
  %4343 = vmatpush1.bf16.msra.mxu0 %v3731
  %4344 = vmatprep.subr.bf16.mxu0 0
  %4345 = vmatpush1.bf16.msra.mxu0 %v3744
  %4346 = vmatprep.subr.bf16.mxu0 0
  %4347 = vmatpush1.bf16.msra.mxu0 %v3757
  %4348 = vmatprep.subr.bf16.mxu0 0
  %4349 = vmatpush1.bf16.msra.mxu0 %v3770
  %4350 = vmatprep.subr.bf16.mxu0 0
  %4351 = vmatpush1.bf16.msra.mxu0 %v3783
  %4352 = vmatprep.subr.bf16.mxu0 0
  %4353 = vmatpush1.bf16.msra.mxu0 %v3796
  %4354 = vmatprep.subr.bf16.mxu0 0
  %4355 = vmatpush1.bf16.msra.mxu0 %v3809
  %4356 = vmatprep.mubr.bf16.mxu0 %v2666
  %4357 = vmatmul.mubr.bf16.gmra.mrb[0].mxu0 %v2665
  %v4358 = vpop.f32.mrb[0].mxu0
  %v4359 = vadd.f32 %v2948, %v4358
  %v4360 = vpop.f32.mrb[0].mxu0
  %v4361 = vpop.f32.mrb[0].mxu0
  %v4362 = vadd.f32 %v2948, %v4361
  %v4363 = vpop.f32.mrb[0].mxu0
  %4364 = vmatprep.mubr.bf16.mxu0 %v2668
  %4365 = vmatmul.mubr.bf16.gmra.mrb[0].mxu0 %v2667
  %v4366 = vpop.f32.mrb[0].mxu0
  %v4367 = vadd.f32 %v2948, %v4366
  %v4368 = vpop.f32.mrb[0].mxu0
  %v4369 = vpop.f32.mrb[0].mxu0
  %v4370 = vpop.f32.mrb[0].mxu0
  %4371 = vdwg.mxu0
  %vm4372 = vcmp.gt.f32.partialorder %v4053, 0.0
  %vm4373 = vcmp.gt.f32.partialorder %v4055, 0.0
  %vm4374 = vcmp.gt.f32.partialorder %v4104, 0.0
  %vm4375 = vcmp.gt.f32.partialorder %v4106, 0.0
  %vm4376 = vcmp.gt.f32.partialorder %v4155, 0.0
  %vm4377 = vcmp.gt.f32.partialorder %v4157, 0.0
  %vm4378 = vcmp.gt.f32.partialorder %v4206, 0.0
  %vm4379 = vcmp.gt.f32.partialorder %v4208, 0.0
  %vm4380 = vcmp.gt.f32.partialorder %v4257, 0.0
  %vm4381 = vcmp.gt.f32.partialorder %v4259, 0.0
  %vm4382 = vcmp.gt.f32.partialorder %v4308, 0.0
  %vm4383 = vcmp.gt.f32.partialorder %v4310, 0.0
  %vm4384 = vcmp.gt.f32.partialorder %v4359, 0.0
  %vm4385 = vcmp.gt.f32.partialorder %v4057, 0.0
  %vm4386 = vcmp.gt.f32.partialorder %v4059, 0.0
  %vm4387 = vcmp.gt.f32.partialorder %v4108, 0.0
  %vm4388 = vcmp.gt.f32.partialorder %v4110, 0.0
  %vm4389 = vcmp.gt.f32.partialorder %v4159, 0.0
  %vm4390 = vcmp.gt.f32.partialorder %v4161, 0.0
  %vm4391 = vcmp.gt.f32.partialorder %v4210, 0.0
  %vm4392 = vcmp.gt.f32.partialorder %v4212, 0.0
  %vm4393 = vcmp.gt.f32.partialorder %v4261, 0.0
  %vm4394 = vcmp.gt.f32.partialorder %v4263, 0.0
  %vm4395 = vcmp.gt.f32.partialorder %v4312, 0.0
  %vm4396 = vcmp.gt.f32.partialorder %v4314, 0.0
  %vm4397 = vcmp.gt.f32.partialorder %v4362, 0.0
  %vm4398 = vcmp.gt.f32.partialorder %v4063, 0.0
  %vm4399 = vcmp.gt.f32.partialorder %v4065, 0.0
  %vm4400 = vcmp.gt.f32.partialorder %v4114, 0.0
  %vm4401 = vcmp.gt.f32.partialorder %v4116, 0.0
  %vm4402 = vcmp.gt.f32.partialorder %v4165, 0.0
  %vm4403 = vcmp.gt.f32.partialorder %v4167, 0.0
  %vm4404 = vcmp.gt.f32.partialorder %v4216, 0.0
  %vm4405 = vcmp.gt.f32.partialorder %v4218, 0.0
  %vm4406 = vcmp.gt.f32.partialorder %v4267, 0.0
  %vm4407 = vcmp.gt.f32.partialorder %v4269, 0.0
  %vm4408 = vcmp.gt.f32.partialorder %v4318, 0.0
  %vm4409 = vcmp.gt.f32.partialorder %v4320, 0.0
  %vm4410 = vcmp.gt.f32.partialorder %v4367, 0.0
  %v4411 = vmul.f32 %v4053, 0.1
  %v4412 = vmul.f32 %v4055, 0.1
  %v4413 = vmul.f32 %v4104, 0.1
  %v4414 = vmul.f32 %v4106, 0.1
  %v4415 = vmul.f32 %v4155, 0.1
  %v4416 = vmul.f32 %v4157, 0.1
  %v4417 = vmul.f32 %v4206, 0.1
  %v4418 = vmul.f32 %v4208, 0.1
  %v4419 = vmul.f32 %v4257, 0.1
  %v4420 = vmul.f32 %v4259, 0.1
  %v4421 = vmul.f32 %v4308, 0.1
  %v4422 = vmul.f32 %v4310, 0.1
  %v4423 = vmul.f32 %v4359, 0.1
  %v4424 = vmul.f32 %v4057, 0.1
  %v4425 = vmul.f32 %v4059, 0.1
  %v4426 = vmul.f32 %v4108, 0.1
  %v4427 = vmul.f32 %v4110, 0.1
  %v4428 = vmul.f32 %v4159, 0.1
  %v4429 = vmul.f32 %v4161, 0.1
  %v4430 = vmul.f32 %v4210, 0.1
  %v4431 = vmul.f32 %v4212, 0.1
  %v4432 = vmul.f32 %v4261, 0.1
  %v4433 = vmul.f32 %v4263, 0.1
  %v4434 = vmul.f32 %v4312, 0.1
  %v4435 = vmul.f32 %v4314, 0.1
  %v4436 = vmul.f32 %v4362, 0.1
  %v4437 = vmul.f32 %v4063, 0.1
  %v4438 = vmul.f32 %v4065, 0.1
  %v4439 = vmul.f32 %v4114, 0.1
  %v4440 = vmul.f32 %v4116, 0.1
  %v4441 = vmul.f32 %v4165, 0.1
  %v4442 = vmul.f32 %v4167, 0.1
  %v4443 = vmul.f32 %v4216, 0.1
  %v4444 = vmul.f32 %v4218, 0.1
  %v4445 = vmul.f32 %v4267, 0.1
  %v4446 = vmul.f32 %v4269, 0.1
  %v4447 = vmul.f32 %v4318, 0.1
  %v4448 = vmul.f32 %v4320, 0.1
  %v4449 = vmul.f32 %v4367, 0.1
  %v4450 = vsel %vm4372, %v4053, %v4411
  %v4451 = vsel %vm4373, %v4055, %v4412
  %v4452 = vsel %vm4374, %v4104, %v4413
  %v4453 = vsel %vm4375, %v4106, %v4414
  %v4454 = vsel %vm4376, %v4155, %v4415
  %v4455 = vsel %vm4377, %v4157, %v4416
  %v4456 = vsel %vm4378, %v4206, %v4417
  %v4457 = vsel %vm4379, %v4208, %v4418
  %v4458 = vsel %vm4380, %v4257, %v4419
  %v4459 = vsel %vm4381, %v4259, %v4420
  %v4460 = vsel %vm4382, %v4308, %v4421
  %v4461 = vsel %vm4383, %v4310, %v4422
  %v4462 = vsel %vm4384, %v4359, %v4423
  %v4463 = vsel %vm4385, %v4057, %v4424
  %v4464 = vsel %vm4386, %v4059, %v4425
  %v4465 = vsel %vm4387, %v4108, %v4426
  %v4466 = vsel %vm4388, %v4110, %v4427
  %v4467 = vsel %vm4389, %v4159, %v4428
  %v4468 = vsel %vm4390, %v4161, %v4429
  %v4469 = vsel %vm4391, %v4210, %v4430
  %v4470 = vsel %vm4392, %v4212, %v4431
  %v4471 = vsel %vm4393, %v4261, %v4432
  %v4472 = vsel %vm4394, %v4263, %v4433
  %v4473 = vsel %vm4395, %v4312, %v4434
  %v4474 = vsel %vm4396, %v4314, %v4435
  %v4475 = vsel %vm4397, %v4362, %v4436
  %v4476 = vsel %vm4398, %v4063, %v4437
  %v4477 = vsel %vm4399, %v4065, %v4438
  %v4478 = vsel %vm4400, %v4114, %v4439
  %v4479 = vsel %vm4401, %v4116, %v4440
  %v4480 = vsel %vm4402, %v4165, %v4441
  %v4481 = vsel %vm4403, %v4167, %v4442
  %v4482 = vsel %vm4404, %v4216, %v4443
  %v4483 = vsel %vm4405, %v4218, %v4444
  %v4484 = vsel %vm4406, %v4267, %v4445
  %v4485 = vsel %vm4407, %v4269, %v4446
  %v4486 = vsel %vm4408, %v4318, %v4447
  %v4487 = vsel %vm4409, %v4320, %v4448
  %v4488 = vsel %vm4410, %v4367, %v4449
  %4489 = vst [vmem:[%s19] sm:$0xff] %v4450
  %4490 = vst [vmem:[%s19 + $0x8] sm:$0xff] %v4451
  %4491 = vst [vmem:[%s19 + $0x10] sm:$0xff] %v4452
  %4492 = vst [vmem:[%s19 + $0x18] sm:$0xff] %v4453
  %4493 = vst [vmem:[%s19 + $0x20] sm:$0xff] %v4454
  %4494 = vst [vmem:[%s19 + $0x28] sm:$0xff] %v4455
  %4495 = vst [vmem:[%s19 + $0x30] sm:$0xff] %v4456
  %4496 = vst [vmem:[%s19 + $0x38] sm:$0xff] %v4457
  %4497 = vst [vmem:[%s19 + $0x40] sm:$0xff] %v4458
  %4498 = vst [vmem:[%s19 + $0x48] sm:$0xff] %v4459
  %4499 = vst [vmem:[%s19 + $0x50] sm:$0xff] %v4460
  %4500 = vst [vmem:[%s19 + $0x58] sm:$0xff] %v4461
  %4501 = vst.msk [vmem:[%s19 + $0x60] sm:$0xff] %vm1342, %v4462
  %4502 = vst [vmem:[%s19 + $0x68] sm:$0xff] %v4463
  %4503 = vst [vmem:[%s19 + $0x70] sm:$0xff] %v4464
  %4504 = vst [vmem:[%s19 + $0x78] sm:$0xff] %v4465
  %4505 = vst [vmem:[%s19 + $0x80] sm:$0xff] %v4466
  %4506 = vst [vmem:[%s19 + $0x88] sm:$0xff] %v4467
  %4507 = vst [vmem:[%s19 + $0x90] sm:$0xff] %v4468
  %4508 = vst [vmem:[%s19 + $0x98] sm:$0xff] %v4469
  %4509 = vst [vmem:[%s19 + $0xa0] sm:$0xff] %v4470
  %4510 = vst [vmem:[%s19 + $0xa8] sm:$0xff] %v4471
  %4511 = vst [vmem:[%s19 + $0xb0] sm:$0xff] %v4472
  %4512 = vst [vmem:[%s19 + $0xb8] sm:$0xff] %v4473
  %4513 = vst [vmem:[%s19 + $0xc0] sm:$0xff] %v4474
  %4514 = vst.msk [vmem:[%s19 + $0xc8] sm:$0xff] %vm1342, %v4475
  %4515 = vst [vmem:[%s19 + $0xd0] sm:$0xff] %v4476
  %4516 = vst [vmem:[%s19 + $0xd8] sm:$0xff] %v4477
  %4517 = vst [vmem:[%s19 + $0xe0] sm:$0xff] %v4478
  %4518 = vst [vmem:[%s19 + $0xe8] sm:$0xff] %v4479
  %4519 = vst [vmem:[%s19 + $0xf0] sm:$0xff] %v4480
  %4520 = vst [vmem:[%s19 + $0xf8] sm:$0xff] %v4481
  %4521 = vst [vmem:[%s19 + $0x100] sm:$0xff] %v4482
  %4522 = vst [vmem:[%s19 + $0x108] sm:$0xff] %v4483
  %4523 = vst [vmem:[%s19 + $0x110] sm:$0xff] %v4484
  %4524 = vst [vmem:[%s19 + $0x118] sm:$0xff] %v4485
  %4525 = vst [vmem:[%s19 + $0x120] sm:$0xff] %v4486
  %4526 = vst [vmem:[%s19 + $0x128] sm:$0xff] %v4487
  %4527 = vst.msk [vmem:[%s19 + $0x130] sm:$0xff] %vm1342, %v4488
  // Predicated region
  $region78: #{vae_forward.1} parent=0 // pred_check
    _
  $region79: #{vae_forward.1} parent=0 // pred_check_branch
    %4529 = sbr.rel (0) target = $region81
  $region80: #{vae_forward.1} parent=0 // pred_region
    _
  $region81: #{vae_forward.1} parent=0 // pred_fallthru
    _
  // Predicated region
  $region82: #{vae_forward.1} parent=0 // pred_check
    _
  $region83: #{vae_forward.1} parent=0 // pred_check_branch
    %4531 = sbr.rel (0) target = $region85
  $region84: #{vae_forward.1} parent=0 // pred_region
    _
  $region85: #{vae_forward.1} parent=0 // pred_fallthru
    _
  // Predicated region
  $region86: #{vae_forward.1} parent=0 // pred_check
    _
  $region87: #{vae_forward.1} parent=0 // pred_check_branch
    %4533 = sbr.rel (0) target = $region89
  $region88: #{vae_forward.1} parent=0 // pred_region
    _
  $region89: #{vae_forward.1} parent=0 // pred_fallthru
    _
  // Predicated region
  $region90: #{vae_forward.1} parent=0 // pred_check
    _
  $region91: #{vae_forward.1} parent=0 // pred_check_branch
    %4535 = sbr.rel (0) target = $region93
  $region92: #{vae_forward.1} parent=0 // pred_region
    _
  $region93: #{vae_forward.1} parent=0 // pred_fallthru
    _

</llo_original>
